<compile_context>
chip_gen: v7x
topology: tpu7x:2x2x1
jax: 0.10.0
libtpu: 0.0.40
codegen_flags: <defaults>
</compile_context>

<pallas_src>
import functools

import numpy as np

import jax
import jax.numpy as jnp
from jax import lax
from jax.experimental import pallas as pl
from jax.experimental.pallas import tpu as pltpu


def _round_up(x, m):
    return (x + m - 1) // m * m


# ---------------------------------------------------------------------------
# Fused forward kernel.  Grid = (batch blocks, encoder layers); layer axis innermost.
# ---------------------------------------------------------------------------
def _fused_forward_kernel(
    x_ref,        # (rb, L)   rows = (batch, padded-variate), raw input (time on lanes)
    we_ref,       # (L, D)    inverted-embedding weight (pre-transposed)
    be_ref,       # (1, D)
    wq_ref,       # (1, H, D, Dh)  current layer, per-head slabs
    bq_ref,       # (1, H, 1, Dh)
    wk_ref, bk_ref,
    wv_ref, bv_ref,
    wo_ref,       # (1, H, Dh, D)
    bo_ref,       # (1, 1, D)
    ln1w_ref, ln1b_ref,          # (1, 1, D)
    w1_ref,       # (1, D, F)
    b1_ref,       # (1, 1, F)
    w2_ref,       # (1, F, D)
    b2_ref,       # (1, 1, D)
    ln2w_ref, ln2b_ref,          # (1, 1, D)
    wcomb_ref,    # (D, Pp)   folded DLinear projection (Ws(I-A)+Wt A)^T, lane-padded
    bcomb_ref,    # (1, Pp)
    o_ref,        # (rb, Pp)
    h_scr,        # VMEM (rb, D) f32 — encoder state carried across layer grid steps
    mean_scr,     # VMEM (rb, 1) f32 — instance-norm mean (for de-normalization)
    std_scr,      # VMEM (rb, 1) f32 — instance-norm std
    *, n_head, n_real, rows_per_batch, batch_block, need_mask,
):
    f32 = jnp.float32
    mm = we_ref.dtype                       # MXU operand dtype (bf16 or f32)
    eps = 1e-5
    layer = pl.program_id(1)
    n_layers = pl.num_programs(1)

    # ---- first layer step only: instance norm over time + inverted embedding ----
    @pl.when(layer == 0)
    def _embed():
        x = x_ref[...].astype(f32)                              # (rb, L)
        mean = jnp.mean(x, axis=-1, keepdims=True)
        xc = x - mean
        var = jnp.mean(xc * xc, axis=-1, keepdims=True)         # biased variance
        rstd = lax.rsqrt(var + eps)                             # EUP rsqrt
        mean_scr[...] = mean
        std_scr[...] = (var + eps) * rstd                       # == sqrt(var + eps)
        h_scr[...] = (jnp.dot((xc * rstd).astype(mm), we_ref[...],
                              preferred_element_type=f32) + be_ref[...])

    h = h_scr[...]                                              # (rb, D) f32
    rb, D = h.shape
    Dh = D // n_head
    scale = 1.0 / float(Dh) ** 0.5

    # ---- self-attention: all heads batched (per-head weight slabs, no lane slicing) --
    hb = jnp.broadcast_to(h.astype(mm), (n_head, rb, D))
    q = jnp.einsum("hrd,hdk->hrk", hb, wq_ref[0], preferred_element_type=f32) + bq_ref[0]
    k = jnp.einsum("hrd,hdk->hrk", hb, wk_ref[0], preferred_element_type=f32) + bk_ref[0]
    v = jnp.einsum("hrd,hdk->hrk", hb, wv_ref[0], preferred_element_type=f32) + bv_ref[0]

    s = jnp.einsum("hrk,hsk->hrs", (q * scale).astype(mm), k.astype(mm),
                   preferred_element_type=f32)                  # (H, rb, rb), f32 scores
    if need_mask:
        # Additive mask generated in-kernel (no (rb, rb) HBM operand): keys from padded
        # variate rows — and, if batch_block > 1, from other batches — get -1e30.
        # Scores stay f32, so -1e30 is safe (exp -> 0 after max subtraction).
        cols = lax.broadcasted_iota(jnp.int32, (rb, rb), 1)
        if batch_block == 1:
            valid = cols < n_real
        else:
            rows = lax.broadcasted_iota(jnp.int32, (rb, rb), 0)
            valid = ((cols % rows_per_batch) < n_real) & (
                (rows // rows_per_batch) == (cols // rows_per_batch))
        s = s + jnp.where(valid, 0.0, -1e30)
    s = s - jnp.max(s, axis=-1, keepdims=True)
    p = jnp.exp(s)
    # approx reciprocal: ~2^-12 relative error on the softmax denominator (EUP slot).
    p = p * pl.reciprocal(jnp.sum(p, axis=-1, keepdims=True), approx=True)
    ctx = jnp.einsum("hrs,hsk->hrk", p.astype(mm), v.astype(mm),
                     preferred_element_type=f32)                # (H, rb, Dh)
    # concat(ctx_h) @ Wo  ==  sum_h ctx_h @ Wo_h  (no concatenate / relayout needed)
    attn = jnp.sum(
        jnp.einsum("hrk,hkd->hrd", ctx.astype(mm), wo_ref[0],
                   preferred_element_type=f32), axis=0) + bo_ref[0]   # (rb, D)

    # ---- residual + LayerNorm 1 (post-norm) ----
    h = h + attn
    mu = jnp.mean(h, axis=-1, keepdims=True)
    hc = h - mu
    hv = jnp.mean(hc * hc, axis=-1, keepdims=True)
    h = hc * lax.rsqrt(hv + eps) * ln1w_ref[0] + ln1b_ref[0]

    # ---- feed-forward (ReLU); dropout == identity in eval ----
    f = jnp.dot(h.astype(mm), w1_ref[0], preferred_element_type=f32) + b1_ref[0]
    f = jnp.maximum(f, 0.0)
    f = jnp.dot(f.astype(mm), w2_ref[0], preferred_element_type=f32) + b2_ref[0]

    # ---- residual + LayerNorm 2 ----
    h = h + f
    mu = jnp.mean(h, axis=-1, keepdims=True)
    hc = h - mu
    hv = jnp.mean(hc * hc, axis=-1, keepdims=True)
    h = hc * lax.rsqrt(hv + eps) * ln2w_ref[0] + ln2b_ref[0]

    h_scr[...] = h                                              # carry to next layer step

    # ---- last layer step: folded DLinear projector + de-normalization ----
    @pl.when(layer == n_layers - 1)
    def _project():
        dec = jnp.dot(h.astype(mm), wcomb_ref[...],
                      preferred_element_type=f32) + bcomb_ref[...]    # (rb, Pp)
        o_ref[...] = (dec * std_scr[...] + mean_scr[...]).astype(o_ref.dtype)


# ---------------------------------------------------------------------------
# Wrapper
# ---------------------------------------------------------------------------
def itransformer_multi_dlinear_forward(x_enc, prep, *, n_head, pred_len, batch_block=1):
    """Forward pass. x_enc: (B, L, N) -> (B, pred_len, N). `prep` from prepare_params()."""
    B, L, N = x_enc.shape
    n_layers, _, D, Dh = prep["wq"].shape
    d_ff = prep["w1"].shape[2]
    P_pad = prep["wcomb"].shape[1]
    assert D == n_head * Dh and prep["we"].shape == (L, D)
    assert B % batch_block == 0, "batch_block must divide batch"

    n_pad = _round_up(N, 8)                  # pad variate rows so blocks fill sublanes
    rb = batch_block * n_pad                 # rows handled per grid step
    grid = (B // batch_block, n_layers)      # (batch blocks, encoder layers)
    need_mask = (n_pad != N) or (batch_block > 1)

    # (B, L, N) -> (B, N_pad, L) -> (B*N_pad, L): (batch, variate) rows, time on lanes.
    x_rows = jnp.swapaxes(x_enc, 1, 2).astype(jnp.float32)
    if n_pad != N:
        x_rows = jnp.pad(x_rows, ((0, 0), (0, n_pad - N), (0, 0)))
    x_rows = x_rows.reshape(B * n_pad, L)

    def lspec(*shape):   # per-layer stacked weight: one layer resident, next prefetched
        zeros = (0,) * len(shape)
        return pl.BlockSpec((1,) + shape, lambda b, l: (l,) + zeros)

    def cspec(*shape):   # layer-/batch-invariant weight (constant block index)
        zeros = (0,) * len(shape)
        return pl.BlockSpec(shape, lambda b, l: zeros)

    kern = functools.partial(
        _fused_forward_kernel, n_head=n_head, n_real=N, rows_per_batch=n_pad,
        batch_block=batch_block, need_mask=need_mask)

    # VMEM budget: 2 pipelined copies of one layer's weights + constants + IO + acts.
    mm_b = jnp.dtype(prep["we"].dtype).itemsize
    w_layer = (4 * D * D + 2 * D * d_ff) * mm_b + (8 * D + d_ff) * 4
    w_const = (L * D + D * P_pad) * mm_b + (D + P_pad) * 4
    io_b = (rb * L + rb * P_pad) * 4
    act_b = (n_head * rb * (2 * rb + 4 * Dh + D) + rb * (3 * D + d_ff + P_pad)) * 4
    need = 2 * w_layer + 2 * w_const + 2 * io_b + act_b + rb * (D + 2) * 4
    vmem_limit = int(min(max(2 * need, 32 * 2**20), 100 * 2**20))

    # Advisory cost estimate (lets XLA schedule surrounding transpose/pad around us).
    rows_total = B * n_pad
    flops = 2 * rows_total * L * D
    flops += n_layers * (2 * rows_total * D * (4 * D + 2 * d_ff) + 4 * rows_total * rb * D)
    flops += 2 * rows_total * D * P_pad
    transc = n_layers * n_head * rows_total * rb
    bytes_acc = rows_total * (L + P_pad) * 4 + (B // batch_block) * n_layers * w_layer + w_const

    out_rows = pl.pallas_call(
        kern,
        out_shape=jax.ShapeDtypeStruct((B * n_pad, P_pad), jnp.float32),
        grid_spec=pltpu.PrefetchScalarGridSpec(
            num_scalar_prefetch=0,
            grid=grid,
            in_specs=[
                pl.BlockSpec((rb, L), lambda b, l: (b, 0)),      # x rows (per batch block)
                cspec(L, D), cspec(1, D),                        # inverted embedding
                lspec(n_head, D, Dh), lspec(n_head, 1, Dh),      # Wq / bq (per-head slabs)
                lspec(n_head, D, Dh), lspec(n_head, 1, Dh),      # Wk / bk
                lspec(n_head, D, Dh), lspec(n_head, 1, Dh),      # Wv / bv
                lspec(n_head, Dh, D), lspec(1, D),               # Wo / bo
                lspec(1, D), lspec(1, D),                        # LayerNorm 1
                lspec(D, d_ff), lspec(1, d_ff),                  # FFN in
                lspec(d_ff, D), lspec(1, D),                     # FFN out
                lspec(1, D), lspec(1, D),                        # LayerNorm 2
                cspec(D, P_pad), cspec(1, P_pad),                # folded DLinear + de-norm
            ],
            out_specs=pl.BlockSpec((rb, P_pad), lambda b, l: (b, 0)),
            scratch_shapes=[
                pltpu.VMEM((rb, D), jnp.float32),                # carried encoder state h
                pltpu.VMEM((rb, 1), jnp.float32),                # instance-norm mean
                pltpu.VMEM((rb, 1), jnp.float32),                # instance-norm std
            ]),
        compiler_params=pltpu.CompilerParams(
            dimension_semantics=("parallel", "arbitrary"),
            vmem_limit_bytes=vmem_limit),
        cost_estimate=pl.CostEstimate(flops=int(flops), transcendentals=int(transc),
                                      bytes_accessed=int(bytes_acc)),
    )(x_rows, prep["we"], prep["be"],
      prep["wq"], prep["bq"], prep["wk"], prep["bk"], prep["wv"], prep["bv"],
      prep["wo"], prep["bo"], prep["ln1w"], prep["ln1b"],
      prep["w1"], prep["b1"], prep["w2"], prep["b2"], prep["ln2w"], prep["ln2b"],
      prep["wcomb"], prep["bcomb"])

    # (B*N_pad, P_pad) -> slice row / lane padding -> (B, pred_len, N)
    out = out_rows.reshape(B, n_pad, P_pad)[:, :N, :pred_len]
    return jnp.swapaxes(out, 1, 2)


# ---------------------------------------------------------------------------
# One-time parameter preparation (kernel-ready layout; done OUTSIDE the jitted call)
# ---------------------------------------------------------------------------
def prepare_params(params, *, n_head, pred_len, mm_dtype=jnp.bfloat16):
    """Per-head attention slabs, pre-cast MXU-operand dtype, lane-padded DLinear fold."""
    we = params["we_t"]
    L, D = we.shape
    n_layers = params["wqkv_t"].shape[0]
    assert D % n_head == 0
    Dh = D // n_head
    P_pad = _round_up(pred_len, 128)
    f32 = jnp.float32

    def heads_w(w):   # (nl, D, D) -> (nl, H, D, Dh)
        return w.reshape(n_layers, D, n_head, Dh).transpose(0, 2, 1, 3)

    def heads_b(b):   # (nl, 1, D) -> (nl, H, 1, Dh)
        return b.reshape(n_layers, 1, n_head, Dh).transpose(0, 2, 1, 3)

    wqkv, bqkv = params["wqkv_t"], params["bqkv"]
    return {
        "we": we.astype(mm_dtype),
        "be": params["be"].astype(f32),
        "wq": heads_w(wqkv[:, :, :D]).astype(mm_dtype),
        "wk": heads_w(wqkv[:, :, D:2 * D]).astype(mm_dtype),
        "wv": heads_w(wqkv[:, :, 2 * D:]).astype(mm_dtype),
        "bq": heads_b(bqkv[:, :, :D]).astype(f32),
        "bk": heads_b(bqkv[:, :, D:2 * D]).astype(f32),
        "bv": heads_b(bqkv[:, :, 2 * D:]).astype(f32),
        "wo": params["wo_t"].reshape(n_layers, n_head, Dh, D).astype(mm_dtype),
        "bo": params["bo"].astype(f32),
        "ln1w": params["ln1w"].astype(f32), "ln1b": params["ln1b"].astype(f32),
        "w1": params["w1_t"].astype(mm_dtype), "b1": params["b1"].astype(f32),
        "w2": params["w2_t"].astype(mm_dtype), "b2": params["b2"].astype(f32),
        "ln2w": params["ln2w"].astype(f32), "ln2b": params["ln2b"].astype(f32),
        "wcomb": jnp.pad(params["wcomb_t"],
                         ((0, 0), (0, P_pad - pred_len))).astype(mm_dtype),
        "bcomb": jnp.pad(params["bcomb"],
                         ((0, 0), (0, P_pad - pred_len))).astype(f32),
    }


# ---------------------------------------------------------------------------
# Parameter construction (deterministic, synthetic; pre-transposed / stacked / folded)
# ---------------------------------------------------------------------------
def _moving_avg_matrix(n, kernel_size):
    """A @ z == replicate-padded moving average (AvgPool1d k, stride 1) of z along axis 0."""
    pad = (kernel_size - 1) // 2
    a = np.zeros((n, n), np.float64)
    for i in range(n):
        for j in range(kernel_size):
            src = min(max(i - pad + j, 0), n - 1)
            a[i, src] += 1.0 / kernel_size
    return a


def init_params(key, *, d_model, n_head, nlayers, seq_len, d_ff, pred_len,
                moving_avg_kernel=25):
    def u(k, shape, scale=0.1):
        return jax.random.uniform(k, shape, jnp.float32, -scale, scale)

    keys = jax.random.split(key, 8 + nlayers)
    p = {}

    # DataEmbedding_inverted: Linear(seq_len -> d_model), stored as (L, D).
    p["we_t"] = u(keys[0], (seq_len, d_model))
    p["be"] = u(keys[1], (1, d_model))

    # Transformer encoder layers (weights pre-transposed, stacked on axis 0).
    # NOTE: LayerNorm weights get small random perturbations (PyTorch inits them to
    # 1/0) so the correctness check actually exercises the encoder -> projector path.
    stacks = {k: [] for k in ("wqkv_t", "bqkv", "wo_t", "bo", "ln1w", "ln1b",
                              "w1_t", "b1", "w2_t", "b2", "ln2w", "ln2b")}
    for l in range(nlayers):
        lk = jax.random.split(keys[8 + l], 12)
        stacks["wqkv_t"].append(u(lk[0], (d_model, 3 * d_model)))
        stacks["bqkv"].append(u(lk[1], (1, 3 * d_model)))
        stacks["wo_t"].append(u(lk[2], (d_model, d_model)))
        stacks["bo"].append(u(lk[3], (1, d_model)))
        stacks["w1_t"].append(u(lk[4], (d_model, d_ff)))
        stacks["b1"].append(u(lk[5], (1, d_ff)))
        stacks["w2_t"].append(u(lk[6], (d_ff, d_model)))
        stacks["b2"].append(u(lk[7], (1, d_model)))
        stacks["ln1w"].append(1.0 + u(lk[8], (1, d_model), 0.2))
        stacks["ln1b"].append(u(lk[9], (1, d_model)))
        stacks["ln2w"].append(1.0 + u(lk[10], (1, d_model), 0.2))
        stacks["ln2b"].append(u(lk[11], (1, d_model)))
    for k, v in stacks.items():
        p[k] = jnp.stack(v, axis=0)

    # DLinear projector (individual=False).  PyTorch inits both weights to 1/seq_len*ones
    # (seq_len == d_model here); we perturb them so seasonal/trend paths differ and the
    # decomposition fold is actually exercised by the validation.
    ws = np.full((pred_len, d_model), 1.0 / d_model) + np.asarray(
        jax.random.uniform(keys[2], (pred_len, d_model), jnp.float32, -0.05, 0.05))
    wt = np.full((pred_len, d_model), 1.0 / d_model) + np.asarray(
        jax.random.uniform(keys[3], (pred_len, d_model), jnp.float32, -0.05, 0.05))
    bs = u(keys[4], (1, pred_len))
    bt = u(keys[5], (1, pred_len))
    p["ws"] = jnp.asarray(ws, jnp.float32)
    p["wt"] = jnp.asarray(wt, jnp.float32)
    p["bs"] = bs
    p["bt"] = bt

    # Fold the series decomposition into one projection (exact linear refactor):
    #   seasonal = (I - A) z, trend = A z  =>  Ws@seasonal + Wt@trend = (Ws(I-A)+Wt A) z
    a = _moving_avg_matrix(d_model, moving_avg_kernel)
    w_comb = ws.astype(np.float64) @ (np.eye(d_model) - a) + wt.astype(np.float64) @ a
    p["wcomb_t"] = jnp.asarray(w_comb.T, jnp.float32)       # (D, P)
    p["bcomb"] = bs + bt
    return p


# ---------------------------------------------------------------------------
# Pure-JAX reference (mirrors the PyTorch module, f32) — used for validation
# ---------------------------------------------------------------------------
def reference_forward(x_enc, params, *, n_head, pred_len, moving_avg_kernel=25):
    B, L, N = x_enc.shape
    means = jnp.mean(x_enc, axis=1, keepdims=True)
    xc = x_enc - means
    stdev = jnp.sqrt(jnp.mean(xc * xc, axis=1, keepdims=True) + 1e-5)
    xn = xc / stdev

    enc = jnp.einsum("bln,ld->bnd", xn, params["we_t"]) + params["be"]
    D = enc.shape[-1]
    Dh = D // n_head
    nlayers = params["wqkv_t"].shape[0]

    for l in range(nlayers):
        qkv = jnp.einsum("bnd,de->bne", enc, params["wqkv_t"][l]) + params["bqkv"][l]
        q, k, v = qkv[..., :D], qkv[..., D:2 * D], qkv[..., 2 * D:]
        split = lambda t: t.reshape(B, N, n_head, Dh).transpose(0, 2, 1, 3)
        qh, kh, vh = split(q), split(k), split(v)
        s = jnp.einsum("bhnd,bhmd->bhnm", qh, kh) / jnp.sqrt(jnp.float32(Dh))
        ctx = jnp.einsum("bhnm,bhmd->bhnd", jax.nn.softmax(s, axis=-1), vh)
        ctx = ctx.transpose(0, 2, 1, 3).reshape(B, N, D)
        attn = jnp.einsum("bnd,de->bne", ctx, params["wo_t"][l]) + params["bo"][l]

        h = enc + attn
        mu = jnp.mean(h, -1, keepdims=True)
        var = jnp.mean((h - mu) ** 2, -1, keepdims=True)
        h = (h - mu) / jnp.sqrt(var + 1e-5) * params["ln1w"][l] + params["ln1b"][l]

        f = jnp.maximum(jnp.einsum("bnd,df->bnf", h, params["w1_t"][l]) + params["b1"][l], 0.0)
        f = jnp.einsum("bnf,fd->bnd", f, params["w2_t"][l]) + params["b2"][l]
        h = h + f
        mu = jnp.mean(h, -1, keepdims=True)
        var = jnp.mean((h - mu) ** 2, -1, keepdims=True)
        enc = (h - mu) / jnp.sqrt(var + 1e-5) * params["ln2w"][l] + params["ln2b"][l]

    # DLinear projector, done the explicit (PyTorch) way.
    x_proj = jnp.swapaxes(enc, 1, 2)                         # (B, D, N): time = d_model
    pad = (moving_avg_kernel - 1) // 2
    zp = jnp.concatenate([jnp.repeat(x_proj[:, :1], pad, axis=1), x_proj,
                          jnp.repeat(x_proj[:, -1:], pad, axis=1)], axis=1)
    cs = jnp.cumsum(zp, axis=1)
    cs = jnp.concatenate([jnp.zeros_like(cs[:, :1]), cs], axis=1)
    trend = (cs[:, moving_avg_kernel:] - cs[:, :-moving_avg_kernel]) / moving_avg_kernel
    seasonal = x_proj - trend
    s_out = jnp.einsum("bdn,pd->bnp", seasonal, params["ws"]) + params["bs"]
    t_out = jnp.einsum("bdn,pd->bnp", trend, params["wt"]) + params["bt"]
    dec = jnp.swapaxes(s_out + t_out, 1, 2)                  # (B, P, N)
    return dec * stdev + means


if __name__ == "__main__":
    # Small config consistent with the module.
    B, L, N = 2, 8, 4                 # batch, seq_len (time), number of variates
    d_model, n_head, nlayers = 32, 2, 2
    d_ff, pred_len = 64, 4

    key = jax.random.PRNGKey(0)
    k_x, k_p = jax.random.split(key)
    x_enc = jax.random.normal(k_x, (B, L, N), jnp.float32)

    params = init_params(k_p, d_model=d_model, n_head=n_head, nlayers=nlayers,
                         seq_len=L, d_ff=d_ff, pred_len=pred_len)
    ref = reference_forward(x_enc, params, n_head=n_head, pred_len=pred_len)

    fwd = jax.jit(itransformer_multi_dlinear_forward,
                  static_argnames=("n_head", "pred_len", "batch_block"))

    # f32 MXU path: tight validation against the pure-JAX reference.
    prep_f32 = prepare_params(params, n_head=n_head, pred_len=pred_len,
                              mm_dtype=jnp.float32)
    out_f32 = jax.block_until_ready(fwd(x_enc, prep_f32, n_head=n_head, pred_len=pred_len))
    assert out_f32.shape == (B, pred_len, N), out_f32.shape
    err_f32 = float(jnp.max(jnp.abs(out_f32 - ref)))
    assert err_f32 < 2e-2, f"f32 kernel/reference mismatch: max abs err = {err_f32}"

    # Default path: bf16 MXU operands with f32 accumulation (looser tolerance).
    prep_bf16 = prepare_params(params, n_head=n_head, pred_len=pred_len,
                               mm_dtype=jnp.bfloat16)
    out_bf16 = jax.block_until_ready(fwd(x_enc, prep_bf16, n_head=n_head, pred_len=pred_len))
    assert out_bf16.shape == (B, pred_len, N), out_bf16.shape
    assert bool(jnp.all(jnp.isfinite(out_bf16))), "non-finite output"
    err_bf16 = float(jnp.max(jnp.abs(out_bf16 - ref)))
    assert err_bf16 < 3e-1, f"bf16 kernel/reference mismatch: max abs err = {err_bf16}"

    print("KERNEL_OK")
</pallas_src>

<mosaic_0001>
module attributes {stable_mosaic.version = 11 : i64} {
  func.func @_fused_forward_kernel(%arg0: i32, %arg1: i32, %arg2: memref<8x8xf32, #tpu.memory_space<vmem>>, %arg3: memref<8x32xf32, #tpu.memory_space<vmem>>, %arg4: memref<1x32xf32, #tpu.memory_space<vmem>>, %arg5: memref<1x2x32x16xf32, #tpu.memory_space<vmem>>, %arg6: memref<1x2x1x16xf32, #tpu.memory_space<vmem>>, %arg7: memref<1x2x32x16xf32, #tpu.memory_space<vmem>>, %arg8: memref<1x2x1x16xf32, #tpu.memory_space<vmem>>, %arg9: memref<1x2x32x16xf32, #tpu.memory_space<vmem>>, %arg10: memref<1x2x1x16xf32, #tpu.memory_space<vmem>>, %arg11: memref<1x2x16x32xf32, #tpu.memory_space<vmem>>, %arg12: memref<1x1x32xf32, #tpu.memory_space<vmem>>, %arg13: memref<1x1x32xf32, #tpu.memory_space<vmem>>, %arg14: memref<1x1x32xf32, #tpu.memory_space<vmem>>, %arg15: memref<1x32x64xf32, #tpu.memory_space<vmem>>, %arg16: memref<1x1x64xf32, #tpu.memory_space<vmem>>, %arg17: memref<1x64x32xf32, #tpu.memory_space<vmem>>, %arg18: memref<1x1x32xf32, #tpu.memory_space<vmem>>, %arg19: memref<1x1x32xf32, #tpu.memory_space<vmem>>, %arg20: memref<1x1x32xf32, #tpu.memory_space<vmem>>, %arg21: memref<32x128xf32, #tpu.memory_space<vmem>>, %arg22: memref<1x128xf32, #tpu.memory_space<vmem>>, %arg23: memref<8x128xf32, #tpu.memory_space<vmem>>, %arg24: memref<8x32xf32, #tpu.memory_space<vmem>>, %arg25: memref<8x1xf32, #tpu.memory_space<vmem>>, %arg26: memref<8x1xf32, #tpu.memory_space<vmem>>) attributes {dimension_semantics = [#tpu.dimension_semantics<parallel>, #tpu.dimension_semantics<arbitrary>], iteration_bounds = array<i64: 2, 2>, scalar_prefetch = 0 : i64, scratch_operands = 3 : i64, tpu.core_type = #tpu.core_type<tc>, window_params = [{transform_indices = @transform_0, window_bounds = array<i64: 8, 8>}, {pipeline_mode = #tpu.pipeline_mode<synchronous>, transform_indices = @transform_1, window_bounds = array<i64: 8, 32>}, {pipeline_mode = #tpu.pipeline_mode<synchronous>, transform_indices = @transform_2, window_bounds = array<i64: 1, 32>}, {transform_indices = @transform_3, window_bounds = array<i64: 1, 2, 32, 16>}, {transform_indices = @transform_4, window_bounds = array<i64: 1, 2, 1, 16>}, {transform_indices = @transform_5, window_bounds = array<i64: 1, 2, 32, 16>}, {transform_indices = @transform_6, window_bounds = array<i64: 1, 2, 1, 16>}, {transform_indices = @transform_7, window_bounds = array<i64: 1, 2, 32, 16>}, {transform_indices = @transform_8, window_bounds = array<i64: 1, 2, 1, 16>}, {transform_indices = @transform_9, window_bounds = array<i64: 1, 2, 16, 32>}, {transform_indices = @transform_10, window_bounds = array<i64: 1, 1, 32>}, {transform_indices = @transform_11, window_bounds = array<i64: 1, 1, 32>}, {transform_indices = @transform_12, window_bounds = array<i64: 1, 1, 32>}, {transform_indices = @transform_13, window_bounds = array<i64: 1, 32, 64>}, {transform_indices = @transform_14, window_bounds = array<i64: 1, 1, 64>}, {transform_indices = @transform_15, window_bounds = array<i64: 1, 64, 32>}, {transform_indices = @transform_16, window_bounds = array<i64: 1, 1, 32>}, {transform_indices = @transform_17, window_bounds = array<i64: 1, 1, 32>}, {transform_indices = @transform_18, window_bounds = array<i64: 1, 1, 32>}, {pipeline_mode = #tpu.pipeline_mode<synchronous>, transform_indices = @transform_19, window_bounds = array<i64: 32, 128>}, {pipeline_mode = #tpu.pipeline_mode<synchronous>, transform_indices = @transform_20, window_bounds = array<i64: 1, 128>}, {transform_indices = @transform_21, window_bounds = array<i64: 8, 128>}]} {
    %c0_i32 = arith.constant 0 : i32
    %0 = arith.cmpi eq, %arg1, %c0_i32 : i32
    %1 = arith.extui %0 : i1 to i32
    %c0_i32_0 = arith.constant 0 : i32
    %2 = arith.cmpi ne, %1, %c0_i32_0 : i32
    scf.if %2 {
      %c0_84 = arith.constant 0 : index
      %c0_85 = arith.constant 0 : index
      %128 = vector.load %arg2[%c0_84, %c0_85] : memref<8x8xf32, #tpu.memory_space<vmem>>, vector<8x8xf32>
      %cst_86 = arith.constant dense<0.000000e+00> : vector<8xf32>
      %129 = vector.multi_reduction <add>, %128, %cst_86 [1] : vector<8x8xf32> to vector<8xf32>
      %130 = vector.shape_cast %129 : vector<8xf32> to vector<8x1xf32>
      %cst_87 = arith.constant 8.000000e+00 : f32
      %131 = vector.broadcast %cst_87 : f32 to vector<8x1xf32>
      %132 = arith.divf %130, %131 : vector<8x1xf32>
      %133 = vector.broadcast %132 : vector<8x1xf32> to vector<8x8xf32>
      %134 = arith.subf %128, %133 : vector<8x8xf32>
      %135 = arith.mulf %134, %134 : vector<8x8xf32>
      %cst_88 = arith.constant dense<0.000000e+00> : vector<8xf32>
      %136 = vector.multi_reduction <add>, %135, %cst_88 [1] : vector<8x8xf32> to vector<8xf32>
      %137 = vector.shape_cast %136 : vector<8xf32> to vector<8x1xf32>
      %cst_89 = arith.constant 8.000000e+00 : f32
      %138 = vector.broadcast %cst_89 : f32 to vector<8x1xf32>
      %139 = arith.divf %137, %138 : vector<8x1xf32>
      %cst_90 = arith.constant 9.99999974E-6 : f32
      %140 = vector.broadcast %cst_90 : f32 to vector<8x1xf32>
      %141 = arith.addf %139, %140 : vector<8x1xf32>
      %142 = math.rsqrt %141 : vector<8x1xf32>
      %c0_91 = arith.constant 0 : index
      %c0_92 = arith.constant 0 : index
      %143 = vector.load %arg25[%c0_91, %c0_92] : memref<8x1xf32, #tpu.memory_space<vmem>>, vector<8x1xf32>
      tpu.vector_store %arg25[%c0_91, %c0_92], %132 {strides = array<i32>} : memref<8x1xf32, #tpu.memory_space<vmem>>, vector<8x1xf32>,
      %cst_93 = arith.constant 9.99999974E-6 : f32
      %144 = vector.broadcast %cst_93 : f32 to vector<8x1xf32>
      %145 = arith.addf %139, %144 : vector<8x1xf32>
      %146 = arith.mulf %145, %142 : vector<8x1xf32>
      %c0_94 = arith.constant 0 : index
      %c0_95 = arith.constant 0 : index
      %147 = vector.load %arg26[%c0_94, %c0_95] : memref<8x1xf32, #tpu.memory_space<vmem>>, vector<8x1xf32>
      tpu.vector_store %arg26[%c0_94, %c0_95], %146 {strides = array<i32>} : memref<8x1xf32, #tpu.memory_space<vmem>>, vector<8x1xf32>,
      %148 = vector.broadcast %142 : vector<8x1xf32> to vector<8x8xf32>
      %149 = arith.mulf %134, %148 : vector<8x8xf32>
      %c0_96 = arith.constant 0 : index
      %c0_97 = arith.constant 0 : index
      %150 = vector.load %arg3[%c0_96, %c0_97] : memref<8x32xf32, #tpu.memory_space<vmem>>, vector<8x32xf32>
      %cst_98 = arith.constant dense<0.000000e+00> : vector<8x32xf32>
      %151 = tpu.matmul %149, %150, %cst_98 {dimension_numbers = #tpu.dot_dimension_numbers<[1], [0], [0], [1], [0, 0, 1, 1], [], []>} : vector<8x8xf32>, vector<8x32xf32>, vector<8x32xf32> -> vector<8x32xf32>
      %c0_99 = arith.constant 0 : index
      %c0_100 = arith.constant 0 : index
      %152 = vector.load %arg4[%c0_99, %c0_100] : memref<1x32xf32, #tpu.memory_space<vmem>>, vector<1x32xf32>
      %153 = vector.broadcast %152 : vector<1x32xf32> to vector<8x32xf32>
      %154 = arith.addf %151, %153 : vector<8x32xf32>
      %c0_101 = arith.constant 0 : index
      %c0_102 = arith.constant 0 : index
      %155 = vector.load %arg24[%c0_101, %c0_102] : memref<8x32xf32, #tpu.memory_space<vmem>>, vector<8x32xf32>
      tpu.vector_store %arg24[%c0_101, %c0_102], %154 {strides = array<i32>} : memref<8x32xf32, #tpu.memory_space<vmem>>, vector<8x32xf32>,
    } else {
    }
    %c0 = arith.constant 0 : index
    %c0_1 = arith.constant 0 : index
    %3 = vector.load %arg24[%c0, %c0_1] : memref<8x32xf32, #tpu.memory_space<vmem>>, vector<8x32xf32>
    %4 = vector.shape_cast %3 : vector<8x32xf32> to vector<1x8x32xf32>
    %5 = vector.broadcast %4 : vector<1x8x32xf32> to vector<2x8x32xf32>
    %c0_2 = arith.constant 0 : index
    %c0_3 = arith.constant 0 : index
    %c0_4 = arith.constant 0 : index
    %c0_5 = arith.constant 0 : index
    %6 = vector.load %arg5[%c0_2, %c0_3, %c0_4, %c0_5] : memref<1x2x32x16xf32, #tpu.memory_space<vmem>>, vector<1x2x32x16xf32>
    %7 = vector.shape_cast %6 : vector<1x2x32x16xf32> to vector<2x32x16xf32>
    "tpu.trace_start"() <{level = 10 : i32, message = "hrd,hdk->hrk"}> : () -> ()
    %cst = arith.constant dense<0.000000e+00> : vector<2x8x16xf32>
    %8 = tpu.matmul %5, %7, %cst {dimension_numbers = #tpu.dot_dimension_numbers<[2], [1], [1], [2], [0, 0, 0, 1, 1, 2], [0], [0]>} : vector<2x8x32xf32>, vector<2x32x16xf32>, vector<2x8x16xf32> -> vector<2x8x16xf32>
    "tpu.trace_stop"() : () -> ()
    %c0_6 = arith.constant 0 : index
    %c0_7 = arith.constant 0 : index
    %c0_8 = arith.constant 0 : index
    %c0_9 = arith.constant 0 : index
    %9 = vector.load %arg6[%c0_6, %c0_7, %c0_8, %c0_9] : memref<1x2x1x16xf32, #tpu.memory_space<vmem>>, vector<1x2x1x16xf32>
    %10 = vector.shape_cast %9 : vector<1x2x1x16xf32> to vector<2x1x16xf32>
    %11 = vector.broadcast %10 : vector<2x1x16xf32> to vector<2x8x16xf32>
    %12 = arith.addf %8, %11 : vector<2x8x16xf32>
    %c0_10 = arith.constant 0 : index
    %c0_11 = arith.constant 0 : index
    %c0_12 = arith.constant 0 : index
    %c0_13 = arith.constant 0 : index
    %13 = vector.load %arg7[%c0_10, %c0_11, %c0_12, %c0_13] : memref<1x2x32x16xf32, #tpu.memory_space<vmem>>, vector<1x2x32x16xf32>
    %14 = vector.shape_cast %13 : vector<1x2x32x16xf32> to vector<2x32x16xf32>
    "tpu.trace_start"() <{level = 10 : i32, message = "hrd,hdk->hrk"}> : () -> ()
    %cst_14 = arith.constant dense<0.000000e+00> : vector<2x8x16xf32>
    %15 = tpu.matmul %5, %14, %cst_14 {dimension_numbers = #tpu.dot_dimension_numbers<[2], [1], [1], [2], [0, 0, 0, 1, 1, 2], [0], [0]>} : vector<2x8x32xf32>, vector<2x32x16xf32>, vector<2x8x16xf32> -> vector<2x8x16xf32>
    "tpu.trace_stop"() : () -> ()
    %c0_15 = arith.constant 0 : index
    %c0_16 = arith.constant 0 : index
    %c0_17 = arith.constant 0 : index
    %c0_18 = arith.constant 0 : index
    %16 = vector.load %arg8[%c0_15, %c0_16, %c0_17, %c0_18] : memref<1x2x1x16xf32, #tpu.memory_space<vmem>>, vector<1x2x1x16xf32>
    %17 = vector.shape_cast %16 : vector<1x2x1x16xf32> to vector<2x1x16xf32>
    %18 = vector.broadcast %17 : vector<2x1x16xf32> to vector<2x8x16xf32>
    %19 = arith.addf %15, %18 : vector<2x8x16xf32>
    %c0_19 = arith.constant 0 : index
    %c0_20 = arith.constant 0 : index
    %c0_21 = arith.constant 0 : index
    %c0_22 = arith.constant 0 : index
    %20 = vector.load %arg9[%c0_19, %c0_20, %c0_21, %c0_22] : memref<1x2x32x16xf32, #tpu.memory_space<vmem>>, vector<1x2x32x16xf32>
    %21 = vector.shape_cast %20 : vector<1x2x32x16xf32> to vector<2x32x16xf32>
    "tpu.trace_start"() <{level = 10 : i32, message = "hrd,hdk->hrk"}> : () -> ()
    %cst_23 = arith.constant dense<0.000000e+00> : vector<2x8x16xf32>
    %22 = tpu.matmul %5, %21, %cst_23 {dimension_numbers = #tpu.dot_dimension_numbers<[2], [1], [1], [2], [0, 0, 0, 1, 1, 2], [0], [0]>} : vector<2x8x32xf32>, vector<2x32x16xf32>, vector<2x8x16xf32> -> vector<2x8x16xf32>
    "tpu.trace_stop"() : () -> ()
    %c0_24 = arith.constant 0 : index
    %c0_25 = arith.constant 0 : index
    %c0_26 = arith.constant 0 : index
    %c0_27 = arith.constant 0 : index
    %23 = vector.load %arg10[%c0_24, %c0_25, %c0_26, %c0_27] : memref<1x2x1x16xf32, #tpu.memory_space<vmem>>, vector<1x2x1x16xf32>
    %24 = vector.shape_cast %23 : vector<1x2x1x16xf32> to vector<2x1x16xf32>
    %25 = vector.broadcast %24 : vector<2x1x16xf32> to vector<2x8x16xf32>
    %26 = arith.addf %22, %25 : vector<2x8x16xf32>
    %cst_28 = arith.constant 2.500000e-01 : f32
    %27 = vector.broadcast %cst_28 : f32 to vector<2x8x16xf32>
    %28 = arith.mulf %12, %27 : vector<2x8x16xf32>
    "tpu.trace_start"() <{level = 10 : i32, message = "hrk,hsk->hrs"}> : () -> ()
    %cst_29 = arith.constant dense<0.000000e+00> : vector<2x8x8xf32>
    %29 = tpu.matmul %28, %19, %cst_29 {dimension_numbers = #tpu.dot_dimension_numbers<[2], [2], [1], [1], [0, 0, 0, 1, 1, 1], [0], [0]>} : vector<2x8x16xf32>, vector<2x8x16xf32>, vector<2x8x8xf32> -> vector<2x8x8xf32>
    "tpu.trace_stop"() : () -> ()
    %30 = tpu.iota {dimensions = array<i32: 1>} : vector<8x8xi32>
    %c4_i32 = arith.constant 4 : i32
    %31 = vector.broadcast %c4_i32 : i32 to vector<8x8xi32>
    %32 = arith.cmpi slt, %30, %31 : vector<8x8xi32>
    %cst_30 = arith.constant 0.000000e+00 : f32
    %cst_31 = arith.constant -1.000000e+30 : f32
    %33 = vector.broadcast %cst_30 : f32 to vector<8x8xf32>
    %34 = vector.broadcast %cst_31 : f32 to vector<8x8xf32>
    %35 = arith.select %32, %33, %34 : vector<8x8xi1>, vector<8x8xf32>
    %36 = vector.shape_cast %35 : vector<8x8xf32> to vector<1x8x8xf32>
    %37 = vector.broadcast %36 : vector<1x8x8xf32> to vector<2x8x8xf32>
    %38 = arith.addf %29, %37 : vector<2x8x8xf32>
    %cst_32 = arith.constant dense<0xFF800000> : vector<2x8xf32>
    %39 = vector.multi_reduction <maximumf>, %38, %cst_32 [2] : vector<2x8x8xf32> to vector<2x8xf32>
    %40 = vector.shape_cast %39 : vector<2x8xf32> to vector<2x8x1xf32>
    %41 = vector.broadcast %40 : vector<2x8x1xf32> to vector<2x8x8xf32>
    %42 = arith.subf %38, %41 : vector<2x8x8xf32>
    %43 = math.exp %42 : vector<2x8x8xf32>
    %cst_33 = arith.constant dense<0.000000e+00> : vector<2x8xf32>
    %44 = vector.multi_reduction <add>, %43, %cst_33 [2] : vector<2x8x8xf32> to vector<2x8xf32>
    %45 = vector.shape_cast %44 : vector<2x8xf32> to vector<2x8x1xf32>
    %46 = tpu.reciprocal %45 {approx = true} : vector<2x8x1xf32> -> vector<2x8x1xf32>
    %47 = vector.broadcast %46 : vector<2x8x1xf32> to vector<2x8x8xf32>
    %48 = arith.mulf %43, %47 : vector<2x8x8xf32>
    "tpu.trace_start"() <{level = 10 : i32, message = "hrs,hsk->hrk"}> : () -> ()
    %cst_34 = arith.constant dense<0.000000e+00> : vector<2x8x16xf32>
    %49 = tpu.matmul %48, %26, %cst_34 {dimension_numbers = #tpu.dot_dimension_numbers<[2], [1], [1], [2], [0, 0, 0, 1, 1, 2], [0], [0]>} : vector<2x8x8xf32>, vector<2x8x16xf32>, vector<2x8x16xf32> -> vector<2x8x16xf32>
    "tpu.trace_stop"() : () -> ()
    %c0_35 = arith.constant 0 : index
    %c0_36 = arith.constant 0 : index
    %c0_37 = arith.constant 0 : index
    %c0_38 = arith.constant 0 : index
    %50 = vector.load %arg11[%c0_35, %c0_36, %c0_37, %c0_38] : memref<1x2x16x32xf32, #tpu.memory_space<vmem>>, vector<1x2x16x32xf32>
    %51 = vector.shape_cast %50 : vector<1x2x16x32xf32> to vector<2x16x32xf32>
    "tpu.trace_start"() <{level = 10 : i32, message = "hrk,hkd->hrd"}> : () -> ()
    %cst_39 = arith.constant dense<0.000000e+00> : vector<2x8x32xf32>
    %52 = tpu.matmul %49, %51, %cst_39 {dimension_numbers = #tpu.dot_dimension_numbers<[2], [1], [1], [2], [0, 0, 0, 1, 1, 2], [0], [0]>} : vector<2x8x16xf32>, vector<2x16x32xf32>, vector<2x8x32xf32> -> vector<2x8x32xf32>
    "tpu.trace_stop"() : () -> ()
    %cst_40 = arith.constant dense<0.000000e+00> : vector<8x32xf32>
    %53 = vector.multi_reduction <add>, %52, %cst_40 [0] : vector<2x8x32xf32> to vector<8x32xf32>
    %c0_41 = arith.constant 0 : index
    %c0_42 = arith.constant 0 : index
    %c0_43 = arith.constant 0 : index
    %54 = vector.load %arg12[%c0_41, %c0_42, %c0_43] : memref<1x1x32xf32, #tpu.memory_space<vmem>>, vector<1x1x32xf32>
    %55 = vector.shape_cast %54 : vector<1x1x32xf32> to vector<1x32xf32>
    %56 = vector.broadcast %55 : vector<1x32xf32> to vector<8x32xf32>
    %57 = arith.addf %53, %56 : vector<8x32xf32>
    %58 = arith.addf %3, %57 : vector<8x32xf32>
    %cst_44 = arith.constant dense<0.000000e+00> : vector<8xf32>
    %59 = vector.multi_reduction <add>, %58, %cst_44 [1] : vector<8x32xf32> to vector<8xf32>
    %60 = vector.shape_cast %59 : vector<8xf32> to vector<8x1xf32>
    %cst_45 = arith.constant 3.200000e+01 : f32
    %61 = vector.broadcast %cst_45 : f32 to vector<8x1xf32>
    %62 = arith.divf %60, %61 : vector<8x1xf32>
    %63 = vector.broadcast %62 : vector<8x1xf32> to vector<8x32xf32>
    %64 = arith.subf %58, %63 : vector<8x32xf32>
    %65 = arith.mulf %64, %64 : vector<8x32xf32>
    %cst_46 = arith.constant dense<0.000000e+00> : vector<8xf32>
    %66 = vector.multi_reduction <add>, %65, %cst_46 [1] : vector<8x32xf32> to vector<8xf32>
    %67 = vector.shape_cast %66 : vector<8xf32> to vector<8x1xf32>
    %cst_47 = arith.constant 3.200000e+01 : f32
    %68 = vector.broadcast %cst_47 : f32 to vector<8x1xf32>
    %69 = arith.divf %67, %68 : vector<8x1xf32>
    %cst_48 = arith.constant 9.99999974E-6 : f32
    %70 = vector.broadcast %cst_48 : f32 to vector<8x1xf32>
    %71 = arith.addf %69, %70 : vector<8x1xf32>
    %72 = math.rsqrt %71 : vector<8x1xf32>
    %73 = vector.broadcast %72 : vector<8x1xf32> to vector<8x32xf32>
    %74 = arith.mulf %64, %73 : vector<8x32xf32>
    %c0_49 = arith.constant 0 : index
    %c0_50 = arith.constant 0 : index
    %c0_51 = arith.constant 0 : index
    %75 = vector.load %arg13[%c0_49, %c0_50, %c0_51] : memref<1x1x32xf32, #tpu.memory_space<vmem>>, vector<1x1x32xf32>
    %76 = vector.shape_cast %75 : vector<1x1x32xf32> to vector<1x32xf32>
    %77 = vector.broadcast %76 : vector<1x32xf32> to vector<8x32xf32>
    %78 = arith.mulf %74, %77 : vector<8x32xf32>
    %c0_52 = arith.constant 0 : index
    %c0_53 = arith.constant 0 : index
    %c0_54 = arith.constant 0 : index
    %79 = vector.load %arg14[%c0_52, %c0_53, %c0_54] : memref<1x1x32xf32, #tpu.memory_space<vmem>>, vector<1x1x32xf32>
    %80 = vector.shape_cast %79 : vector<1x1x32xf32> to vector<1x32xf32>
    %81 = vector.broadcast %80 : vector<1x32xf32> to vector<8x32xf32>
    %82 = arith.addf %78, %81 : vector<8x32xf32>
    %c0_55 = arith.constant 0 : index
    %c0_56 = arith.constant 0 : index
    %c0_57 = arith.constant 0 : index
    %83 = vector.load %arg15[%c0_55, %c0_56, %c0_57] : memref<1x32x64xf32, #tpu.memory_space<vmem>>, vector<1x32x64xf32>
    %84 = vector.shape_cast %83 : vector<1x32x64xf32> to vector<32x64xf32>
    %cst_58 = arith.constant dense<0.000000e+00> : vector<8x64xf32>
    %85 = tpu.matmul %82, %84, %cst_58 {dimension_numbers = #tpu.dot_dimension_numbers<[1], [0], [0], [1], [0, 0, 1, 1], [], []>} : vector<8x32xf32>, vector<32x64xf32>, vector<8x64xf32> -> vector<8x64xf32>
    %c0_59 = arith.constant 0 : index
    %c0_60 = arith.constant 0 : index
    %c0_61 = arith.constant 0 : index
    %86 = vector.load %arg16[%c0_59, %c0_60, %c0_61] : memref<1x1x64xf32, #tpu.memory_space<vmem>>, vector<1x1x64xf32>
    %87 = vector.shape_cast %86 : vector<1x1x64xf32> to vector<1x64xf32>
    %88 = vector.broadcast %87 : vector<1x64xf32> to vector<8x64xf32>
    %89 = arith.addf %85, %88 : vector<8x64xf32>
    %cst_62 = arith.constant 0.000000e+00 : f32
    %90 = vector.broadcast %cst_62 : f32 to vector<8x64xf32>
    %91 = arith.maximumf %89, %90 : vector<8x64xf32>
    %c0_63 = arith.constant 0 : index
    %c0_64 = arith.constant 0 : index
    %c0_65 = arith.constant 0 : index
    %92 = vector.load %arg17[%c0_63, %c0_64, %c0_65] : memref<1x64x32xf32, #tpu.memory_space<vmem>>, vector<1x64x32xf32>
    %93 = vector.shape_cast %92 : vector<1x64x32xf32> to vector<64x32xf32>
    %cst_66 = arith.constant dense<0.000000e+00> : vector<8x32xf32>
    %94 = tpu.matmul %91, %93, %cst_66 {dimension_numbers = #tpu.dot_dimension_numbers<[1], [0], [0], [1], [0, 0, 1, 1], [], []>} : vector<8x64xf32>, vector<64x32xf32>, vector<8x32xf32> -> vector<8x32xf32>
    %c0_67 = arith.constant 0 : index
    %c0_68 = arith.constant 0 : index
    %c0_69 = arith.constant 0 : index
    %95 = vector.load %arg18[%c0_67, %c0_68, %c0_69] : memref<1x1x32xf32, #tpu.memory_space<vmem>>, vector<1x1x32xf32>
    %96 = vector.shape_cast %95 : vector<1x1x32xf32> to vector<1x32xf32>
    %97 = vector.broadcast %96 : vector<1x32xf32> to vector<8x32xf32>
    %98 = arith.addf %94, %97 : vector<8x32xf32>
    %99 = arith.addf %82, %98 : vector<8x32xf32>
    %cst_70 = arith.constant dense<0.000000e+00> : vector<8xf32>
    %100 = vector.multi_reduction <add>, %99, %cst_70 [1] : vector<8x32xf32> to vector<8xf32>
    %101 = vector.shape_cast %100 : vector<8xf32> to vector<8x1xf32>
    %cst_71 = arith.constant 3.200000e+01 : f32
    %102 = vector.broadcast %cst_71 : f32 to vector<8x1xf32>
    %103 = arith.divf %101, %102 : vector<8x1xf32>
    %104 = vector.broadcast %103 : vector<8x1xf32> to vector<8x32xf32>
    %105 = arith.subf %99, %104 : vector<8x32xf32>
    %106 = arith.mulf %105, %105 : vector<8x32xf32>
    %cst_72 = arith.constant dense<0.000000e+00> : vector<8xf32>
    %107 = vector.multi_reduction <add>, %106, %cst_72 [1] : vector<8x32xf32> to vector<8xf32>
    %108 = vector.shape_cast %107 : vector<8xf32> to vector<8x1xf32>
    %cst_73 = arith.constant 3.200000e+01 : f32
    %109 = vector.broadcast %cst_73 : f32 to vector<8x1xf32>
    %110 = arith.divf %108, %109 : vector<8x1xf32>
    %cst_74 = arith.constant 9.99999974E-6 : f32
    %111 = vector.broadcast %cst_74 : f32 to vector<8x1xf32>
    %112 = arith.addf %110, %111 : vector<8x1xf32>
    %113 = math.rsqrt %112 : vector<8x1xf32>
    %114 = vector.broadcast %113 : vector<8x1xf32> to vector<8x32xf32>
    %115 = arith.mulf %105, %114 : vector<8x32xf32>
    %c0_75 = arith.constant 0 : index
    %c0_76 = arith.constant 0 : index
    %c0_77 = arith.constant 0 : index
    %116 = vector.load %arg19[%c0_75, %c0_76, %c0_77] : memref<1x1x32xf32, #tpu.memory_space<vmem>>, vector<1x1x32xf32>
    %117 = vector.shape_cast %116 : vector<1x1x32xf32> to vector<1x32xf32>
    %118 = vector.broadcast %117 : vector<1x32xf32> to vector<8x32xf32>
    %119 = arith.mulf %115, %118 : vector<8x32xf32>
    %c0_78 = arith.constant 0 : index
    %c0_79 = arith.constant 0 : index
    %c0_80 = arith.constant 0 : index
    %120 = vector.load %arg20[%c0_78, %c0_79, %c0_80] : memref<1x1x32xf32, #tpu.memory_space<vmem>>, vector<1x1x32xf32>
    %121 = vector.shape_cast %120 : vector<1x1x32xf32> to vector<1x32xf32>
    %122 = vector.broadcast %121 : vector<1x32xf32> to vector<8x32xf32>
    %123 = arith.addf %119, %122 : vector<8x32xf32>
    %c0_81 = arith.constant 0 : index
    %c0_82 = arith.constant 0 : index
    %124 = vector.load %arg24[%c0_81, %c0_82] : memref<8x32xf32, #tpu.memory_space<vmem>>, vector<8x32xf32>
    tpu.vector_store %arg24[%c0_81, %c0_82], %123 {strides = array<i32>} : memref<8x32xf32, #tpu.memory_space<vmem>>, vector<8x32xf32>,
    %c1_i32 = arith.constant 1 : i32
    %125 = arith.cmpi eq, %arg1, %c1_i32 : i32
    %126 = arith.extui %125 : i1 to i32
    %c0_i32_83 = arith.constant 0 : i32
    %127 = arith.cmpi ne, %126, %c0_i32_83 : i32
    scf.if %127 {
      %c0_84 = arith.constant 0 : index
      %c0_85 = arith.constant 0 : index
      %128 = vector.load %arg21[%c0_84, %c0_85] : memref<32x128xf32, #tpu.memory_space<vmem>>, vector<32x128xf32>
      %cst_86 = arith.constant dense<0.000000e+00> : vector<8x128xf32>
      %129 = tpu.matmul %123, %128, %cst_86 {dimension_numbers = #tpu.dot_dimension_numbers<[1], [0], [0], [1], [0, 0, 1, 1], [], []>} : vector<8x32xf32>, vector<32x128xf32>, vector<8x128xf32> -> vector<8x128xf32>
      %c0_87 = arith.constant 0 : index
      %c0_88 = arith.constant 0 : index
      %130 = vector.load %arg22[%c0_87, %c0_88] : memref<1x128xf32, #tpu.memory_space<vmem>>, vector<1x128xf32>
      %131 = vector.broadcast %130 : vector<1x128xf32> to vector<8x128xf32>
      %132 = arith.addf %129, %131 : vector<8x128xf32>
      %c0_89 = arith.constant 0 : index
      %c0_90 = arith.constant 0 : index
      %133 = vector.load %arg26[%c0_89, %c0_90] : memref<8x1xf32, #tpu.memory_space<vmem>>, vector<8x1xf32>
      %134 = vector.broadcast %133 : vector<8x1xf32> to vector<8x128xf32>
      %135 = arith.mulf %132, %134 : vector<8x128xf32>
      %c0_91 = arith.constant 0 : index
      %c0_92 = arith.constant 0 : index
      %136 = vector.load %arg25[%c0_91, %c0_92] : memref<8x1xf32, #tpu.memory_space<vmem>>, vector<8x1xf32>
      %137 = vector.broadcast %136 : vector<8x1xf32> to vector<8x128xf32>
      %138 = arith.addf %135, %137 : vector<8x128xf32>
      %c0_93 = arith.constant 0 : index
      %c0_94 = arith.constant 0 : index
      %139 = vector.load %arg23[%c0_93, %c0_94] : memref<8x128xf32, #tpu.memory_space<vmem>>, vector<8x128xf32>
      tpu.vector_store %arg23[%c0_93, %c0_94], %138 {strides = array<i32>} : memref<8x128xf32, #tpu.memory_space<vmem>>, vector<8x128xf32>,
    } else {
    }
    return
  }
  func.func @transform_0(%arg0: i32, %arg1: i32) -> (i32, i32) {
    %c0_i32 = arith.constant 0 : i32
    %c0_i32_0 = arith.constant 0 : i32
    return %arg0, %c0_i32 : i32, i32
  }
  func.func @transform_1(%arg0: i32, %arg1: i32) -> (i32, i32) {
    %c0_i32 = arith.constant 0 : i32
    %c0_i32_0 = arith.constant 0 : i32
    %c0_i32_1 = arith.constant 0 : i32
    return %c0_i32, %c0_i32_0 : i32, i32
  }
  func.func @transform_2(%arg0: i32, %arg1: i32) -> (i32, i32) {
    %c0_i32 = arith.constant 0 : i32
    %c0_i32_0 = arith.constant 0 : i32
    %c0_i32_1 = arith.constant 0 : i32
    return %c0_i32, %c0_i32_0 : i32, i32
  }
  func.func @transform_3(%arg0: i32, %arg1: i32) -> (i32, i32, i32, i32) {
    %c0_i32 = arith.constant 0 : i32
    %c0_i32_0 = arith.constant 0 : i32
    %c0_i32_1 = arith.constant 0 : i32
    %c0_i32_2 = arith.constant 0 : i32
    return %arg1, %c0_i32, %c0_i32_0, %c0_i32_1 : i32, i32, i32, i32
  }
  func.func @transform_4(%arg0: i32, %arg1: i32) -> (i32, i32, i32, i32) {
    %c0_i32 = arith.constant 0 : i32
    %c0_i32_0 = arith.constant 0 : i32
    %c0_i32_1 = arith.constant 0 : i32
    %c0_i32_2 = arith.constant 0 : i32
    return %arg1, %c0_i32, %c0_i32_0, %c0_i32_1 : i32, i32, i32, i32
  }
  func.func @transform_5(%arg0: i32, %arg1: i32) -> (i32, i32, i32, i32) {
    %c0_i32 = arith.constant 0 : i32
    %c0_i32_0 = arith.constant 0 : i32
    %c0_i32_1 = arith.constant 0 : i32
    %c0_i32_2 = arith.constant 0 : i32
    return %arg1, %c0_i32, %c0_i32_0, %c0_i32_1 : i32, i32, i32, i32
  }
  func.func @transform_6(%arg0: i32, %arg1: i32) -> (i32, i32, i32, i32) {
    %c0_i32 = arith.constant 0 : i32
    %c0_i32_0 = arith.constant 0 : i32
    %c0_i32_1 = arith.constant 0 : i32
    %c0_i32_2 = arith.constant 0 : i32
    return %arg1, %c0_i32, %c0_i32_0, %c0_i32_1 : i32, i32, i32, i32
  }
  func.func @transform_7(%arg0: i32, %arg1: i32) -> (i32, i32, i32, i32) {
    %c0_i32 = arith.constant 0 : i32
    %c0_i32_0 = arith.constant 0 : i32
    %c0_i32_1 = arith.constant 0 : i32
    %c0_i32_2 = arith.constant 0 : i32
    return %arg1, %c0_i32, %c0_i32_0, %c0_i32_1 : i32, i32, i32, i32
  }
  func.func @transform_8(%arg0: i32, %arg1: i32) -> (i32, i32, i32, i32) {
    %c0_i32 = arith.constant 0 : i32
    %c0_i32_0 = arith.constant 0 : i32
    %c0_i32_1 = arith.constant 0 : i32
    %c0_i32_2 = arith.constant 0 : i32
    return %arg1, %c0_i32, %c0_i32_0, %c0_i32_1 : i32, i32, i32, i32
  }
  func.func @transform_9(%arg0: i32, %arg1: i32) -> (i32, i32, i32, i32) {
    %c0_i32 = arith.constant 0 : i32
    %c0_i32_0 = arith.constant 0 : i32
    %c0_i32_1 = arith.constant 0 : i32
    %c0_i32_2 = arith.constant 0 : i32
    return %arg1, %c0_i32, %c0_i32_0, %c0_i32_1 : i32, i32, i32, i32
  }
  func.func @transform_10(%arg0: i32, %arg1: i32) -> (i32, i32, i32) {
    %c0_i32 = arith.constant 0 : i32
    %c0_i32_0 = arith.constant 0 : i32
    %c0_i32_1 = arith.constant 0 : i32
    return %arg1, %c0_i32, %c0_i32_0 : i32, i32, i32
  }
  func.func @transform_11(%arg0: i32, %arg1: i32) -> (i32, i32, i32) {
    %c0_i32 = arith.constant 0 : i32
    %c0_i32_0 = arith.constant 0 : i32
    %c0_i32_1 = arith.constant 0 : i32
    return %arg1, %c0_i32, %c0_i32_0 : i32, i32, i32
  }
  func.func @transform_12(%arg0: i32, %arg1: i32) -> (i32, i32, i32) {
    %c0_i32 = arith.constant 0 : i32
    %c0_i32_0 = arith.constant 0 : i32
    %c0_i32_1 = arith.constant 0 : i32
    return %arg1, %c0_i32, %c0_i32_0 : i32, i32, i32
  }
  func.func @transform_13(%arg0: i32, %arg1: i32) -> (i32, i32, i32) {
    %c0_i32 = arith.constant 0 : i32
    %c0_i32_0 = arith.constant 0 : i32
    %c0_i32_1 = arith.constant 0 : i32
    return %arg1, %c0_i32, %c0_i32_0 : i32, i32, i32
  }
  func.func @transform_14(%arg0: i32, %arg1: i32) -> (i32, i32, i32) {
    %c0_i32 = arith.constant 0 : i32
    %c0_i32_0 = arith.constant 0 : i32
    %c0_i32_1 = arith.constant 0 : i32
    return %arg1, %c0_i32, %c0_i32_0 : i32, i32, i32
  }
  func.func @transform_15(%arg0: i32, %arg1: i32) -> (i32, i32, i32) {
    %c0_i32 = arith.constant 0 : i32
    %c0_i32_0 = arith.constant 0 : i32
    %c0_i32_1 = arith.constant 0 : i32
    return %arg1, %c0_i32, %c0_i32_0 : i32, i32, i32
  }
  func.func @transform_16(%arg0: i32, %arg1: i32) -> (i32, i32, i32) {
    %c0_i32 = arith.constant 0 : i32
    %c0_i32_0 = arith.constant 0 : i32
    %c0_i32_1 = arith.constant 0 : i32
    return %arg1, %c0_i32, %c0_i32_0 : i32, i32, i32
  }
  func.func @transform_17(%arg0: i32, %arg1: i32) -> (i32, i32, i32) {
    %c0_i32 = arith.constant 0 : i32
    %c0_i32_0 = arith.constant 0 : i32
    %c0_i32_1 = arith.constant 0 : i32
    return %arg1, %c0_i32, %c0_i32_0 : i32, i32, i32
  }
  func.func @transform_18(%arg0: i32, %arg1: i32) -> (i32, i32, i32) {
    %c0_i32 = arith.constant 0 : i32
    %c0_i32_0 = arith.constant 0 : i32
    %c0_i32_1 = arith.constant 0 : i32
    return %arg1, %c0_i32, %c0_i32_0 : i32, i32, i32
  }
  func.func @transform_19(%arg0: i32, %arg1: i32) -> (i32, i32) {
    %c0_i32 = arith.constant 0 : i32
    %c0_i32_0 = arith.constant 0 : i32
    %c0_i32_1 = arith.constant 0 : i32
    return %c0_i32, %c0_i32_0 : i32, i32
  }
  func.func @transform_20(%arg0: i32, %arg1: i32) -> (i32, i32) {
    %c0_i32 = arith.constant 0 : i32
    %c0_i32_0 = arith.constant 0 : i32
    %c0_i32_1 = arith.constant 0 : i32
    return %c0_i32, %c0_i32_0 : i32, i32
  }
  func.func @transform_21(%arg0: i32, %arg1: i32) -> (i32, i32) {
    %c0_i32 = arith.constant 0 : i32
    %c0_i32_0 = arith.constant 0 : i32
    return %arg0, %c0_i32 : i32, i32
  }
}

</mosaic_0001>

<llo_original>
// kernel: itransformer_multi_dlinear_forward.1
$region0: #{itransformer_multi_dlinear_forward.1}
  #allocation0 [shape = 'u32[]', space=smem, size = 0x4, offset = 0x4, fixed_abs, tag = 'smem constant byte address 0x4 - core index']
  #allocation1 [shape = 'u32[144,128]{1,0:T(1,128)}', space=vmem, size = 0x12000, scoped, tag = 'internal scratch']
  #allocation2 [shape = 'f32[8,32]{1,0:T(8,128)}', space=vmem, size = 0x1000, scoped, tag = 'scratch operand']
  #allocation3 [shape = 'f32[8,1]{1,0:T(8,128)}', space=vmem, size = 0x1000, scoped, tag = 'scratch operand']
  #allocation4 [shape = 'f32[8,1]{1,0:T(8,128)}', space=vmem, size = 0x1000, scoped, tag = 'scratch operand']
  %s0 = inlined_call_operand.vmem [shape: f32[16,8], index: 0, kind: input, shape index: {}]
  %s1 = inlined_call_operand.vmem [shape: f32[8,32], index: 1, kind: input, shape index: {}]
  %s2 = inlined_call_operand.vmem [shape: f32[1,32], index: 2, kind: input, shape index: {}]
  %s3 = inlined_call_operand.vmem [shape: f32[2,2,32,16], index: 3, kind: input, shape index: {}]
  %s4 = inlined_call_operand.vmem [shape: f32[2,2,1,16], index: 4, kind: input, shape index: {}]
  %s5 = inlined_call_operand.vmem [shape: f32[2,2,32,16], index: 5, kind: input, shape index: {}]
  %s6 = inlined_call_operand.vmem [shape: f32[2,2,1,16], index: 6, kind: input, shape index: {}]
  %s7 = inlined_call_operand.vmem [shape: f32[2,2,32,16], index: 7, kind: input, shape index: {}]
  %s8 = inlined_call_operand.vmem [shape: f32[2,2,1,16], index: 8, kind: input, shape index: {}]
  %s9 = inlined_call_operand.vmem [shape: f32[2,2,16,32], index: 9, kind: input, shape index: {}]
  %s10 = inlined_call_operand.vmem [shape: f32[2,1,32], index: 10, kind: input, shape index: {}]
  %s11 = inlined_call_operand.vmem [shape: f32[2,1,32], index: 11, kind: input, shape index: {}]
  %s12 = inlined_call_operand.vmem [shape: f32[2,1,32], index: 12, kind: input, shape index: {}]
  %s13 = inlined_call_operand.vmem [shape: f32[2,32,64], index: 13, kind: input, shape index: {}]
  %s14 = inlined_call_operand.vmem [shape: f32[2,1,64], index: 14, kind: input, shape index: {}]
  %s15 = inlined_call_operand.vmem [shape: f32[2,64,32], index: 15, kind: input, shape index: {}]
  %s16 = inlined_call_operand.vmem [shape: f32[2,1,32], index: 16, kind: input, shape index: {}]
  %s17 = inlined_call_operand.vmem [shape: f32[2,1,32], index: 17, kind: input, shape index: {}]
  %s18 = inlined_call_operand.vmem [shape: f32[2,1,32], index: 18, kind: input, shape index: {}]
  %s19 = inlined_call_operand.vmem [shape: f32[32,128], index: 19, kind: input, shape index: {}]
  %s20 = inlined_call_operand.vmem [shape: f32[1,128], index: 20, kind: input, shape index: {}]
  %s21 = inlined_call_operand.vmem [shape: f32[16,128], index: 21, kind: output, shape index: {}]
  %s22 = sld [smem:[#allocation0]]
  $region125: #{itransformer_multi_dlinear_forward.1} parent=0
    _
  %s24 = ssub.s32 1, %s22
  %s25 = scalar_select 0, %s24, %s22
  loop: start=0, step=1, limit=6
  $region2: #{itransformer_multi_dlinear_forward.1} parent=0 // loop_pre_header
    _
  $region3: #{itransformer_multi_dlinear_forward.1} parent=0 // loop_header
    %s27 = sphi 0, %s31
    %p28 = scmp.ge.s32.totalorder %s27, 6
    %s34 = sphi 0, %s46
    %s35 = sphi 0, %s42
    %s36 = sphi 0, %s34
    %s37 = sphi 0, %s35
    %s38 = sphi 0, %s36
    %s39 = sphi 0, %s37
    %s49 = sphi 0, %s51
    %s52 = sphi 0, %s49
    %s53 = sphi 0, %s52
    %s69 = sphi 0, %s53
    %s73 = sphi 0, %s73
    %s75 = sphi 0, %s73
    %s76 = sphi 0, %s75
    %s90 = sphi 0, %s76
    %s94 = sphi 0, %s94
    %s96 = sphi 0, %s94
    %s97 = sphi 0, %s96
    %s111 = sphi 0, %s97
    %s117 = sphi 0, %s119
    %s120 = sphi 0, %s117
    %s121 = sphi 0, %s120
    %s137 = sphi 0, %s121
    %s143 = sphi 0, %s145
    %s146 = sphi 0, %s143
    %s147 = sphi 0, %s146
    %s163 = sphi 0, %s147
    %s169 = sphi 0, %s171
    %s172 = sphi 0, %s169
    %s173 = sphi 0, %s172
    %s189 = sphi 0, %s173
    %s195 = sphi 0, %s197
    %s198 = sphi 0, %s195
    %s199 = sphi 0, %s198
    %s215 = sphi 0, %s199
    %s221 = sphi 0, %s223
    %s224 = sphi 0, %s221
    %s225 = sphi 0, %s224
    %s241 = sphi 0, %s225
    %s247 = sphi 0, %s249
    %s250 = sphi 0, %s247
    %s251 = sphi 0, %s250
    %s267 = sphi 0, %s251
    %s273 = sphi 0, %s275
    %s276 = sphi 0, %s273
    %s277 = sphi 0, %s276
    %s293 = sphi 0, %s277
    %s299 = sphi 0, %s301
    %s302 = sphi 0, %s299
    %s303 = sphi 0, %s302
    %s319 = sphi 0, %s303
    %s325 = sphi 0, %s327
    %s328 = sphi 0, %s325
    %s329 = sphi 0, %s328
    %s345 = sphi 0, %s329
    %s351 = sphi 0, %s353
    %s354 = sphi 0, %s351
    %s355 = sphi 0, %s354
    %s371 = sphi 0, %s355
    %s377 = sphi 0, %s379
    %s380 = sphi 0, %s377
    %s381 = sphi 0, %s380
    %s397 = sphi 0, %s381
    %s403 = sphi 0, %s405
    %s406 = sphi 0, %s403
    %s407 = sphi 0, %s406
    %s423 = sphi 0, %s407
    %s429 = sphi 0, %s431
    %s432 = sphi 0, %s429
    %s433 = sphi 0, %s432
    %s449 = sphi 0, %s433
    %s455 = sphi 0, %s457
    %s458 = sphi 0, %s455
    %s459 = sphi 0, %s458
    %s475 = sphi 0, %s459
    %s481 = sphi 0, %s483
    %s484 = sphi 0, %s481
    %s485 = sphi 0, %s484
    %s501 = sphi 0, %s485
    %s507 = sphi 0, %s509
    %s510 = sphi 0, %s507
    %s511 = sphi 0, %s510
    %s527 = sphi 0, %s511
    %s531 = sphi 0, %s531
    %s533 = sphi 0, %s531
    %s534 = sphi 0, %s533
    %s548 = sphi 0, %s534
    %s552 = sphi 0, %s552
    %s554 = sphi 0, %s552
    %s555 = sphi 0, %s554
    %s569 = sphi 0, %s555
    %s575 = sphi 0, %s577
    %s578 = sphi 0, %s575
    %s579 = sphi 0, %s578
    %s595 = sphi 0, %s579
  $region4: #{itransformer_multi_dlinear_forward.1} parent=0 // loop_header_branch
    %30 = sbr.rel (%p28) target = $region8
  $region5: #{itransformer_multi_dlinear_forward.1} parent=0 // loop_body
    %s32 = ssub.s32 %s27, 1
    %s33 = ssub.s32 %s27, 2
    %s40 = sadd.s32 1, %s35
    %p41 = scmp.ge.s32.totalorder %s40, 2
    %s42 = scalar_select %p41, 0, %s40
    %s43 = sadd.s32 1, %s34
    %s44 = scalar_select %p41, %s43, %s34
    %p45 = scmp.ge.s32.totalorder %s44, 2
    %s46 = scalar_select %p45, 0, %s44
    %s47 = ssub.s32 %s34, %s46
    %p48 = scmp.eq.s32.totalorder %s47, 0
    %s50 = sadd.s32 %s49, 1
    %s51 = scalar_select %p48, %s49, %s50
    %p54 = pneg %p48
    %p55 = scmp.eq.s32.totalorder %s27, 3
    %p56 = por %p54, %p55
    %p57 = scmp.ne.s32.totalorder %s49, %s52
    %p58 = scmp.eq.s32.totalorder %s27, 0
    %p59 = por %p57, %p58
    %p60 = scmp.ne.s32.totalorder %s49, %s52
    %p61 = scmp.eq.s32.totalorder %s32, 3
    %p62 = por %p60, %p61
    %p63 = scmp.ne.s32.totalorder %s52, %s53
    %p64 = scmp.eq.s32.totalorder %s32, 0
    %p65 = por %p63, %p64
    %p66 = scmp.ne.s32.totalorder %s52, %s53
    %p67 = scmp.eq.s32.totalorder %s33, 3
    %p68 = por %p66, %p67
    %p70 = scmp.ne.s32.totalorder %s53, %s69
    %p71 = scmp.eq.s32.totalorder %s33, 0
    %p72 = por %p70, %p71
    %s74 = sadd.s32 %s73, 1
    %p77 = scmp.eq.s32.totalorder %s27, 3
    %p78 = scmp.ne.s32.totalorder %s73, %s75
    %p79 = scmp.eq.s32.totalorder %s27, 0
    %p80 = por %p78, %p79
    %p81 = scmp.ne.s32.totalorder %s73, %s75
    %p82 = scmp.eq.s32.totalorder %s32, 3
    %p83 = por %p81, %p82
    %p84 = scmp.ne.s32.totalorder %s75, %s76
    %p85 = scmp.eq.s32.totalorder %s32, 0
    %p86 = por %p84, %p85
    %p87 = scmp.ne.s32.totalorder %s75, %s76
    %p88 = scmp.eq.s32.totalorder %s33, 3
    %p89 = por %p87, %p88
    %p91 = scmp.ne.s32.totalorder %s76, %s90
    %p92 = scmp.eq.s32.totalorder %s33, 0
    %p93 = por %p91, %p92
    %s95 = sadd.s32 %s94, 1
    %p98 = scmp.eq.s32.totalorder %s27, 3
    %p99 = scmp.ne.s32.totalorder %s94, %s96
    %p100 = scmp.eq.s32.totalorder %s27, 0
    %p101 = por %p99, %p100
    %p102 = scmp.ne.s32.totalorder %s94, %s96
    %p103 = scmp.eq.s32.totalorder %s32, 3
    %p104 = por %p102, %p103
    %p105 = scmp.ne.s32.totalorder %s96, %s97
    %p106 = scmp.eq.s32.totalorder %s32, 0
    %p107 = por %p105, %p106
    %p108 = scmp.ne.s32.totalorder %s96, %s97
    %p109 = scmp.eq.s32.totalorder %s33, 3
    %p110 = por %p108, %p109
    %p112 = scmp.ne.s32.totalorder %s97, %s111
    %p113 = scmp.eq.s32.totalorder %s33, 0
    %p114 = por %p112, %p113
    %s115 = ssub.s32 %s35, %s42
    %p116 = scmp.eq.s32.totalorder %s115, 0
    %s118 = sadd.s32 %s117, 1
    %s119 = scalar_select %p116, %s117, %s118
    %p122 = pneg %p116
    %p123 = scmp.eq.s32.totalorder %s27, 3
    %p124 = por %p122, %p123
    %p125 = scmp.ne.s32.totalorder %s117, %s120
    %p126 = scmp.eq.s32.totalorder %s27, 0
    %p127 = por %p125, %p126
    %p128 = scmp.ne.s32.totalorder %s117, %s120
    %p129 = scmp.eq.s32.totalorder %s32, 3
    %p130 = por %p128, %p129
    %p131 = scmp.ne.s32.totalorder %s120, %s121
    %p132 = scmp.eq.s32.totalorder %s32, 0
    %p133 = por %p131, %p132
    %p134 = scmp.ne.s32.totalorder %s120, %s121
    %p135 = scmp.eq.s32.totalorder %s33, 3
    %p136 = por %p134, %p135
    %p138 = scmp.ne.s32.totalorder %s121, %s137
    %p139 = scmp.eq.s32.totalorder %s33, 0
    %p140 = por %p138, %p139
    %s141 = ssub.s32 %s35, %s42
    %p142 = scmp.eq.s32.totalorder %s141, 0
    %s144 = sadd.s32 %s143, 1
    %s145 = scalar_select %p142, %s143, %s144
    %p148 = pneg %p142
    %p149 = scmp.eq.s32.totalorder %s27, 3
    %p150 = por %p148, %p149
    %p151 = scmp.ne.s32.totalorder %s143, %s146
    %p152 = scmp.eq.s32.totalorder %s27, 0
    %p153 = por %p151, %p152
    %p154 = scmp.ne.s32.totalorder %s143, %s146
    %p155 = scmp.eq.s32.totalorder %s32, 3
    %p156 = por %p154, %p155
    %p157 = scmp.ne.s32.totalorder %s146, %s147
    %p158 = scmp.eq.s32.totalorder %s32, 0
    %p159 = por %p157, %p158
    %p160 = scmp.ne.s32.totalorder %s146, %s147
    %p161 = scmp.eq.s32.totalorder %s33, 3
    %p162 = por %p160, %p161
    %p164 = scmp.ne.s32.totalorder %s147, %s163
    %p165 = scmp.eq.s32.totalorder %s33, 0
    %p166 = por %p164, %p165
    %s167 = ssub.s32 %s35, %s42
    %p168 = scmp.eq.s32.totalorder %s167, 0
    %s170 = sadd.s32 %s169, 1
    %s171 = scalar_select %p168, %s169, %s170
    %p174 = pneg %p168
    %p175 = scmp.eq.s32.totalorder %s27, 3
    %p176 = por %p174, %p175
    %p177 = scmp.ne.s32.totalorder %s169, %s172
    %p178 = scmp.eq.s32.totalorder %s27, 0
    %p179 = por %p177, %p178
    %p180 = scmp.ne.s32.totalorder %s169, %s172
    %p181 = scmp.eq.s32.totalorder %s32, 3
    %p182 = por %p180, %p181
    %p183 = scmp.ne.s32.totalorder %s172, %s173
    %p184 = scmp.eq.s32.totalorder %s32, 0
    %p185 = por %p183, %p184
    %p186 = scmp.ne.s32.totalorder %s172, %s173
    %p187 = scmp.eq.s32.totalorder %s33, 3
    %p188 = por %p186, %p187
    %p190 = scmp.ne.s32.totalorder %s173, %s189
    %p191 = scmp.eq.s32.totalorder %s33, 0
    %p192 = por %p190, %p191
    %s193 = ssub.s32 %s35, %s42
    %p194 = scmp.eq.s32.totalorder %s193, 0
    %s196 = sadd.s32 %s195, 1
    %s197 = scalar_select %p194, %s195, %s196
    %p200 = pneg %p194
    %p201 = scmp.eq.s32.totalorder %s27, 3
    %p202 = por %p200, %p201
    %p203 = scmp.ne.s32.totalorder %s195, %s198
    %p204 = scmp.eq.s32.totalorder %s27, 0
    %p205 = por %p203, %p204
    %p206 = scmp.ne.s32.totalorder %s195, %s198
    %p207 = scmp.eq.s32.totalorder %s32, 3
    %p208 = por %p206, %p207
    %p209 = scmp.ne.s32.totalorder %s198, %s199
    %p210 = scmp.eq.s32.totalorder %s32, 0
    %p211 = por %p209, %p210
    %p212 = scmp.ne.s32.totalorder %s198, %s199
    %p213 = scmp.eq.s32.totalorder %s33, 3
    %p214 = por %p212, %p213
    %p216 = scmp.ne.s32.totalorder %s199, %s215
    %p217 = scmp.eq.s32.totalorder %s33, 0
    %p218 = por %p216, %p217
    %s219 = ssub.s32 %s35, %s42
    %p220 = scmp.eq.s32.totalorder %s219, 0
    %s222 = sadd.s32 %s221, 1
    %s223 = scalar_select %p220, %s221, %s222
    %p226 = pneg %p220
    %p227 = scmp.eq.s32.totalorder %s27, 3
    %p228 = por %p226, %p227
    %p229 = scmp.ne.s32.totalorder %s221, %s224
    %p230 = scmp.eq.s32.totalorder %s27, 0
    %p231 = por %p229, %p230
    %p232 = scmp.ne.s32.totalorder %s221, %s224
    %p233 = scmp.eq.s32.totalorder %s32, 3
    %p234 = por %p232, %p233
    %p235 = scmp.ne.s32.totalorder %s224, %s225
    %p236 = scmp.eq.s32.totalorder %s32, 0
    %p237 = por %p235, %p236
    %p238 = scmp.ne.s32.totalorder %s224, %s225
    %p239 = scmp.eq.s32.totalorder %s33, 3
    %p240 = por %p238, %p239
    %p242 = scmp.ne.s32.totalorder %s225, %s241
    %p243 = scmp.eq.s32.totalorder %s33, 0
    %p244 = por %p242, %p243
    %s245 = ssub.s32 %s35, %s42
    %p246 = scmp.eq.s32.totalorder %s245, 0
    %s248 = sadd.s32 %s247, 1
    %s249 = scalar_select %p246, %s247, %s248
    %p252 = pneg %p246
    %p253 = scmp.eq.s32.totalorder %s27, 3
    %p254 = por %p252, %p253
    %p255 = scmp.ne.s32.totalorder %s247, %s250
    %p256 = scmp.eq.s32.totalorder %s27, 0
    %p257 = por %p255, %p256
    %p258 = scmp.ne.s32.totalorder %s247, %s250
    %p259 = scmp.eq.s32.totalorder %s32, 3
    %p260 = por %p258, %p259
    %p261 = scmp.ne.s32.totalorder %s250, %s251
    %p262 = scmp.eq.s32.totalorder %s32, 0
    %p263 = por %p261, %p262
    %p264 = scmp.ne.s32.totalorder %s250, %s251
    %p265 = scmp.eq.s32.totalorder %s33, 3
    %p266 = por %p264, %p265
    %p268 = scmp.ne.s32.totalorder %s251, %s267
    %p269 = scmp.eq.s32.totalorder %s33, 0
    %p270 = por %p268, %p269
    %s271 = ssub.s32 %s35, %s42
    %p272 = scmp.eq.s32.totalorder %s271, 0
    %s274 = sadd.s32 %s273, 1
    %s275 = scalar_select %p272, %s273, %s274
    %p278 = pneg %p272
    %p279 = scmp.eq.s32.totalorder %s27, 3
    %p280 = por %p278, %p279
    %p281 = scmp.ne.s32.totalorder %s273, %s276
    %p282 = scmp.eq.s32.totalorder %s27, 0
    %p283 = por %p281, %p282
    %p284 = scmp.ne.s32.totalorder %s273, %s276
    %p285 = scmp.eq.s32.totalorder %s32, 3
    %p286 = por %p284, %p285
    %p287 = scmp.ne.s32.totalorder %s276, %s277
    %p288 = scmp.eq.s32.totalorder %s32, 0
    %p289 = por %p287, %p288
    %p290 = scmp.ne.s32.totalorder %s276, %s277
    %p291 = scmp.eq.s32.totalorder %s33, 3
    %p292 = por %p290, %p291
    %p294 = scmp.ne.s32.totalorder %s277, %s293
    %p295 = scmp.eq.s32.totalorder %s33, 0
    %p296 = por %p294, %p295
    %s297 = ssub.s32 %s35, %s42
    %p298 = scmp.eq.s32.totalorder %s297, 0
    %s300 = sadd.s32 %s299, 1
    %s301 = scalar_select %p298, %s299, %s300
    %p304 = pneg %p298
    %p305 = scmp.eq.s32.totalorder %s27, 3
    %p306 = por %p304, %p305
    %p307 = scmp.ne.s32.totalorder %s299, %s302
    %p308 = scmp.eq.s32.totalorder %s27, 0
    %p309 = por %p307, %p308
    %p310 = scmp.ne.s32.totalorder %s299, %s302
    %p311 = scmp.eq.s32.totalorder %s32, 3
    %p312 = por %p310, %p311
    %p313 = scmp.ne.s32.totalorder %s302, %s303
    %p314 = scmp.eq.s32.totalorder %s32, 0
    %p315 = por %p313, %p314
    %p316 = scmp.ne.s32.totalorder %s302, %s303
    %p317 = scmp.eq.s32.totalorder %s33, 3
    %p318 = por %p316, %p317
    %p320 = scmp.ne.s32.totalorder %s303, %s319
    %p321 = scmp.eq.s32.totalorder %s33, 0
    %p322 = por %p320, %p321
    %s323 = ssub.s32 %s35, %s42
    %p324 = scmp.eq.s32.totalorder %s323, 0
    %s326 = sadd.s32 %s325, 1
    %s327 = scalar_select %p324, %s325, %s326
    %p330 = pneg %p324
    %p331 = scmp.eq.s32.totalorder %s27, 3
    %p332 = por %p330, %p331
    %p333 = scmp.ne.s32.totalorder %s325, %s328
    %p334 = scmp.eq.s32.totalorder %s27, 0
    %p335 = por %p333, %p334
    %p336 = scmp.ne.s32.totalorder %s325, %s328
    %p337 = scmp.eq.s32.totalorder %s32, 3
    %p338 = por %p336, %p337
    %p339 = scmp.ne.s32.totalorder %s328, %s329
    %p340 = scmp.eq.s32.totalorder %s32, 0
    %p341 = por %p339, %p340
    %p342 = scmp.ne.s32.totalorder %s328, %s329
    %p343 = scmp.eq.s32.totalorder %s33, 3
    %p344 = por %p342, %p343
    %p346 = scmp.ne.s32.totalorder %s329, %s345
    %p347 = scmp.eq.s32.totalorder %s33, 0
    %p348 = por %p346, %p347
    %s349 = ssub.s32 %s35, %s42
    %p350 = scmp.eq.s32.totalorder %s349, 0
    %s352 = sadd.s32 %s351, 1
    %s353 = scalar_select %p350, %s351, %s352
    %p356 = pneg %p350
    %p357 = scmp.eq.s32.totalorder %s27, 3
    %p358 = por %p356, %p357
    %p359 = scmp.ne.s32.totalorder %s351, %s354
    %p360 = scmp.eq.s32.totalorder %s27, 0
    %p361 = por %p359, %p360
    %p362 = scmp.ne.s32.totalorder %s351, %s354
    %p363 = scmp.eq.s32.totalorder %s32, 3
    %p364 = por %p362, %p363
    %p365 = scmp.ne.s32.totalorder %s354, %s355
    %p366 = scmp.eq.s32.totalorder %s32, 0
    %p367 = por %p365, %p366
    %p368 = scmp.ne.s32.totalorder %s354, %s355
    %p369 = scmp.eq.s32.totalorder %s33, 3
    %p370 = por %p368, %p369
    %p372 = scmp.ne.s32.totalorder %s355, %s371
    %p373 = scmp.eq.s32.totalorder %s33, 0
    %p374 = por %p372, %p373
    %s375 = ssub.s32 %s35, %s42
    %p376 = scmp.eq.s32.totalorder %s375, 0
    %s378 = sadd.s32 %s377, 1
    %s379 = scalar_select %p376, %s377, %s378
    %p382 = pneg %p376
    %p383 = scmp.eq.s32.totalorder %s27, 3
    %p384 = por %p382, %p383
    %p385 = scmp.ne.s32.totalorder %s377, %s380
    %p386 = scmp.eq.s32.totalorder %s27, 0
    %p387 = por %p385, %p386
    %p388 = scmp.ne.s32.totalorder %s377, %s380
    %p389 = scmp.eq.s32.totalorder %s32, 3
    %p390 = por %p388, %p389
    %p391 = scmp.ne.s32.totalorder %s380, %s381
    %p392 = scmp.eq.s32.totalorder %s32, 0
    %p393 = por %p391, %p392
    %p394 = scmp.ne.s32.totalorder %s380, %s381
    %p395 = scmp.eq.s32.totalorder %s33, 3
    %p396 = por %p394, %p395
    %p398 = scmp.ne.s32.totalorder %s381, %s397
    %p399 = scmp.eq.s32.totalorder %s33, 0
    %p400 = por %p398, %p399
    %s401 = ssub.s32 %s35, %s42
    %p402 = scmp.eq.s32.totalorder %s401, 0
    %s404 = sadd.s32 %s403, 1
    %s405 = scalar_select %p402, %s403, %s404
    %p408 = pneg %p402
    %p409 = scmp.eq.s32.totalorder %s27, 3
    %p410 = por %p408, %p409
    %p411 = scmp.ne.s32.totalorder %s403, %s406
    %p412 = scmp.eq.s32.totalorder %s27, 0
    %p413 = por %p411, %p412
    %p414 = scmp.ne.s32.totalorder %s403, %s406
    %p415 = scmp.eq.s32.totalorder %s32, 3
    %p416 = por %p414, %p415
    %p417 = scmp.ne.s32.totalorder %s406, %s407
    %p418 = scmp.eq.s32.totalorder %s32, 0
    %p419 = por %p417, %p418
    %p420 = scmp.ne.s32.totalorder %s406, %s407
    %p421 = scmp.eq.s32.totalorder %s33, 3
    %p422 = por %p420, %p421
    %p424 = scmp.ne.s32.totalorder %s407, %s423
    %p425 = scmp.eq.s32.totalorder %s33, 0
    %p426 = por %p424, %p425
    %s427 = ssub.s32 %s35, %s42
    %p428 = scmp.eq.s32.totalorder %s427, 0
    %s430 = sadd.s32 %s429, 1
    %s431 = scalar_select %p428, %s429, %s430
    %p434 = pneg %p428
    %p435 = scmp.eq.s32.totalorder %s27, 3
    %p436 = por %p434, %p435
    %p437 = scmp.ne.s32.totalorder %s429, %s432
    %p438 = scmp.eq.s32.totalorder %s27, 0
    %p439 = por %p437, %p438
    %p440 = scmp.ne.s32.totalorder %s429, %s432
    %p441 = scmp.eq.s32.totalorder %s32, 3
    %p442 = por %p440, %p441
    %p443 = scmp.ne.s32.totalorder %s432, %s433
    %p444 = scmp.eq.s32.totalorder %s32, 0
    %p445 = por %p443, %p444
    %p446 = scmp.ne.s32.totalorder %s432, %s433
    %p447 = scmp.eq.s32.totalorder %s33, 3
    %p448 = por %p446, %p447
    %p450 = scmp.ne.s32.totalorder %s433, %s449
    %p451 = scmp.eq.s32.totalorder %s33, 0
    %p452 = por %p450, %p451
    %s453 = ssub.s32 %s35, %s42
    %p454 = scmp.eq.s32.totalorder %s453, 0
    %s456 = sadd.s32 %s455, 1
    %s457 = scalar_select %p454, %s455, %s456
    %p460 = pneg %p454
    %p461 = scmp.eq.s32.totalorder %s27, 3
    %p462 = por %p460, %p461
    %p463 = scmp.ne.s32.totalorder %s455, %s458
    %p464 = scmp.eq.s32.totalorder %s27, 0
    %p465 = por %p463, %p464
    %p466 = scmp.ne.s32.totalorder %s455, %s458
    %p467 = scmp.eq.s32.totalorder %s32, 3
    %p468 = por %p466, %p467
    %p469 = scmp.ne.s32.totalorder %s458, %s459
    %p470 = scmp.eq.s32.totalorder %s32, 0
    %p471 = por %p469, %p470
    %p472 = scmp.ne.s32.totalorder %s458, %s459
    %p473 = scmp.eq.s32.totalorder %s33, 3
    %p474 = por %p472, %p473
    %p476 = scmp.ne.s32.totalorder %s459, %s475
    %p477 = scmp.eq.s32.totalorder %s33, 0
    %p478 = por %p476, %p477
    %s479 = ssub.s32 %s35, %s42
    %p480 = scmp.eq.s32.totalorder %s479, 0
    %s482 = sadd.s32 %s481, 1
    %s483 = scalar_select %p480, %s481, %s482
    %p486 = pneg %p480
    %p487 = scmp.eq.s32.totalorder %s27, 3
    %p488 = por %p486, %p487
    %p489 = scmp.ne.s32.totalorder %s481, %s484
    %p490 = scmp.eq.s32.totalorder %s27, 0
    %p491 = por %p489, %p490
    %p492 = scmp.ne.s32.totalorder %s481, %s484
    %p493 = scmp.eq.s32.totalorder %s32, 3
    %p494 = por %p492, %p493
    %p495 = scmp.ne.s32.totalorder %s484, %s485
    %p496 = scmp.eq.s32.totalorder %s32, 0
    %p497 = por %p495, %p496
    %p498 = scmp.ne.s32.totalorder %s484, %s485
    %p499 = scmp.eq.s32.totalorder %s33, 3
    %p500 = por %p498, %p499
    %p502 = scmp.ne.s32.totalorder %s485, %s501
    %p503 = scmp.eq.s32.totalorder %s33, 0
    %p504 = por %p502, %p503
    %s505 = ssub.s32 %s35, %s42
    %p506 = scmp.eq.s32.totalorder %s505, 0
    %s508 = sadd.s32 %s507, 1
    %s509 = scalar_select %p506, %s507, %s508
    %p512 = pneg %p506
    %p513 = scmp.eq.s32.totalorder %s27, 3
    %p514 = por %p512, %p513
    %p515 = scmp.ne.s32.totalorder %s507, %s510
    %p516 = scmp.eq.s32.totalorder %s27, 0
    %p517 = por %p515, %p516
    %p518 = scmp.ne.s32.totalorder %s507, %s510
    %p519 = scmp.eq.s32.totalorder %s32, 3
    %p520 = por %p518, %p519
    %p521 = scmp.ne.s32.totalorder %s510, %s511
    %p522 = scmp.eq.s32.totalorder %s32, 0
    %p523 = por %p521, %p522
    %p524 = scmp.ne.s32.totalorder %s510, %s511
    %p525 = scmp.eq.s32.totalorder %s33, 3
    %p526 = por %p524, %p525
    %p528 = scmp.ne.s32.totalorder %s511, %s527
    %p529 = scmp.eq.s32.totalorder %s33, 0
    %p530 = por %p528, %p529
    %s532 = sadd.s32 %s531, 1
    %p535 = scmp.eq.s32.totalorder %s27, 3
    %p536 = scmp.ne.s32.totalorder %s531, %s533
    %p537 = scmp.eq.s32.totalorder %s27, 0
    %p538 = por %p536, %p537
    %p539 = scmp.ne.s32.totalorder %s531, %s533
    %p540 = scmp.eq.s32.totalorder %s32, 3
    %p541 = por %p539, %p540
    %p542 = scmp.ne.s32.totalorder %s533, %s534
    %p543 = scmp.eq.s32.totalorder %s32, 0
    %p544 = por %p542, %p543
    %p545 = scmp.ne.s32.totalorder %s533, %s534
    %p546 = scmp.eq.s32.totalorder %s33, 3
    %p547 = por %p545, %p546
    %p549 = scmp.ne.s32.totalorder %s534, %s548
    %p550 = scmp.eq.s32.totalorder %s33, 0
    %p551 = por %p549, %p550
    %s553 = sadd.s32 %s552, 1
    %p556 = scmp.eq.s32.totalorder %s27, 3
    %p557 = scmp.ne.s32.totalorder %s552, %s554
    %p558 = scmp.eq.s32.totalorder %s27, 0
    %p559 = por %p557, %p558
    %p560 = scmp.ne.s32.totalorder %s552, %s554
    %p561 = scmp.eq.s32.totalorder %s32, 3
    %p562 = por %p560, %p561
    %p563 = scmp.ne.s32.totalorder %s554, %s555
    %p564 = scmp.eq.s32.totalorder %s32, 0
    %p565 = por %p563, %p564
    %p566 = scmp.ne.s32.totalorder %s554, %s555
    %p567 = scmp.eq.s32.totalorder %s33, 3
    %p568 = por %p566, %p567
    %p570 = scmp.ne.s32.totalorder %s555, %s569
    %p571 = scmp.eq.s32.totalorder %s33, 0
    %p572 = por %p570, %p571
    %s573 = ssub.s32 %s34, %s46
    %p574 = scmp.eq.s32.totalorder %s573, 0
    %s576 = sadd.s32 %s575, 1
    %s577 = scalar_select %p574, %s575, %s576
    %p580 = pneg %p574
    %p581 = scmp.eq.s32.totalorder %s27, 3
    %p582 = por %p580, %p581
    %p583 = scmp.ne.s32.totalorder %s575, %s578
    %p584 = scmp.eq.s32.totalorder %s27, 0
    %p585 = por %p583, %p584
    %p586 = scmp.ne.s32.totalorder %s575, %s578
    %p587 = scmp.eq.s32.totalorder %s32, 3
    %p588 = por %p586, %p587
    %p589 = scmp.ne.s32.totalorder %s578, %s579
    %p590 = scmp.eq.s32.totalorder %s32, 0
    %p591 = por %p589, %p590
    %p592 = scmp.ne.s32.totalorder %s578, %s579
    %p593 = scmp.eq.s32.totalorder %s33, 3
    %p594 = por %p592, %p593
    %p596 = scmp.ne.s32.totalorder %s579, %s595
    %p597 = scmp.eq.s32.totalorder %s33, 0
    %p598 = por %p596, %p597
    %p599 = scmp.le.s32.totalorder 1, %s27
    %p600 = scmp.lt.s32.totalorder %s27, 5
    %p601 = pnand %p599, %p600
    %p602 = pneg %p601
    // Predicated region
    $region9: #{itransformer_multi_dlinear_forward.1} parent=5 // pred_check
      _
    $region10: #{itransformer_multi_dlinear_forward.1} parent=5 // pred_check_branch
      %604 = sbr.rel (%p601) target = $region12
    $region11: #{itransformer_multi_dlinear_forward.1} parent=5 // pred_region
      %s605 = ssub.s32 %s27, 1
      // Predicated region
      $region13: #{itransformer_multi_dlinear_forward.1} parent=11 // pred_check
        %p606 = pneg %p86
      $region14: #{itransformer_multi_dlinear_forward.1} parent=11 // pred_check_branch
        %608 = sbr.rel (%p606) target = $region16
      $region15: #{itransformer_multi_dlinear_forward.1} parent=11 // pred_region
        _
      $region16: #{itransformer_multi_dlinear_forward.1} parent=11 // pred_fallthru
        _
      // Predicated region
      $region17: #{itransformer_multi_dlinear_forward.1} parent=11 // pred_check
        %p609 = pneg %p107
      $region18: #{itransformer_multi_dlinear_forward.1} parent=11 // pred_check_branch
        %611 = sbr.rel (%p609) target = $region20
      $region19: #{itransformer_multi_dlinear_forward.1} parent=11 // pred_region
        _
      $region20: #{itransformer_multi_dlinear_forward.1} parent=11 // pred_fallthru
        _
      // Predicated region
      $region21: #{itransformer_multi_dlinear_forward.1} parent=11 // pred_check
        %p612 = pneg %p544
      $region22: #{itransformer_multi_dlinear_forward.1} parent=11 // pred_check_branch
        %614 = sbr.rel (%p612) target = $region24
      $region23: #{itransformer_multi_dlinear_forward.1} parent=11 // pred_region
        _
      $region24: #{itransformer_multi_dlinear_forward.1} parent=11 // pred_fallthru
        _
      // Predicated region
      $region25: #{itransformer_multi_dlinear_forward.1} parent=11 // pred_check
        %p615 = pneg %p565
      $region26: #{itransformer_multi_dlinear_forward.1} parent=11 // pred_check_branch
        %617 = sbr.rel (%p615) target = $region28
      $region27: #{itransformer_multi_dlinear_forward.1} parent=11 // pred_region
        _
      $region28: #{itransformer_multi_dlinear_forward.1} parent=11 // pred_fallthru
        _
    $region12: #{itransformer_multi_dlinear_forward.1} parent=5 // pred_fallthru
      _
    %p618 = scmp.lt.s32.totalorder %s27, 4
    // Predicated region
    $region29: #{itransformer_multi_dlinear_forward.1} parent=5 // pred_check
      %p619 = pneg %p618
    $region30: #{itransformer_multi_dlinear_forward.1} parent=5 // pred_check_branch
      %621 = sbr.rel (%p619) target = $region32
    $region31: #{itransformer_multi_dlinear_forward.1} parent=5 // pred_region
      // Predicated region
      $region33: #{itransformer_multi_dlinear_forward.1} parent=31 // pred_check
        %p622 = pneg %p59
      $region34: #{itransformer_multi_dlinear_forward.1} parent=31 // pred_check_branch
        %624 = sbr.rel (%p622) target = $region36
      $region35: #{itransformer_multi_dlinear_forward.1} parent=31 // pred_region
        %p625 = scmp.lt.s32.totalorder %s34, 1
        %s626 = scalar_select %p625, %s34, 1
        %s627 = smul.addr %s626, 8
        %s628 = scalar_lea.vmem %s0, %s627
      $region36: #{itransformer_multi_dlinear_forward.1} parent=31 // pred_fallthru
        _
      // Predicated region
      $region37: #{itransformer_multi_dlinear_forward.1} parent=31 // pred_check
        %p629 = pneg %p127
      $region38: #{itransformer_multi_dlinear_forward.1} parent=31 // pred_check_branch
        %631 = sbr.rel (%p629) target = $region40
      $region39: #{itransformer_multi_dlinear_forward.1} parent=31 // pred_region
        %p632 = scmp.lt.s32.totalorder %s35, 1
        %s633 = scalar_select %p632, %s35, 1
        %s634 = smul.addr %s633, 8
        %s635 = smul.addr %s634, 8
        %s636 = scalar_lea.vmem %s3, %s635
      $region40: #{itransformer_multi_dlinear_forward.1} parent=31 // pred_fallthru
        _
      // Predicated region
      $region41: #{itransformer_multi_dlinear_forward.1} parent=31 // pred_check
        %p637 = pneg %p153
      $region42: #{itransformer_multi_dlinear_forward.1} parent=31 // pred_check_branch
        %639 = sbr.rel (%p637) target = $region44
      $region43: #{itransformer_multi_dlinear_forward.1} parent=31 // pred_region
        %p640 = scmp.lt.s32.totalorder %s35, 1
        %s641 = scalar_select %p640, %s35, 1
        %s642 = smul.addr %s641, 2
        %s643 = scalar_lea.vmem %s4, %s642
      $region44: #{itransformer_multi_dlinear_forward.1} parent=31 // pred_fallthru
        _
      // Predicated region
      $region45: #{itransformer_multi_dlinear_forward.1} parent=31 // pred_check
        %p644 = pneg %p179
      $region46: #{itransformer_multi_dlinear_forward.1} parent=31 // pred_check_branch
        %646 = sbr.rel (%p644) target = $region48
      $region47: #{itransformer_multi_dlinear_forward.1} parent=31 // pred_region
        %p647 = scmp.lt.s32.totalorder %s35, 1
        %s648 = scalar_select %p647, %s35, 1
        %s649 = smul.addr %s648, 8
        %s650 = smul.addr %s649, 8
        %s651 = scalar_lea.vmem %s5, %s650
      $region48: #{itransformer_multi_dlinear_forward.1} parent=31 // pred_fallthru
        _
      // Predicated region
      $region49: #{itransformer_multi_dlinear_forward.1} parent=31 // pred_check
        %p652 = pneg %p205
      $region50: #{itransformer_multi_dlinear_forward.1} parent=31 // pred_check_branch
        %654 = sbr.rel (%p652) target = $region52
      $region51: #{itransformer_multi_dlinear_forward.1} parent=31 // pred_region
        %p655 = scmp.lt.s32.totalorder %s35, 1
        %s656 = scalar_select %p655, %s35, 1
        %s657 = smul.addr %s656, 2
        %s658 = scalar_lea.vmem %s6, %s657
      $region52: #{itransformer_multi_dlinear_forward.1} parent=31 // pred_fallthru
        _
      // Predicated region
      $region53: #{itransformer_multi_dlinear_forward.1} parent=31 // pred_check
        %p659 = pneg %p231
      $region54: #{itransformer_multi_dlinear_forward.1} parent=31 // pred_check_branch
        %661 = sbr.rel (%p659) target = $region56
      $region55: #{itransformer_multi_dlinear_forward.1} parent=31 // pred_region
        %p662 = scmp.lt.s32.totalorder %s35, 1
        %s663 = scalar_select %p662, %s35, 1
        %s664 = smul.addr %s663, 8
        %s665 = smul.addr %s664, 8
        %s666 = scalar_lea.vmem %s7, %s665
      $region56: #{itransformer_multi_dlinear_forward.1} parent=31 // pred_fallthru
        _
      // Predicated region
      $region57: #{itransformer_multi_dlinear_forward.1} parent=31 // pred_check
        %p667 = pneg %p257
      $region58: #{itransformer_multi_dlinear_forward.1} parent=31 // pred_check_branch
        %669 = sbr.rel (%p667) target = $region60
      $region59: #{itransformer_multi_dlinear_forward.1} parent=31 // pred_region
        %p670 = scmp.lt.s32.totalorder %s35, 1
        %s671 = scalar_select %p670, %s35, 1
        %s672 = smul.addr %s671, 2
        %s673 = scalar_lea.vmem %s8, %s672
      $region60: #{itransformer_multi_dlinear_forward.1} parent=31 // pred_fallthru
        _
      // Predicated region
      $region61: #{itransformer_multi_dlinear_forward.1} parent=31 // pred_check
        %p674 = pneg %p283
      $region62: #{itransformer_multi_dlinear_forward.1} parent=31 // pred_check_branch
        %676 = sbr.rel (%p674) target = $region64
      $region63: #{itransformer_multi_dlinear_forward.1} parent=31 // pred_region
        %p677 = scmp.lt.s32.totalorder %s35, 1
        %s678 = scalar_select %p677, %s35, 1
        %s679 = smul.addr %s678, 4
        %s680 = smul.addr %s679, 8
        %s681 = scalar_lea.vmem %s9, %s680
      $region64: #{itransformer_multi_dlinear_forward.1} parent=31 // pred_fallthru
        _
      // Predicated region
      $region65: #{itransformer_multi_dlinear_forward.1} parent=31 // pred_check
        %p682 = pneg %p309
      $region66: #{itransformer_multi_dlinear_forward.1} parent=31 // pred_check_branch
        %684 = sbr.rel (%p682) target = $region68
      $region67: #{itransformer_multi_dlinear_forward.1} parent=31 // pred_region
        %p685 = scmp.lt.s32.totalorder %s35, 1
        %s686 = scalar_select %p685, %s35, 1
        %s687 = scalar_lea.vmem %s10, %s686
      $region68: #{itransformer_multi_dlinear_forward.1} parent=31 // pred_fallthru
        _
      // Predicated region
      $region69: #{itransformer_multi_dlinear_forward.1} parent=31 // pred_check
        %p688 = pneg %p335
      $region70: #{itransformer_multi_dlinear_forward.1} parent=31 // pred_check_branch
        %690 = sbr.rel (%p688) target = $region72
      $region71: #{itransformer_multi_dlinear_forward.1} parent=31 // pred_region
        %p691 = scmp.lt.s32.totalorder %s35, 1
        %s692 = scalar_select %p691, %s35, 1
        %s693 = scalar_lea.vmem %s11, %s692
      $region72: #{itransformer_multi_dlinear_forward.1} parent=31 // pred_fallthru
        _
      // Predicated region
      $region73: #{itransformer_multi_dlinear_forward.1} parent=31 // pred_check
        %p694 = pneg %p361
      $region74: #{itransformer_multi_dlinear_forward.1} parent=31 // pred_check_branch
        %696 = sbr.rel (%p694) target = $region76
      $region75: #{itransformer_multi_dlinear_forward.1} parent=31 // pred_region
        %p697 = scmp.lt.s32.totalorder %s35, 1
        %s698 = scalar_select %p697, %s35, 1
        %s699 = scalar_lea.vmem %s12, %s698
      $region76: #{itransformer_multi_dlinear_forward.1} parent=31 // pred_fallthru
        _
      // Predicated region
      $region77: #{itransformer_multi_dlinear_forward.1} parent=31 // pred_check
        %p700 = pneg %p387
      $region78: #{itransformer_multi_dlinear_forward.1} parent=31 // pred_check_branch
        %702 = sbr.rel (%p700) target = $region80
      $region79: #{itransformer_multi_dlinear_forward.1} parent=31 // pred_region
        %p703 = scmp.lt.s32.totalorder %s35, 1
        %s704 = scalar_select %p703, %s35, 1
        %s705 = smul.addr %s704, 4
        %s706 = smul.addr %s705, 8
        %s707 = scalar_lea.vmem %s13, %s706
      $region80: #{itransformer_multi_dlinear_forward.1} parent=31 // pred_fallthru
        _
      // Predicated region
      $region81: #{itransformer_multi_dlinear_forward.1} parent=31 // pred_check
        %p708 = pneg %p413
      $region82: #{itransformer_multi_dlinear_forward.1} parent=31 // pred_check_branch
        %710 = sbr.rel (%p708) target = $region84
      $region83: #{itransformer_multi_dlinear_forward.1} parent=31 // pred_region
        %p711 = scmp.lt.s32.totalorder %s35, 1
        %s712 = scalar_select %p711, %s35, 1
        %s713 = scalar_lea.vmem %s14, %s712
      $region84: #{itransformer_multi_dlinear_forward.1} parent=31 // pred_fallthru
        _
      // Predicated region
      $region85: #{itransformer_multi_dlinear_forward.1} parent=31 // pred_check
        %p714 = pneg %p439
      $region86: #{itransformer_multi_dlinear_forward.1} parent=31 // pred_check_branch
        %716 = sbr.rel (%p714) target = $region88
      $region87: #{itransformer_multi_dlinear_forward.1} parent=31 // pred_region
        %p717 = scmp.lt.s32.totalorder %s35, 1
        %s718 = scalar_select %p717, %s35, 1
        %s719 = smul.addr %s718, 8
        %s720 = smul.addr %s719, 8
        %s721 = scalar_lea.vmem %s15, %s720
      $region88: #{itransformer_multi_dlinear_forward.1} parent=31 // pred_fallthru
        _
      // Predicated region
      $region89: #{itransformer_multi_dlinear_forward.1} parent=31 // pred_check
        %p722 = pneg %p465
      $region90: #{itransformer_multi_dlinear_forward.1} parent=31 // pred_check_branch
        %724 = sbr.rel (%p722) target = $region92
      $region91: #{itransformer_multi_dlinear_forward.1} parent=31 // pred_region
        %p725 = scmp.lt.s32.totalorder %s35, 1
        %s726 = scalar_select %p725, %s35, 1
        %s727 = scalar_lea.vmem %s16, %s726
      $region92: #{itransformer_multi_dlinear_forward.1} parent=31 // pred_fallthru
        _
      // Predicated region
      $region93: #{itransformer_multi_dlinear_forward.1} parent=31 // pred_check
        %p728 = pneg %p491
      $region94: #{itransformer_multi_dlinear_forward.1} parent=31 // pred_check_branch
        %730 = sbr.rel (%p728) target = $region96
      $region95: #{itransformer_multi_dlinear_forward.1} parent=31 // pred_region
        %p731 = scmp.lt.s32.totalorder %s35, 1
        %s732 = scalar_select %p731, %s35, 1
        %s733 = scalar_lea.vmem %s17, %s732
      $region96: #{itransformer_multi_dlinear_forward.1} parent=31 // pred_fallthru
        _
      // Predicated region
      $region97: #{itransformer_multi_dlinear_forward.1} parent=31 // pred_check
        %p734 = pneg %p517
      $region98: #{itransformer_multi_dlinear_forward.1} parent=31 // pred_check_branch
        %736 = sbr.rel (%p734) target = $region100
      $region99: #{itransformer_multi_dlinear_forward.1} parent=31 // pred_region
        %p737 = scmp.lt.s32.totalorder %s35, 1
        %s738 = scalar_select %p737, %s35, 1
        %s739 = scalar_lea.vmem %s18, %s738
      $region100: #{itransformer_multi_dlinear_forward.1} parent=31 // pred_fallthru
        _
    $region32: #{itransformer_multi_dlinear_forward.1} parent=5 // pred_fallthru
      _
    %p740 = scmp.le.s32.totalorder 1, %s27
    %p741 = scmp.lt.s32.totalorder %s27, 5
    %p742 = pnand %p740, %p741
    %p743 = pneg %p742
    // Predicated region
    $region101: #{itransformer_multi_dlinear_forward.1} parent=5 // pred_check
      _
    $region102: #{itransformer_multi_dlinear_forward.1} parent=5 // pred_check_branch
      %745 = sbr.rel (%p742) target = $region104
    $region103: #{itransformer_multi_dlinear_forward.1} parent=5 // pred_region
      %s746 = ssub.s32 %s27, 1
      %p747 = scmp.lt.s32.totalorder %s36, 1
      %s748 = scalar_select %p747, %s36, 1
      %s749 = smul.addr %s748, 8
      %s750 = scalar_lea.vmem %s0, %s749
      %p751 = pneg %p65
      %p752 = pneg %p62
      %p753 = pneg %p86
      %p754 = pneg %p83
      %p755 = pneg %p107
      %p756 = pneg %p104
      %p757 = scmp.lt.s32.totalorder %s37, 1
      %s758 = scalar_select %p757, %s37, 1
      %s759 = smul.addr %s758, 8
      %s760 = smul.addr %s759, 8
      %s761 = scalar_lea.vmem %s3, %s760
      %p762 = pneg %p133
      %p763 = pneg %p130
      %p764 = scmp.lt.s32.totalorder %s37, 1
      %s765 = scalar_select %p764, %s37, 1
      %s766 = smul.addr %s765, 2
      %s767 = scalar_lea.vmem %s4, %s766
      %p768 = pneg %p159
      %p769 = pneg %p156
      %p770 = scmp.lt.s32.totalorder %s37, 1
      %s771 = scalar_select %p770, %s37, 1
      %s772 = smul.addr %s771, 8
      %s773 = smul.addr %s772, 8
      %s774 = scalar_lea.vmem %s5, %s773
      %p775 = pneg %p185
      %p776 = pneg %p182
      %p777 = scmp.lt.s32.totalorder %s37, 1
      %s778 = scalar_select %p777, %s37, 1
      %s779 = smul.addr %s778, 2
      %s780 = scalar_lea.vmem %s6, %s779
      %p781 = pneg %p211
      %p782 = pneg %p208
      %p783 = scmp.lt.s32.totalorder %s37, 1
      %s784 = scalar_select %p783, %s37, 1
      %s785 = smul.addr %s784, 8
      %s786 = smul.addr %s785, 8
      %s787 = scalar_lea.vmem %s7, %s786
      %p788 = pneg %p237
      %p789 = pneg %p234
      %p790 = scmp.lt.s32.totalorder %s37, 1
      %s791 = scalar_select %p790, %s37, 1
      %s792 = smul.addr %s791, 2
      %s793 = scalar_lea.vmem %s8, %s792
      %p794 = pneg %p263
      %p795 = pneg %p260
      %p796 = scmp.lt.s32.totalorder %s37, 1
      %s797 = scalar_select %p796, %s37, 1
      %s798 = smul.addr %s797, 4
      %s799 = smul.addr %s798, 8
      %s800 = scalar_lea.vmem %s9, %s799
      %p801 = pneg %p289
      %p802 = pneg %p286
      %p803 = scmp.lt.s32.totalorder %s37, 1
      %s804 = scalar_select %p803, %s37, 1
      %s805 = scalar_lea.vmem %s10, %s804
      %p806 = pneg %p315
      %p807 = pneg %p312
      %p808 = scmp.lt.s32.totalorder %s37, 1
      %s809 = scalar_select %p808, %s37, 1
      %s810 = scalar_lea.vmem %s11, %s809
      %p811 = pneg %p341
      %p812 = pneg %p338
      %p813 = scmp.lt.s32.totalorder %s37, 1
      %s814 = scalar_select %p813, %s37, 1
      %s815 = scalar_lea.vmem %s12, %s814
      %p816 = pneg %p367
      %p817 = pneg %p364
      %p818 = scmp.lt.s32.totalorder %s37, 1
      %s819 = scalar_select %p818, %s37, 1
      %s820 = smul.addr %s819, 4
      %s821 = smul.addr %s820, 8
      %s822 = scalar_lea.vmem %s13, %s821
      %p823 = pneg %p393
      %p824 = pneg %p390
      %p825 = scmp.lt.s32.totalorder %s37, 1
      %s826 = scalar_select %p825, %s37, 1
      %s827 = scalar_lea.vmem %s14, %s826
      %p828 = pneg %p419
      %p829 = pneg %p416
      %p830 = scmp.lt.s32.totalorder %s37, 1
      %s831 = scalar_select %p830, %s37, 1
      %s832 = smul.addr %s831, 8
      %s833 = smul.addr %s832, 8
      %s834 = scalar_lea.vmem %s15, %s833
      %p835 = pneg %p445
      %p836 = pneg %p442
      %p837 = scmp.lt.s32.totalorder %s37, 1
      %s838 = scalar_select %p837, %s37, 1
      %s839 = scalar_lea.vmem %s16, %s838
      %p840 = pneg %p471
      %p841 = pneg %p468
      %p842 = scmp.lt.s32.totalorder %s37, 1
      %s843 = scalar_select %p842, %s37, 1
      %s844 = scalar_lea.vmem %s17, %s843
      %p845 = pneg %p497
      %p846 = pneg %p494
      %p847 = scmp.lt.s32.totalorder %s37, 1
      %s848 = scalar_select %p847, %s37, 1
      %s849 = scalar_lea.vmem %s18, %s848
      %p850 = pneg %p523
      %p851 = pneg %p520
      %p852 = pneg %p544
      %p853 = pneg %p541
      %p854 = pneg %p565
      %p855 = pneg %p562
      %p856 = pneg %p591
      %p857 = pneg %p588
      %p858 = scmp.lt.s32.totalorder %s36, 1
      %s859 = scalar_select %p858, %s36, 1
      %s860 = smul.addr %s859, 8
      %s861 = scalar_lea.vmem %s21, %s860
      %p862 = scmp.lt.s32.totalorder %s36, 1
      %s863 = scalar_select %p862, %s36, 1
      %s864 = smul.addr %s863, 8
      %s865 = scalar_lea.vmem %s0, %s864
      %p866 = scmp.lt.s32.totalorder %s37, 1
      %s867 = scalar_select %p866, %s37, 1
      %s868 = smul.addr %s867, 8
      %s869 = smul.addr %s868, 8
      %s870 = scalar_lea.vmem %s3, %s869
      %p871 = scmp.lt.s32.totalorder %s37, 1
      %s872 = scalar_select %p871, %s37, 1
      %s873 = smul.addr %s872, 2
      %s874 = scalar_lea.vmem %s4, %s873
      %p875 = scmp.lt.s32.totalorder %s37, 1
      %s876 = scalar_select %p875, %s37, 1
      %s877 = smul.addr %s876, 8
      %s878 = smul.addr %s877, 8
      %s879 = scalar_lea.vmem %s5, %s878
      %p880 = scmp.lt.s32.totalorder %s37, 1
      %s881 = scalar_select %p880, %s37, 1
      %s882 = smul.addr %s881, 2
      %s883 = scalar_lea.vmem %s6, %s882
      %p884 = scmp.lt.s32.totalorder %s37, 1
      %s885 = scalar_select %p884, %s37, 1
      %s886 = smul.addr %s885, 8
      %s887 = smul.addr %s886, 8
      %s888 = scalar_lea.vmem %s7, %s887
      %p889 = scmp.lt.s32.totalorder %s37, 1
      %s890 = scalar_select %p889, %s37, 1
      %s891 = smul.addr %s890, 2
      %s892 = scalar_lea.vmem %s8, %s891
      %p893 = scmp.lt.s32.totalorder %s37, 1
      %s894 = scalar_select %p893, %s37, 1
      %s895 = smul.addr %s894, 4
      %s896 = smul.addr %s895, 8
      %s897 = scalar_lea.vmem %s9, %s896
      %p898 = scmp.lt.s32.totalorder %s37, 1
      %s899 = scalar_select %p898, %s37, 1
      %s900 = scalar_lea.vmem %s10, %s899
      %p901 = scmp.lt.s32.totalorder %s37, 1
      %s902 = scalar_select %p901, %s37, 1
      %s903 = scalar_lea.vmem %s11, %s902
      %p904 = scmp.lt.s32.totalorder %s37, 1
      %s905 = scalar_select %p904, %s37, 1
      %s906 = scalar_lea.vmem %s12, %s905
      %p907 = scmp.lt.s32.totalorder %s37, 1
      %s908 = scalar_select %p907, %s37, 1
      %s909 = smul.addr %s908, 4
      %s910 = smul.addr %s909, 8
      %s911 = scalar_lea.vmem %s13, %s910
      %p912 = scmp.lt.s32.totalorder %s37, 1
      %s913 = scalar_select %p912, %s37, 1
      %s914 = scalar_lea.vmem %s14, %s913
      %p915 = scmp.lt.s32.totalorder %s37, 1
      %s916 = scalar_select %p915, %s37, 1
      %s917 = smul.addr %s916, 8
      %s918 = smul.addr %s917, 8
      %s919 = scalar_lea.vmem %s15, %s918
      %p920 = scmp.lt.s32.totalorder %s37, 1
      %s921 = scalar_select %p920, %s37, 1
      %s922 = scalar_lea.vmem %s16, %s921
      %p923 = scmp.lt.s32.totalorder %s37, 1
      %s924 = scalar_select %p923, %s37, 1
      %s925 = scalar_lea.vmem %s17, %s924
      %p926 = scmp.lt.s32.totalorder %s37, 1
      %s927 = scalar_select %p926, %s37, 1
      %s928 = scalar_lea.vmem %s18, %s927
      %p929 = scmp.lt.s32.totalorder %s36, 1
      %s930 = scalar_select %p929, %s36, 1
      %s931 = smul.addr %s930, 8
      %s932 = scalar_lea.vmem %s21, %s931
      %p933 = scmp.eq.s32.totalorder %s37, 0
      // Predicated region
      $region105: #{itransformer_multi_dlinear_forward.1} parent=103 // pred_check
        %p934 = pneg %p933
      $region106: #{itransformer_multi_dlinear_forward.1} parent=103 // pred_check_branch
        %936 = sbr.rel (%p934) target = $region108
      $region107: #{itransformer_multi_dlinear_forward.1} parent=103 // pred_region
        %v937 = vld [vmem:[%s865] sm:$0xff]
        %vm938 = vcmask 64512
        %v939 = vsel %vm938, %v937, 0.0
        %940 = vadd.xlane.f32.xlu0 %v939
        %v941 = vpop.xlane.xlu0 %940
        %v942 = vrcp.pop 8.0
        %v943 = vmul.f32 %v941, %v942
        %v944 = vsub.f32 %v937, %v943
        %v945 = vmul.f32 %v944, %v944
        %v946 = vsel %vm938, %v945, 0.0
        %947 = vadd.xlane.f32.xlu0 %v946
        %v948 = vpop.xlane.xlu0 %947
        %v949 = vmul.f32 %v948, %v942
        %v950 = vadd.f32 %v949, 1e-05
        %v951 = vrsqrt.pop %v950
        %vm952 = vcmask 7168
        %953 = vst.msk [vmem:[#allocation3] sm:$0xff] %vm952, %v943
        %v954 = vmul.f32 %v950, %v951
        %955 = vst.msk [vmem:[#allocation4] sm:$0xff] %vm952, %v954
        %v956 = vmul.f32 %v944, %v951
        %v957 = vld [vmem:[%s1] sm:$0xff]
        %v958 = vld [vmem:[%s2] sm:$0x1]
        %v960 = vlaneseq
        %v961 = vshrl.u32 %v960, 7
        %v962 = vsub.s32 0, %v961
        %v963 = vrot.slane %v958, %v962
        %v966 = vsel %vm938, %v956, 0
        %968 = vmatprep.subr.mxu0 0.0
        %969 = vmatpush1.msra.mxu0 %v957
        %970 = vmatprep.subr.mxu0 0.0
        %971 = vmatpush1.msra.mxu0 0.0
        %972 = vmatprep.subr.mxu0 0.0
        %973 = vmatpush1.msra.mxu0 0.0
        %974 = vmatprep.subr.mxu0 0.0
        %975 = vmatpush1.msra.mxu0 0.0
        %976 = vmatprep.subr.mxu0 0.0
        %977 = vmatpush1.msra.mxu0 0.0
        %978 = vmatprep.subr.mxu0 0.0
        %979 = vmatpush1.msra.mxu0 0.0
        %980 = vmatprep.subr.mxu0 0.0
        %981 = vmatpush1.msra.mxu0 0.0
        %982 = vmatprep.subr.mxu0 0.0
        %983 = vmatpush1.msra.mxu0 0.0
        %984 = vmatprep.subr.mxu0 0.0
        %985 = vmatpush1.msra.mxu0 0.0
        %986 = vmatprep.subr.mxu0 0.0
        %987 = vmatpush1.msra.mxu0 0.0
        %988 = vmatprep.subr.mxu0 0.0
        %989 = vmatpush1.msra.mxu0 0.0
        %990 = vmatprep.subr.mxu0 0.0
        %991 = vmatpush1.msra.mxu0 0.0
        %992 = vmatprep.subr.mxu0 0.0
        %993 = vmatpush1.msra.mxu0 0.0
        %994 = vmatprep.subr.mxu0 0.0
        %995 = vmatpush1.msra.mxu0 0.0
        %996 = vmatprep.subr.mxu0 0.0
        %997 = vmatpush1.msra.mxu0 0.0
        %998 = vmatprep.subr.mxu0 0.0
        %999 = vmatpush1.msra.mxu0 0.0
        %1000 = vmatprep.subr.mxu0 0.0
        %1001 = vmatpush1.msra.mxu0 0.0
        %1002 = vmatprep.subr.mxu0 0.0
        %1003 = vmatpush1.msra.mxu0 0.0
        %1004 = vmatprep.subr.mxu0 0.0
        %1005 = vmatpush1.msra.mxu0 0.0
        %1006 = vmatprep.subr.mxu0 0.0
        %1007 = vmatpush1.msra.mxu0 0.0
        %1008 = vmatprep.subr.mxu0 0.0
        %1009 = vmatpush1.msra.mxu0 0.0
        %1010 = vmatprep.subr.mxu0 0.0
        %1011 = vmatpush1.msra.mxu0 0.0
        %1012 = vmatprep.subr.mxu0 0.0
        %1013 = vmatpush1.msra.mxu0 0.0
        %1014 = vmatprep.subr.mxu0 0.0
        %1015 = vmatpush1.msra.mxu0 0.0
        %1016 = vmatprep.subr.mxu0 0.0
        %1017 = vmatpush1.msra.mxu0 0.0
        %1018 = vmatprep.subr.mxu0 0.0
        %1019 = vmatpush1.msra.mxu0 0.0
        %1020 = vmatprep.subr.mxu0 0.0
        %1021 = vmatpush1.msra.mxu0 0.0
        %1022 = vmatprep.subr.mxu0 0.0
        %1023 = vmatpush1.msra.mxu0 0.0
        %1024 = vmatprep.subr.mxu0 0.0
        %1025 = vmatpush1.msra.mxu0 0.0
        %1026 = vmatprep.subr.mxu0 0.0
        %1027 = vmatpush1.msra.mxu0 0.0
        %1028 = vmatprep.subr.mxu0 0.0
        %1029 = vmatpush1.msra.mxu0 0.0
        %1030 = vmatprep.subr.mxu0 0.0
        %1031 = vmatpush1.msra.mxu0 0.0
        %1032 = vmatprep.mubr.f32.mxu0 0.0
        %1033 = vmatmul.mubr.f32.gmra.mrb[0].mxu0 %v966
        %v1034 = vpop.f32.mrb[0].mxu0
        %v1035 = vadd.f32 %v963, %v1034
        %v1036 = vpop.f32.mrb[0].mxu0
        %1037 = vdwg.mxu0
        %vm1038 = vcmask 261120
        %1039 = vst.msk [vmem:[#allocation2] sm:$0xff] %vm1038, %v1035
      $region108: #{itransformer_multi_dlinear_forward.1} parent=103 // pred_fallthru
        _
      %v1040 = vld [vmem:[#allocation2] sm:$0xff]
      %v1041 = vld [vmem:[%s870] sm:$0xff]
      %v1042 = vld [vmem:[%s870 + $0x8] sm:$0xff]
      %v1043 = vld [vmem:[%s870 + $0x10] sm:$0xff]
      %v1044 = vld [vmem:[%s870 + $0x18] sm:$0xff]
      %v1045 = vld [vmem:[%s870 + $0x20] sm:$0xff]
      %v1046 = vld [vmem:[%s870 + $0x28] sm:$0xff]
      %v1047 = vld [vmem:[%s870 + $0x30] sm:$0xff]
      %v1048 = vld [vmem:[%s870 + $0x38] sm:$0xff]
      %v1049 = vld [vmem:[%s874] sm:$0x1]
      %v1050 = vld [vmem:[%s874 + $0x1] sm:$0x1]
      %v1053 = vlaneseq
      %v1054 = vshrl.u32 %v1053, 7
      %v1055 = vsub.s32 0, %v1054
      %v1056 = vrot.slane %v1049, %v1055
      %v1057 = vlaneseq
      %v1058 = vshrl.u32 %v1057, 7
      %v1059 = vsub.s32 0, %v1058
      %v1060 = vrot.slane %v1050, %v1059
      %vm1063 = vcmask 261120
      %v1065 = vsel %vm1063, %v1040, 0
      %1067 = vmatprep.subr.mxu0 0.0
      %1068 = vmatpush1.msra.mxu0 %v1041
      %1069 = vmatprep.subr.mxu0 0.0
      %1070 = vmatpush1.msra.mxu0 %v1042
      %1071 = vmatprep.subr.mxu0 0.0
      %1072 = vmatpush1.msra.mxu0 %v1043
      %1073 = vmatprep.subr.mxu0 0.0
      %1074 = vmatpush1.msra.mxu0 %v1044
      %1075 = vmatprep.subr.mxu0 0.0
      %1076 = vmatpush1.msra.mxu0 0.0
      %1077 = vmatprep.subr.mxu0 0.0
      %1078 = vmatpush1.msra.mxu0 0.0
      %1079 = vmatprep.subr.mxu0 0.0
      %1080 = vmatpush1.msra.mxu0 0.0
      %1081 = vmatprep.subr.mxu0 0.0
      %1082 = vmatpush1.msra.mxu0 0.0
      %1083 = vmatprep.subr.mxu0 0.0
      %1084 = vmatpush1.msra.mxu0 0.0
      %1085 = vmatprep.subr.mxu0 0.0
      %1086 = vmatpush1.msra.mxu0 0.0
      %1087 = vmatprep.subr.mxu0 0.0
      %1088 = vmatpush1.msra.mxu0 0.0
      %1089 = vmatprep.subr.mxu0 0.0
      %1090 = vmatpush1.msra.mxu0 0.0
      %1091 = vmatprep.subr.mxu0 0.0
      %1092 = vmatpush1.msra.mxu0 0.0
      %1093 = vmatprep.subr.mxu0 0.0
      %1094 = vmatpush1.msra.mxu0 0.0
      %1095 = vmatprep.subr.mxu0 0.0
      %1096 = vmatpush1.msra.mxu0 0.0
      %1097 = vmatprep.subr.mxu0 0.0
      %1098 = vmatpush1.msra.mxu0 0.0
      %1099 = vmatprep.subr.mxu0 0.0
      %1100 = vmatpush1.msra.mxu0 0.0
      %1101 = vmatprep.subr.mxu0 0.0
      %1102 = vmatpush1.msra.mxu0 0.0
      %1103 = vmatprep.subr.mxu0 0.0
      %1104 = vmatpush1.msra.mxu0 0.0
      %1105 = vmatprep.subr.mxu0 0.0
      %1106 = vmatpush1.msra.mxu0 0.0
      %1107 = vmatprep.subr.mxu0 0.0
      %1108 = vmatpush1.msra.mxu0 0.0
      %1109 = vmatprep.subr.mxu0 0.0
      %1110 = vmatpush1.msra.mxu0 0.0
      %1111 = vmatprep.subr.mxu0 0.0
      %1112 = vmatpush1.msra.mxu0 0.0
      %1113 = vmatprep.subr.mxu0 0.0
      %1114 = vmatpush1.msra.mxu0 0.0
      %1115 = vmatprep.subr.mxu0 0.0
      %1116 = vmatpush1.msra.mxu0 0.0
      %1117 = vmatprep.subr.mxu0 0.0
      %1118 = vmatpush1.msra.mxu0 0.0
      %1119 = vmatprep.subr.mxu0 0.0
      %1120 = vmatpush1.msra.mxu0 0.0
      %1121 = vmatprep.subr.mxu0 0.0
      %1122 = vmatpush1.msra.mxu0 0.0
      %1123 = vmatprep.subr.mxu0 0.0
      %1124 = vmatpush1.msra.mxu0 0.0
      %1125 = vmatprep.subr.mxu0 0.0
      %1126 = vmatpush1.msra.mxu0 0.0
      %1127 = vmatprep.subr.mxu0 0.0
      %1128 = vmatpush1.msra.mxu0 0.0
      %1129 = vmatprep.subr.mxu0 0.0
      %1130 = vmatpush1.msra.mxu0 0.0
      %1131 = vmatprep.mubr.f32.mxu0 0.0
      %1132 = vmatmul.mubr.f32.gmra.mrb[0].mxu0 %v1065
      %v1133 = vpop.f32.mrb[0].mxu0
      %v1134 = vadd.f32 %v1056, %v1133
      %v1135 = vpop.f32.mrb[0].mxu0
      %1136 = vdwg.mxu0
      %1137 = vmatprep.subr.mxu0 0.0
      %1138 = vmatpush1.msra.mxu0 %v1045
      %1139 = vmatprep.subr.mxu0 0.0
      %1140 = vmatpush1.msra.mxu0 %v1046
      %1141 = vmatprep.subr.mxu0 0.0
      %1142 = vmatpush1.msra.mxu0 %v1047
      %1143 = vmatprep.subr.mxu0 0.0
      %1144 = vmatpush1.msra.mxu0 %v1048
      %1145 = vmatprep.subr.mxu0 0.0
      %1146 = vmatpush1.msra.mxu0 0.0
      %1147 = vmatprep.subr.mxu0 0.0
      %1148 = vmatpush1.msra.mxu0 0.0
      %1149 = vmatprep.subr.mxu0 0.0
      %1150 = vmatpush1.msra.mxu0 0.0
      %1151 = vmatprep.subr.mxu0 0.0
      %1152 = vmatpush1.msra.mxu0 0.0
      %1153 = vmatprep.subr.mxu0 0.0
      %1154 = vmatpush1.msra.mxu0 0.0
      %1155 = vmatprep.subr.mxu0 0.0
      %1156 = vmatpush1.msra.mxu0 0.0
      %1157 = vmatprep.subr.mxu0 0.0
      %1158 = vmatpush1.msra.mxu0 0.0
      %1159 = vmatprep.subr.mxu0 0.0
      %1160 = vmatpush1.msra.mxu0 0.0
      %1161 = vmatprep.subr.mxu0 0.0
      %1162 = vmatpush1.msra.mxu0 0.0
      %1163 = vmatprep.subr.mxu0 0.0
      %1164 = vmatpush1.msra.mxu0 0.0
      %1165 = vmatprep.subr.mxu0 0.0
      %1166 = vmatpush1.msra.mxu0 0.0
      %1167 = vmatprep.subr.mxu0 0.0
      %1168 = vmatpush1.msra.mxu0 0.0
      %1169 = vmatprep.subr.mxu0 0.0
      %1170 = vmatpush1.msra.mxu0 0.0
      %1171 = vmatprep.subr.mxu0 0.0
      %1172 = vmatpush1.msra.mxu0 0.0
      %1173 = vmatprep.subr.mxu0 0.0
      %1174 = vmatpush1.msra.mxu0 0.0
      %1175 = vmatprep.subr.mxu0 0.0
      %1176 = vmatpush1.msra.mxu0 0.0
      %1177 = vmatprep.subr.mxu0 0.0
      %1178 = vmatpush1.msra.mxu0 0.0
      %1179 = vmatprep.subr.mxu0 0.0
      %1180 = vmatpush1.msra.mxu0 0.0
      %1181 = vmatprep.subr.mxu0 0.0
      %1182 = vmatpush1.msra.mxu0 0.0
      %1183 = vmatprep.subr.mxu0 0.0
      %1184 = vmatpush1.msra.mxu0 0.0
      %1185 = vmatprep.subr.mxu0 0.0
      %1186 = vmatpush1.msra.mxu0 0.0
      %1187 = vmatprep.subr.mxu0 0.0
      %1188 = vmatpush1.msra.mxu0 0.0
      %1189 = vmatprep.subr.mxu0 0.0
      %1190 = vmatpush1.msra.mxu0 0.0
      %1191 = vmatprep.subr.mxu0 0.0
      %1192 = vmatpush1.msra.mxu0 0.0
      %1193 = vmatprep.subr.mxu0 0.0
      %1194 = vmatpush1.msra.mxu0 0.0
      %1195 = vmatprep.subr.mxu0 0.0
      %1196 = vmatpush1.msra.mxu0 0.0
      %1197 = vmatprep.subr.mxu0 0.0
      %1198 = vmatpush1.msra.mxu0 0.0
      %1199 = vmatprep.subr.mxu0 0.0
      %1200 = vmatpush1.msra.mxu0 0.0
      %1201 = vmatprep.mubr.f32.mxu0 0.0
      %1202 = vmatmul.mubr.f32.gmra.mrb[0].mxu0 %v1065
      %v1203 = vpop.f32.mrb[0].mxu0
      %v1204 = vadd.f32 %v1060, %v1203
      %v1205 = vpop.f32.mrb[0].mxu0
      %1206 = vdwg.mxu0
      %v1207 = vld [vmem:[%s879] sm:$0xff]
      %v1208 = vld [vmem:[%s879 + $0x8] sm:$0xff]
      %v1209 = vld [vmem:[%s879 + $0x10] sm:$0xff]
      %v1210 = vld [vmem:[%s879 + $0x18] sm:$0xff]
      %v1211 = vld [vmem:[%s879 + $0x20] sm:$0xff]
      %v1212 = vld [vmem:[%s879 + $0x28] sm:$0xff]
      %v1213 = vld [vmem:[%s879 + $0x30] sm:$0xff]
      %v1214 = vld [vmem:[%s879 + $0x38] sm:$0xff]
      %v1215 = vld [vmem:[%s883] sm:$0x1]
      %v1216 = vld [vmem:[%s883 + $0x1] sm:$0x1]
      %v1219 = vlaneseq
      %v1220 = vshrl.u32 %v1219, 7
      %v1221 = vsub.s32 0, %v1220
      %v1222 = vrot.slane %v1215, %v1221
      %v1223 = vlaneseq
      %v1224 = vshrl.u32 %v1223, 7
      %v1225 = vsub.s32 0, %v1224
      %v1226 = vrot.slane %v1216, %v1225
      %1229 = vmatprep.subr.mxu0 0.0
      %1230 = vmatpush1.msra.mxu0 %v1207
      %1231 = vmatprep.subr.mxu0 0.0
      %1232 = vmatpush1.msra.mxu0 %v1208
      %1233 = vmatprep.subr.mxu0 0.0
      %1234 = vmatpush1.msra.mxu0 %v1209
      %1235 = vmatprep.subr.mxu0 0.0
      %1236 = vmatpush1.msra.mxu0 %v1210
      %1237 = vmatprep.subr.mxu0 0.0
      %1238 = vmatpush1.msra.mxu0 0.0
      %1239 = vmatprep.subr.mxu0 0.0
      %1240 = vmatpush1.msra.mxu0 0.0
      %1241 = vmatprep.subr.mxu0 0.0
      %1242 = vmatpush1.msra.mxu0 0.0
      %1243 = vmatprep.subr.mxu0 0.0
      %1244 = vmatpush1.msra.mxu0 0.0
      %1245 = vmatprep.subr.mxu0 0.0
      %1246 = vmatpush1.msra.mxu0 0.0
      %1247 = vmatprep.subr.mxu0 0.0
      %1248 = vmatpush1.msra.mxu0 0.0
      %1249 = vmatprep.subr.mxu0 0.0
      %1250 = vmatpush1.msra.mxu0 0.0
      %1251 = vmatprep.subr.mxu0 0.0
      %1252 = vmatpush1.msra.mxu0 0.0
      %1253 = vmatprep.subr.mxu0 0.0
      %1254 = vmatpush1.msra.mxu0 0.0
      %1255 = vmatprep.subr.mxu0 0.0
      %1256 = vmatpush1.msra.mxu0 0.0
      %1257 = vmatprep.subr.mxu0 0.0
      %1258 = vmatpush1.msra.mxu0 0.0
      %1259 = vmatprep.subr.mxu0 0.0
      %1260 = vmatpush1.msra.mxu0 0.0
      %1261 = vmatprep.subr.mxu0 0.0
      %1262 = vmatpush1.msra.mxu0 0.0
      %1263 = vmatprep.subr.mxu0 0.0
      %1264 = vmatpush1.msra.mxu0 0.0
      %1265 = vmatprep.subr.mxu0 0.0
      %1266 = vmatpush1.msra.mxu0 0.0
      %1267 = vmatprep.subr.mxu0 0.0
      %1268 = vmatpush1.msra.mxu0 0.0
      %1269 = vmatprep.subr.mxu0 0.0
      %1270 = vmatpush1.msra.mxu0 0.0
      %1271 = vmatprep.subr.mxu0 0.0
      %1272 = vmatpush1.msra.mxu0 0.0
      %1273 = vmatprep.subr.mxu0 0.0
      %1274 = vmatpush1.msra.mxu0 0.0
      %1275 = vmatprep.subr.mxu0 0.0
      %1276 = vmatpush1.msra.mxu0 0.0
      %1277 = vmatprep.subr.mxu0 0.0
      %1278 = vmatpush1.msra.mxu0 0.0
      %1279 = vmatprep.subr.mxu0 0.0
      %1280 = vmatpush1.msra.mxu0 0.0
      %1281 = vmatprep.subr.mxu0 0.0
      %1282 = vmatpush1.msra.mxu0 0.0
      %1283 = vmatprep.subr.mxu0 0.0
      %1284 = vmatpush1.msra.mxu0 0.0
      %1285 = vmatprep.subr.mxu0 0.0
      %1286 = vmatpush1.msra.mxu0 0.0
      %1287 = vmatprep.subr.mxu0 0.0
      %1288 = vmatpush1.msra.mxu0 0.0
      %1289 = vmatprep.subr.mxu0 0.0
      %1290 = vmatpush1.msra.mxu0 0.0
      %1291 = vmatprep.subr.mxu0 0.0
      %1292 = vmatpush1.msra.mxu0 0.0
      %1293 = vmatprep.mubr.f32.mxu0 0.0
      %1294 = vmatmul.mubr.f32.gmra.mrb[0].mxu0 %v1065
      %v1295 = vpop.f32.mrb[0].mxu0
      %v1296 = vadd.f32 %v1222, %v1295
      %v1297 = vpop.f32.mrb[0].mxu0
      %1298 = vdwg.mxu0
      %1299 = vmatprep.subr.mxu0 0.0
      %1300 = vmatpush1.msra.mxu0 %v1211
      %1301 = vmatprep.subr.mxu0 0.0
      %1302 = vmatpush1.msra.mxu0 %v1212
      %1303 = vmatprep.subr.mxu0 0.0
      %1304 = vmatpush1.msra.mxu0 %v1213
      %1305 = vmatprep.subr.mxu0 0.0
      %1306 = vmatpush1.msra.mxu0 %v1214
      %1307 = vmatprep.subr.mxu0 0.0
      %1308 = vmatpush1.msra.mxu0 0.0
      %1309 = vmatprep.subr.mxu0 0.0
      %1310 = vmatpush1.msra.mxu0 0.0
      %1311 = vmatprep.subr.mxu0 0.0
      %1312 = vmatpush1.msra.mxu0 0.0
      %1313 = vmatprep.subr.mxu0 0.0
      %1314 = vmatpush1.msra.mxu0 0.0
      %1315 = vmatprep.subr.mxu0 0.0
      %1316 = vmatpush1.msra.mxu0 0.0
      %1317 = vmatprep.subr.mxu0 0.0
      %1318 = vmatpush1.msra.mxu0 0.0
      %1319 = vmatprep.subr.mxu0 0.0
      %1320 = vmatpush1.msra.mxu0 0.0
      %1321 = vmatprep.subr.mxu0 0.0
      %1322 = vmatpush1.msra.mxu0 0.0
      %1323 = vmatprep.subr.mxu0 0.0
      %1324 = vmatpush1.msra.mxu0 0.0
      %1325 = vmatprep.subr.mxu0 0.0
      %1326 = vmatpush1.msra.mxu0 0.0
      %1327 = vmatprep.subr.mxu0 0.0
      %1328 = vmatpush1.msra.mxu0 0.0
      %1329 = vmatprep.subr.mxu0 0.0
      %1330 = vmatpush1.msra.mxu0 0.0
      %1331 = vmatprep.subr.mxu0 0.0
      %1332 = vmatpush1.msra.mxu0 0.0
      %1333 = vmatprep.subr.mxu0 0.0
      %1334 = vmatpush1.msra.mxu0 0.0
      %1335 = vmatprep.subr.mxu0 0.0
      %1336 = vmatpush1.msra.mxu0 0.0
      %1337 = vmatprep.subr.mxu0 0.0
      %1338 = vmatpush1.msra.mxu0 0.0
      %1339 = vmatprep.subr.mxu0 0.0
      %1340 = vmatpush1.msra.mxu0 0.0
      %1341 = vmatprep.subr.mxu0 0.0
      %1342 = vmatpush1.msra.mxu0 0.0
      %1343 = vmatprep.subr.mxu0 0.0
      %1344 = vmatpush1.msra.mxu0 0.0
      %1345 = vmatprep.subr.mxu0 0.0
      %1346 = vmatpush1.msra.mxu0 0.0
      %1347 = vmatprep.subr.mxu0 0.0
      %1348 = vmatpush1.msra.mxu0 0.0
      %1349 = vmatprep.subr.mxu0 0.0
      %1350 = vmatpush1.msra.mxu0 0.0
      %1351 = vmatprep.subr.mxu0 0.0
      %1352 = vmatpush1.msra.mxu0 0.0
      %1353 = vmatprep.subr.mxu0 0.0
      %1354 = vmatpush1.msra.mxu0 0.0
      %1355 = vmatprep.subr.mxu0 0.0
      %1356 = vmatpush1.msra.mxu0 0.0
      %1357 = vmatprep.subr.mxu0 0.0
      %1358 = vmatpush1.msra.mxu0 0.0
      %1359 = vmatprep.subr.mxu0 0.0
      %1360 = vmatpush1.msra.mxu0 0.0
      %1361 = vmatprep.subr.mxu0 0.0
      %1362 = vmatpush1.msra.mxu0 0.0
      %1363 = vmatprep.mubr.f32.mxu0 0.0
      %1364 = vmatmul.mubr.f32.gmra.mrb[0].mxu0 %v1065
      %v1365 = vpop.f32.mrb[0].mxu0
      %v1366 = vadd.f32 %v1226, %v1365
      %v1367 = vpop.f32.mrb[0].mxu0
      %1368 = vdwg.mxu0
      %v1369 = vld [vmem:[%s888] sm:$0xff]
      %v1370 = vld [vmem:[%s888 + $0x8] sm:$0xff]
      %v1371 = vld [vmem:[%s888 + $0x10] sm:$0xff]
      %v1372 = vld [vmem:[%s888 + $0x18] sm:$0xff]
      %v1373 = vld [vmem:[%s888 + $0x20] sm:$0xff]
      %v1374 = vld [vmem:[%s888 + $0x28] sm:$0xff]
      %v1375 = vld [vmem:[%s888 + $0x30] sm:$0xff]
      %v1376 = vld [vmem:[%s888 + $0x38] sm:$0xff]
      %v1377 = vld [vmem:[%s892] sm:$0x1]
      %v1378 = vld [vmem:[%s892 + $0x1] sm:$0x1]
      %v1381 = vlaneseq
      %v1382 = vshrl.u32 %v1381, 7
      %v1383 = vsub.s32 0, %v1382
      %v1384 = vrot.slane %v1377, %v1383
      %v1385 = vlaneseq
      %v1386 = vshrl.u32 %v1385, 7
      %v1387 = vsub.s32 0, %v1386
      %v1388 = vrot.slane %v1378, %v1387
      %1391 = vmatprep.subr.mxu0 0.0
      %1392 = vmatpush1.msra.mxu0 %v1369
      %1393 = vmatprep.subr.mxu0 0.0
      %1394 = vmatpush1.msra.mxu0 %v1370
      %1395 = vmatprep.subr.mxu0 0.0
      %1396 = vmatpush1.msra.mxu0 %v1371
      %1397 = vmatprep.subr.mxu0 0.0
      %1398 = vmatpush1.msra.mxu0 %v1372
      %1399 = vmatprep.subr.mxu0 0.0
      %1400 = vmatpush1.msra.mxu0 0.0
      %1401 = vmatprep.subr.mxu0 0.0
      %1402 = vmatpush1.msra.mxu0 0.0
      %1403 = vmatprep.subr.mxu0 0.0
      %1404 = vmatpush1.msra.mxu0 0.0
      %1405 = vmatprep.subr.mxu0 0.0
      %1406 = vmatpush1.msra.mxu0 0.0
      %1407 = vmatprep.subr.mxu0 0.0
      %1408 = vmatpush1.msra.mxu0 0.0
      %1409 = vmatprep.subr.mxu0 0.0
      %1410 = vmatpush1.msra.mxu0 0.0
      %1411 = vmatprep.subr.mxu0 0.0
      %1412 = vmatpush1.msra.mxu0 0.0
      %1413 = vmatprep.subr.mxu0 0.0
      %1414 = vmatpush1.msra.mxu0 0.0
      %1415 = vmatprep.subr.mxu0 0.0
      %1416 = vmatpush1.msra.mxu0 0.0
      %1417 = vmatprep.subr.mxu0 0.0
      %1418 = vmatpush1.msra.mxu0 0.0
      %1419 = vmatprep.subr.mxu0 0.0
      %1420 = vmatpush1.msra.mxu0 0.0
      %1421 = vmatprep.subr.mxu0 0.0
      %1422 = vmatpush1.msra.mxu0 0.0
      %1423 = vmatprep.subr.mxu0 0.0
      %1424 = vmatpush1.msra.mxu0 0.0
      %1425 = vmatprep.subr.mxu0 0.0
      %1426 = vmatpush1.msra.mxu0 0.0
      %1427 = vmatprep.subr.mxu0 0.0
      %1428 = vmatpush1.msra.mxu0 0.0
      %1429 = vmatprep.subr.mxu0 0.0
      %1430 = vmatpush1.msra.mxu0 0.0
      %1431 = vmatprep.subr.mxu0 0.0
      %1432 = vmatpush1.msra.mxu0 0.0
      %1433 = vmatprep.subr.mxu0 0.0
      %1434 = vmatpush1.msra.mxu0 0.0
      %1435 = vmatprep.subr.mxu0 0.0
      %1436 = vmatpush1.msra.mxu0 0.0
      %1437 = vmatprep.subr.mxu0 0.0
      %1438 = vmatpush1.msra.mxu0 0.0
      %1439 = vmatprep.subr.mxu0 0.0
      %1440 = vmatpush1.msra.mxu0 0.0
      %1441 = vmatprep.subr.mxu0 0.0
      %1442 = vmatpush1.msra.mxu0 0.0
      %1443 = vmatprep.subr.mxu0 0.0
      %1444 = vmatpush1.msra.mxu0 0.0
      %1445 = vmatprep.subr.mxu0 0.0
      %1446 = vmatpush1.msra.mxu0 0.0
      %1447 = vmatprep.subr.mxu0 0.0
      %1448 = vmatpush1.msra.mxu0 0.0
      %1449 = vmatprep.subr.mxu0 0.0
      %1450 = vmatpush1.msra.mxu0 0.0
      %1451 = vmatprep.subr.mxu0 0.0
      %1452 = vmatpush1.msra.mxu0 0.0
      %1453 = vmatprep.subr.mxu0 0.0
      %1454 = vmatpush1.msra.mxu0 0.0
      %1455 = vmatprep.mubr.f32.mxu0 0.0
      %1456 = vmatmul.mubr.f32.gmra.mrb[0].mxu0 %v1065
      %v1457 = vpop.f32.mrb[0].mxu0
      %v1458 = vadd.f32 %v1384, %v1457
      %v1459 = vpop.f32.mrb[0].mxu0
      %1460 = vdwg.mxu0
      %1461 = vmatprep.subr.mxu0 0.0
      %1462 = vmatpush1.msra.mxu0 %v1373
      %1463 = vmatprep.subr.mxu0 0.0
      %1464 = vmatpush1.msra.mxu0 %v1374
      %1465 = vmatprep.subr.mxu0 0.0
      %1466 = vmatpush1.msra.mxu0 %v1375
      %1467 = vmatprep.subr.mxu0 0.0
      %1468 = vmatpush1.msra.mxu0 %v1376
      %1469 = vmatprep.subr.mxu0 0.0
      %1470 = vmatpush1.msra.mxu0 0.0
      %1471 = vmatprep.subr.mxu0 0.0
      %1472 = vmatpush1.msra.mxu0 0.0
      %1473 = vmatprep.subr.mxu0 0.0
      %1474 = vmatpush1.msra.mxu0 0.0
      %1475 = vmatprep.subr.mxu0 0.0
      %1476 = vmatpush1.msra.mxu0 0.0
      %1477 = vmatprep.subr.mxu0 0.0
      %1478 = vmatpush1.msra.mxu0 0.0
      %1479 = vmatprep.subr.mxu0 0.0
      %1480 = vmatpush1.msra.mxu0 0.0
      %1481 = vmatprep.subr.mxu0 0.0
      %1482 = vmatpush1.msra.mxu0 0.0
      %1483 = vmatprep.subr.mxu0 0.0
      %1484 = vmatpush1.msra.mxu0 0.0
      %1485 = vmatprep.subr.mxu0 0.0
      %1486 = vmatpush1.msra.mxu0 0.0
      %1487 = vmatprep.subr.mxu0 0.0
      %1488 = vmatpush1.msra.mxu0 0.0
      %1489 = vmatprep.subr.mxu0 0.0
      %1490 = vmatpush1.msra.mxu0 0.0
      %1491 = vmatprep.subr.mxu0 0.0
      %1492 = vmatpush1.msra.mxu0 0.0
      %1493 = vmatprep.subr.mxu0 0.0
      %1494 = vmatpush1.msra.mxu0 0.0
      %1495 = vmatprep.subr.mxu0 0.0
      %1496 = vmatpush1.msra.mxu0 0.0
      %1497 = vmatprep.subr.mxu0 0.0
      %1498 = vmatpush1.msra.mxu0 0.0
      %1499 = vmatprep.subr.mxu0 0.0
      %1500 = vmatpush1.msra.mxu0 0.0
      %1501 = vmatprep.subr.mxu0 0.0
      %1502 = vmatpush1.msra.mxu0 0.0
      %1503 = vmatprep.subr.mxu0 0.0
      %1504 = vmatpush1.msra.mxu0 0.0
      %1505 = vmatprep.subr.mxu0 0.0
      %1506 = vmatpush1.msra.mxu0 0.0
      %1507 = vmatprep.subr.mxu0 0.0
      %1508 = vmatpush1.msra.mxu0 0.0
      %1509 = vmatprep.subr.mxu0 0.0
      %1510 = vmatpush1.msra.mxu0 0.0
      %1511 = vmatprep.subr.mxu0 0.0
      %1512 = vmatpush1.msra.mxu0 0.0
      %1513 = vmatprep.subr.mxu0 0.0
      %1514 = vmatpush1.msra.mxu0 0.0
      %1515 = vmatprep.subr.mxu0 0.0
      %1516 = vmatpush1.msra.mxu0 0.0
      %1517 = vmatprep.subr.mxu0 0.0
      %1518 = vmatpush1.msra.mxu0 0.0
      %1519 = vmatprep.subr.mxu0 0.0
      %1520 = vmatpush1.msra.mxu0 0.0
      %1521 = vmatprep.subr.mxu0 0.0
      %1522 = vmatpush1.msra.mxu0 0.0
      %1523 = vmatprep.subr.mxu0 0.0
      %1524 = vmatpush1.msra.mxu0 0.0
      %1525 = vmatprep.mubr.f32.mxu0 0.0
      %1526 = vmatmul.mubr.f32.gmra.mrb[0].mxu0 %v1065
      %v1527 = vpop.f32.mrb[0].mxu0
      %v1528 = vadd.f32 %v1388, %v1527
      %v1529 = vpop.f32.mrb[0].mxu0
      %1530 = vdwg.mxu0
      %v1531 = vmul.f32 %v1134, 0.25
      %v1532 = vmul.f32 %v1204, 0.25
      %v1533 = vlaneseq
      %v1534 = vand.u32 %v1533, 127
      %vm1535 = vcmp.lt.s32.totalorder %v1534, 4
      %v1536 = vsel %vm1535, 0.0, -1e+30
      %vm1537 = vcmask 130048
      %v1539 = vsel %vm1537, %v1531, 0
      %v1542 = vsel %vm1537, %v1296, 0
      %1544 = vmatprep.subr.mxu0 0.0
      %1545 = vmatpush1.xpose.msra.mxu0 %v1542
      %1546 = vmatprep.subr.mxu0 0.0
      %1547 = vmatpush1.xpose.msra.mxu0 0.0
      %1548 = vmatprep.subr.mxu0 0.0
      %1549 = vmatpush1.xpose.msra.mxu0 0.0
      %1550 = vmatprep.subr.mxu0 0.0
      %1551 = vmatpush1.xpose.msra.mxu0 0.0
      %1552 = vmatprep.subr.mxu0 0.0
      %1553 = vmatpush1.xpose.msra.mxu0 0.0
      %1554 = vmatprep.subr.mxu0 0.0
      %1555 = vmatpush1.xpose.msra.mxu0 0.0
      %1556 = vmatprep.subr.mxu0 0.0
      %1557 = vmatpush1.xpose.msra.mxu0 0.0
      %1558 = vmatprep.subr.mxu0 0.0
      %1559 = vmatpush1.xpose.msra.mxu0 0.0
      %1560 = vmatprep.subr.mxu0 0.0
      %1561 = vmatpush1.xpose.msra.mxu0 0.0
      %1562 = vmatprep.subr.mxu0 0.0
      %1563 = vmatpush1.xpose.msra.mxu0 0.0
      %1564 = vmatprep.subr.mxu0 0.0
      %1565 = vmatpush1.xpose.msra.mxu0 0.0
      %1566 = vmatprep.subr.mxu0 0.0
      %1567 = vmatpush1.xpose.msra.mxu0 0.0
      %1568 = vmatprep.subr.mxu0 0.0
      %1569 = vmatpush1.xpose.msra.mxu0 0.0
      %1570 = vmatprep.subr.mxu0 0.0
      %1571 = vmatpush1.xpose.msra.mxu0 0.0
      %1572 = vmatprep.subr.mxu0 0.0
      %1573 = vmatpush1.xpose.msra.mxu0 0.0
      %1574 = vmatprep.subr.mxu0 0.0
      %1575 = vmatpush1.xpose.msra.mxu0 0.0
      %1576 = vmatprep.subr.mxu0 0.0
      %1577 = vmatpush1.xpose.msra.mxu0 0.0
      %1578 = vmatprep.subr.mxu0 0.0
      %1579 = vmatpush1.xpose.msra.mxu0 0.0
      %1580 = vmatprep.subr.mxu0 0.0
      %1581 = vmatpush1.xpose.msra.mxu0 0.0
      %1582 = vmatprep.subr.mxu0 0.0
      %1583 = vmatpush1.xpose.msra.mxu0 0.0
      %1584 = vmatprep.subr.mxu0 0.0
      %1585 = vmatpush1.xpose.msra.mxu0 0.0
      %1586 = vmatprep.subr.mxu0 0.0
      %1587 = vmatpush1.xpose.msra.mxu0 0.0
      %1588 = vmatprep.subr.mxu0 0.0
      %1589 = vmatpush1.xpose.msra.mxu0 0.0
      %1590 = vmatprep.subr.mxu0 0.0
      %1591 = vmatpush1.xpose.msra.mxu0 0.0
      %1592 = vmatprep.subr.mxu0 0.0
      %1593 = vmatpush1.xpose.msra.mxu0 0.0
      %1594 = vmatprep.subr.mxu0 0.0
      %1595 = vmatpush1.xpose.msra.mxu0 0.0
      %1596 = vmatprep.subr.mxu0 0.0
      %1597 = vmatpush1.xpose.msra.mxu0 0.0
      %1598 = vmatprep.subr.mxu0 0.0
      %1599 = vmatpush1.xpose.msra.mxu0 0.0
      %1600 = vmatprep.subr.mxu0 0.0
      %1601 = vmatpush1.xpose.msra.mxu0 0.0
      %1602 = vmatprep.subr.mxu0 0.0
      %1603 = vmatpush1.xpose.msra.mxu0 0.0
      %1604 = vmatprep.subr.mxu0 0.0
      %1605 = vmatpush1.xpose.msra.mxu0 0.0
      %1606 = vmatprep.subr.mxu0 0.0
      %1607 = vmatpush1.xpose.msra.mxu0 0.0
      %1608 = vmatprep.mubr.f32.mxu0 0.0
      %1609 = vmatmul.mubr.f32.gmra.mrb[0].mxu0 %v1539
      %v1610 = vpop.f32.mrb[0].mxu0
      %v1611 = vadd.f32 %v1536, %v1610
      %v1612 = vpop.f32.mrb[0].mxu0
      %1613 = vdwg.mxu0
      %v1615 = vsel %vm1537, %v1532, 0
      %v1618 = vsel %vm1537, %v1366, 0
      %1620 = vmatprep.subr.mxu0 0.0
      %1621 = vmatpush1.xpose.msra.mxu0 %v1618
      %1622 = vmatprep.subr.mxu0 0.0
      %1623 = vmatpush1.xpose.msra.mxu0 0.0
      %1624 = vmatprep.subr.mxu0 0.0
      %1625 = vmatpush1.xpose.msra.mxu0 0.0
      %1626 = vmatprep.subr.mxu0 0.0
      %1627 = vmatpush1.xpose.msra.mxu0 0.0
      %1628 = vmatprep.subr.mxu0 0.0
      %1629 = vmatpush1.xpose.msra.mxu0 0.0
      %1630 = vmatprep.subr.mxu0 0.0
      %1631 = vmatpush1.xpose.msra.mxu0 0.0
      %1632 = vmatprep.subr.mxu0 0.0
      %1633 = vmatpush1.xpose.msra.mxu0 0.0
      %1634 = vmatprep.subr.mxu0 0.0
      %1635 = vmatpush1.xpose.msra.mxu0 0.0
      %1636 = vmatprep.subr.mxu0 0.0
      %1637 = vmatpush1.xpose.msra.mxu0 0.0
      %1638 = vmatprep.subr.mxu0 0.0
      %1639 = vmatpush1.xpose.msra.mxu0 0.0
      %1640 = vmatprep.subr.mxu0 0.0
      %1641 = vmatpush1.xpose.msra.mxu0 0.0
      %1642 = vmatprep.subr.mxu0 0.0
      %1643 = vmatpush1.xpose.msra.mxu0 0.0
      %1644 = vmatprep.subr.mxu0 0.0
      %1645 = vmatpush1.xpose.msra.mxu0 0.0
      %1646 = vmatprep.subr.mxu0 0.0
      %1647 = vmatpush1.xpose.msra.mxu0 0.0
      %1648 = vmatprep.subr.mxu0 0.0
      %1649 = vmatpush1.xpose.msra.mxu0 0.0
      %1650 = vmatprep.subr.mxu0 0.0
      %1651 = vmatpush1.xpose.msra.mxu0 0.0
      %1652 = vmatprep.subr.mxu0 0.0
      %1653 = vmatpush1.xpose.msra.mxu0 0.0
      %1654 = vmatprep.subr.mxu0 0.0
      %1655 = vmatpush1.xpose.msra.mxu0 0.0
      %1656 = vmatprep.subr.mxu0 0.0
      %1657 = vmatpush1.xpose.msra.mxu0 0.0
      %1658 = vmatprep.subr.mxu0 0.0
      %1659 = vmatpush1.xpose.msra.mxu0 0.0
      %1660 = vmatprep.subr.mxu0 0.0
      %1661 = vmatpush1.xpose.msra.mxu0 0.0
      %1662 = vmatprep.subr.mxu0 0.0
      %1663 = vmatpush1.xpose.msra.mxu0 0.0
      %1664 = vmatprep.subr.mxu0 0.0
      %1665 = vmatpush1.xpose.msra.mxu0 0.0
      %1666 = vmatprep.subr.mxu0 0.0
      %1667 = vmatpush1.xpose.msra.mxu0 0.0
      %1668 = vmatprep.subr.mxu0 0.0
      %1669 = vmatpush1.xpose.msra.mxu0 0.0
      %1670 = vmatprep.subr.mxu0 0.0
      %1671 = vmatpush1.xpose.msra.mxu0 0.0
      %1672 = vmatprep.subr.mxu0 0.0
      %1673 = vmatpush1.xpose.msra.mxu0 0.0
      %1674 = vmatprep.subr.mxu0 0.0
      %1675 = vmatpush1.xpose.msra.mxu0 0.0
      %1676 = vmatprep.subr.mxu0 0.0
      %1677 = vmatpush1.xpose.msra.mxu0 0.0
      %1678 = vmatprep.subr.mxu0 0.0
      %1679 = vmatpush1.xpose.msra.mxu0 0.0
      %1680 = vmatprep.subr.mxu0 0.0
      %1681 = vmatpush1.xpose.msra.mxu0 0.0
      %1682 = vmatprep.subr.mxu0 0.0
      %1683 = vmatpush1.xpose.msra.mxu0 0.0
      %1684 = vmatprep.mubr.f32.mxu0 0.0
      %1685 = vmatmul.mubr.f32.gmra.mrb[0].mxu0 %v1615
      %v1686 = vpop.f32.mrb[0].mxu0
      %v1687 = vadd.f32 %v1536, %v1686
      %v1688 = vpop.f32.mrb[0].mxu0
      %1689 = vdwg.mxu0
      %vm1690 = vcmask 64512
      %v1691 = vsel %vm1690, %v1611, -inf
      %1692 = vmax.xlane.f32.xlu0 %v1691
      %v1693 = vpop.xlane.xlu0 %1692
      %v1694 = vsel %vm1690, %v1687, -inf
      %1695 = vmax.xlane.f32.xlu0 %v1694
      %v1696 = vpop.xlane.xlu0 %1695
      %v1697 = vsub.f32 %v1611, %v1693
      %v1698 = vsub.f32 %v1687, %v1696
      %v1699 = vmul.f32 %v1697, 1.442695
      %v1700 = vpow.pop %v1699
      %v1701 = vmul.f32 %v1698, 1.442695
      %v1702 = vpow.pop %v1701
      %v1703 = vsel %vm1690, %v1700, 0.0
      %1704 = vadd.xlane.f32.xlu0 %v1703
      %v1705 = vpop.xlane.xlu0 %1704
      %v1706 = vsel %vm1690, %v1702, 0.0
      %1707 = vadd.xlane.f32.xlu0 %v1706
      %v1708 = vpop.xlane.xlu0 %1707
      %v1709 = vrcp.pop %v1705
      %v1710 = vrcp.pop %v1708
      %v1711 = vmul.f32 %v1700, %v1709
      %v1712 = vmul.f32 %v1702, %v1710
      %v1714 = vsel %vm1690, %v1711, 0
      %1716 = vmatprep.subr.mxu0 0.0
      %1717 = vmatpush1.msra.mxu0 %v1458
      %1718 = vmatprep.subr.mxu0 0.0
      %1719 = vmatpush1.msra.mxu0 0.0
      %1720 = vmatprep.subr.mxu0 0.0
      %1721 = vmatpush1.msra.mxu0 0.0
      %1722 = vmatprep.subr.mxu0 0.0
      %1723 = vmatpush1.msra.mxu0 0.0
      %1724 = vmatprep.subr.mxu0 0.0
      %1725 = vmatpush1.msra.mxu0 0.0
      %1726 = vmatprep.subr.mxu0 0.0
      %1727 = vmatpush1.msra.mxu0 0.0
      %1728 = vmatprep.subr.mxu0 0.0
      %1729 = vmatpush1.msra.mxu0 0.0
      %1730 = vmatprep.subr.mxu0 0.0
      %1731 = vmatpush1.msra.mxu0 0.0
      %1732 = vmatprep.subr.mxu0 0.0
      %1733 = vmatpush1.msra.mxu0 0.0
      %1734 = vmatprep.subr.mxu0 0.0
      %1735 = vmatpush1.msra.mxu0 0.0
      %1736 = vmatprep.subr.mxu0 0.0
      %1737 = vmatpush1.msra.mxu0 0.0
      %1738 = vmatprep.subr.mxu0 0.0
      %1739 = vmatpush1.msra.mxu0 0.0
      %1740 = vmatprep.subr.mxu0 0.0
      %1741 = vmatpush1.msra.mxu0 0.0
      %1742 = vmatprep.subr.mxu0 0.0
      %1743 = vmatpush1.msra.mxu0 0.0
      %1744 = vmatprep.subr.mxu0 0.0
      %1745 = vmatpush1.msra.mxu0 0.0
      %1746 = vmatprep.subr.mxu0 0.0
      %1747 = vmatpush1.msra.mxu0 0.0
      %1748 = vmatprep.subr.mxu0 0.0
      %1749 = vmatpush1.msra.mxu0 0.0
      %1750 = vmatprep.subr.mxu0 0.0
      %1751 = vmatpush1.msra.mxu0 0.0
      %1752 = vmatprep.subr.mxu0 0.0
      %1753 = vmatpush1.msra.mxu0 0.0
      %1754 = vmatprep.subr.mxu0 0.0
      %1755 = vmatpush1.msra.mxu0 0.0
      %1756 = vmatprep.subr.mxu0 0.0
      %1757 = vmatpush1.msra.mxu0 0.0
      %1758 = vmatprep.subr.mxu0 0.0
      %1759 = vmatpush1.msra.mxu0 0.0
      %1760 = vmatprep.subr.mxu0 0.0
      %1761 = vmatpush1.msra.mxu0 0.0
      %1762 = vmatprep.subr.mxu0 0.0
      %1763 = vmatpush1.msra.mxu0 0.0
      %1764 = vmatprep.subr.mxu0 0.0
      %1765 = vmatpush1.msra.mxu0 0.0
      %1766 = vmatprep.subr.mxu0 0.0
      %1767 = vmatpush1.msra.mxu0 0.0
      %1768 = vmatprep.subr.mxu0 0.0
      %1769 = vmatpush1.msra.mxu0 0.0
      %1770 = vmatprep.subr.mxu0 0.0
      %1771 = vmatpush1.msra.mxu0 0.0
      %1772 = vmatprep.subr.mxu0 0.0
      %1773 = vmatpush1.msra.mxu0 0.0
      %1774 = vmatprep.subr.mxu0 0.0
      %1775 = vmatpush1.msra.mxu0 0.0
      %1776 = vmatprep.subr.mxu0 0.0
      %1777 = vmatpush1.msra.mxu0 0.0
      %1778 = vmatprep.subr.mxu0 0.0
      %1779 = vmatpush1.msra.mxu0 0.0
      %1780 = vmatprep.mubr.f32.mxu0 0.0
      %1781 = vmatmul.mubr.f32.gmra.mrb[0].mxu0 %v1714
      %v1782 = vpop.f32.mrb[0].mxu0
      %v1783 = vadd.f32 0.0, %v1782
      %v1784 = vpop.f32.mrb[0].mxu0
      %1785 = vdwg.mxu0
      %v1787 = vsel %vm1690, %v1712, 0
      %1789 = vmatprep.subr.mxu0 0.0
      %1790 = vmatpush1.msra.mxu0 %v1528
      %1791 = vmatprep.subr.mxu0 0.0
      %1792 = vmatpush1.msra.mxu0 0.0
      %1793 = vmatprep.subr.mxu0 0.0
      %1794 = vmatpush1.msra.mxu0 0.0
      %1795 = vmatprep.subr.mxu0 0.0
      %1796 = vmatpush1.msra.mxu0 0.0
      %1797 = vmatprep.subr.mxu0 0.0
      %1798 = vmatpush1.msra.mxu0 0.0
      %1799 = vmatprep.subr.mxu0 0.0
      %1800 = vmatpush1.msra.mxu0 0.0
      %1801 = vmatprep.subr.mxu0 0.0
      %1802 = vmatpush1.msra.mxu0 0.0
      %1803 = vmatprep.subr.mxu0 0.0
      %1804 = vmatpush1.msra.mxu0 0.0
      %1805 = vmatprep.subr.mxu0 0.0
      %1806 = vmatpush1.msra.mxu0 0.0
      %1807 = vmatprep.subr.mxu0 0.0
      %1808 = vmatpush1.msra.mxu0 0.0
      %1809 = vmatprep.subr.mxu0 0.0
      %1810 = vmatpush1.msra.mxu0 0.0
      %1811 = vmatprep.subr.mxu0 0.0
      %1812 = vmatpush1.msra.mxu0 0.0
      %1813 = vmatprep.subr.mxu0 0.0
      %1814 = vmatpush1.msra.mxu0 0.0
      %1815 = vmatprep.subr.mxu0 0.0
      %1816 = vmatpush1.msra.mxu0 0.0
      %1817 = vmatprep.subr.mxu0 0.0
      %1818 = vmatpush1.msra.mxu0 0.0
      %1819 = vmatprep.subr.mxu0 0.0
      %1820 = vmatpush1.msra.mxu0 0.0
      %1821 = vmatprep.subr.mxu0 0.0
      %1822 = vmatpush1.msra.mxu0 0.0
      %1823 = vmatprep.subr.mxu0 0.0
      %1824 = vmatpush1.msra.mxu0 0.0
      %1825 = vmatprep.subr.mxu0 0.0
      %1826 = vmatpush1.msra.mxu0 0.0
      %1827 = vmatprep.subr.mxu0 0.0
      %1828 = vmatpush1.msra.mxu0 0.0
      %1829 = vmatprep.subr.mxu0 0.0
      %1830 = vmatpush1.msra.mxu0 0.0
      %1831 = vmatprep.subr.mxu0 0.0
      %1832 = vmatpush1.msra.mxu0 0.0
      %1833 = vmatprep.subr.mxu0 0.0
      %1834 = vmatpush1.msra.mxu0 0.0
      %1835 = vmatprep.subr.mxu0 0.0
      %1836 = vmatpush1.msra.mxu0 0.0
      %1837 = vmatprep.subr.mxu0 0.0
      %1838 = vmatpush1.msra.mxu0 0.0
      %1839 = vmatprep.subr.mxu0 0.0
      %1840 = vmatpush1.msra.mxu0 0.0
      %1841 = vmatprep.subr.mxu0 0.0
      %1842 = vmatpush1.msra.mxu0 0.0
      %1843 = vmatprep.subr.mxu0 0.0
      %1844 = vmatpush1.msra.mxu0 0.0
      %1845 = vmatprep.subr.mxu0 0.0
      %1846 = vmatpush1.msra.mxu0 0.0
      %1847 = vmatprep.subr.mxu0 0.0
      %1848 = vmatpush1.msra.mxu0 0.0
      %1849 = vmatprep.subr.mxu0 0.0
      %1850 = vmatpush1.msra.mxu0 0.0
      %1851 = vmatprep.subr.mxu0 0.0
      %1852 = vmatpush1.msra.mxu0 0.0
      %1853 = vmatprep.mubr.f32.mxu0 0.0
      %1854 = vmatmul.mubr.f32.gmra.mrb[0].mxu0 %v1787
      %v1855 = vpop.f32.mrb[0].mxu0
      %v1856 = vadd.f32 0.0, %v1855
      %v1857 = vpop.f32.mrb[0].mxu0
      %1858 = vdwg.mxu0
      %v1859 = vld [vmem:[%s897] sm:$0xff]
      %v1860 = vld [vmem:[%s897 + $0x8] sm:$0xff]
      %v1861 = vld [vmem:[%s897 + $0x10] sm:$0xff]
      %v1862 = vld [vmem:[%s897 + $0x18] sm:$0xff]
      %v1864 = vsel %vm1537, %v1783, 0
      %1866 = vmatprep.subr.mxu0 0.0
      %1867 = vmatpush1.msra.mxu0 %v1859
      %1868 = vmatprep.subr.mxu0 0.0
      %1869 = vmatpush1.msra.mxu0 %v1860
      %1870 = vmatprep.subr.mxu0 0.0
      %1871 = vmatpush1.msra.mxu0 0.0
      %1872 = vmatprep.subr.mxu0 0.0
      %1873 = vmatpush1.msra.mxu0 0.0
      %1874 = vmatprep.subr.mxu0 0.0
      %1875 = vmatpush1.msra.mxu0 0.0
      %1876 = vmatprep.subr.mxu0 0.0
      %1877 = vmatpush1.msra.mxu0 0.0
      %1878 = vmatprep.subr.mxu0 0.0
      %1879 = vmatpush1.msra.mxu0 0.0
      %1880 = vmatprep.subr.mxu0 0.0
      %1881 = vmatpush1.msra.mxu0 0.0
      %1882 = vmatprep.subr.mxu0 0.0
      %1883 = vmatpush1.msra.mxu0 0.0
      %1884 = vmatprep.subr.mxu0 0.0
      %1885 = vmatpush1.msra.mxu0 0.0
      %1886 = vmatprep.subr.mxu0 0.0
      %1887 = vmatpush1.msra.mxu0 0.0
      %1888 = vmatprep.subr.mxu0 0.0
      %1889 = vmatpush1.msra.mxu0 0.0
      %1890 = vmatprep.subr.mxu0 0.0
      %1891 = vmatpush1.msra.mxu0 0.0
      %1892 = vmatprep.subr.mxu0 0.0
      %1893 = vmatpush1.msra.mxu0 0.0
      %1894 = vmatprep.subr.mxu0 0.0
      %1895 = vmatpush1.msra.mxu0 0.0
      %1896 = vmatprep.subr.mxu0 0.0
      %1897 = vmatpush1.msra.mxu0 0.0
      %1898 = vmatprep.subr.mxu0 0.0
      %1899 = vmatpush1.msra.mxu0 0.0
      %1900 = vmatprep.subr.mxu0 0.0
      %1901 = vmatpush1.msra.mxu0 0.0
      %1902 = vmatprep.subr.mxu0 0.0
      %1903 = vmatpush1.msra.mxu0 0.0
      %1904 = vmatprep.subr.mxu0 0.0
      %1905 = vmatpush1.msra.mxu0 0.0
      %1906 = vmatprep.subr.mxu0 0.0
      %1907 = vmatpush1.msra.mxu0 0.0
      %1908 = vmatprep.subr.mxu0 0.0
      %1909 = vmatpush1.msra.mxu0 0.0
      %1910 = vmatprep.subr.mxu0 0.0
      %1911 = vmatpush1.msra.mxu0 0.0
      %1912 = vmatprep.subr.mxu0 0.0
      %1913 = vmatpush1.msra.mxu0 0.0
      %1914 = vmatprep.subr.mxu0 0.0
      %1915 = vmatpush1.msra.mxu0 0.0
      %1916 = vmatprep.subr.mxu0 0.0
      %1917 = vmatpush1.msra.mxu0 0.0
      %1918 = vmatprep.subr.mxu0 0.0
      %1919 = vmatpush1.msra.mxu0 0.0
      %1920 = vmatprep.subr.mxu0 0.0
      %1921 = vmatpush1.msra.mxu0 0.0
      %1922 = vmatprep.subr.mxu0 0.0
      %1923 = vmatpush1.msra.mxu0 0.0
      %1924 = vmatprep.subr.mxu0 0.0
      %1925 = vmatpush1.msra.mxu0 0.0
      %1926 = vmatprep.subr.mxu0 0.0
      %1927 = vmatpush1.msra.mxu0 0.0
      %1928 = vmatprep.subr.mxu0 0.0
      %1929 = vmatpush1.msra.mxu0 0.0
      %1930 = vmatprep.mubr.f32.mxu0 0.0
      %1931 = vmatmul.mubr.f32.gmra.mrb[0].mxu0 %v1864
      %v1932 = vpop.f32.mrb[0].mxu0
      %v1933 = vadd.f32 0.0, %v1932
      %v1934 = vpop.f32.mrb[0].mxu0
      %1935 = vdwg.mxu0
      %v1937 = vsel %vm1537, %v1856, 0
      %1939 = vmatprep.subr.mxu0 0.0
      %1940 = vmatpush1.msra.mxu0 %v1861
      %1941 = vmatprep.subr.mxu0 0.0
      %1942 = vmatpush1.msra.mxu0 %v1862
      %1943 = vmatprep.subr.mxu0 0.0
      %1944 = vmatpush1.msra.mxu0 0.0
      %1945 = vmatprep.subr.mxu0 0.0
      %1946 = vmatpush1.msra.mxu0 0.0
      %1947 = vmatprep.subr.mxu0 0.0
      %1948 = vmatpush1.msra.mxu0 0.0
      %1949 = vmatprep.subr.mxu0 0.0
      %1950 = vmatpush1.msra.mxu0 0.0
      %1951 = vmatprep.subr.mxu0 0.0
      %1952 = vmatpush1.msra.mxu0 0.0
      %1953 = vmatprep.subr.mxu0 0.0
      %1954 = vmatpush1.msra.mxu0 0.0
      %1955 = vmatprep.subr.mxu0 0.0
      %1956 = vmatpush1.msra.mxu0 0.0
      %1957 = vmatprep.subr.mxu0 0.0
      %1958 = vmatpush1.msra.mxu0 0.0
      %1959 = vmatprep.subr.mxu0 0.0
      %1960 = vmatpush1.msra.mxu0 0.0
      %1961 = vmatprep.subr.mxu0 0.0
      %1962 = vmatpush1.msra.mxu0 0.0
      %1963 = vmatprep.subr.mxu0 0.0
      %1964 = vmatpush1.msra.mxu0 0.0
      %1965 = vmatprep.subr.mxu0 0.0
      %1966 = vmatpush1.msra.mxu0 0.0
      %1967 = vmatprep.subr.mxu0 0.0
      %1968 = vmatpush1.msra.mxu0 0.0
      %1969 = vmatprep.subr.mxu0 0.0
      %1970 = vmatpush1.msra.mxu0 0.0
      %1971 = vmatprep.subr.mxu0 0.0
      %1972 = vmatpush1.msra.mxu0 0.0
      %1973 = vmatprep.subr.mxu0 0.0
      %1974 = vmatpush1.msra.mxu0 0.0
      %1975 = vmatprep.subr.mxu0 0.0
      %1976 = vmatpush1.msra.mxu0 0.0
      %1977 = vmatprep.subr.mxu0 0.0
      %1978 = vmatpush1.msra.mxu0 0.0
      %1979 = vmatprep.subr.mxu0 0.0
      %1980 = vmatpush1.msra.mxu0 0.0
      %1981 = vmatprep.subr.mxu0 0.0
      %1982 = vmatpush1.msra.mxu0 0.0
      %1983 = vmatprep.subr.mxu0 0.0
      %1984 = vmatpush1.msra.mxu0 0.0
      %1985 = vmatprep.subr.mxu0 0.0
      %1986 = vmatpush1.msra.mxu0 0.0
      %1987 = vmatprep.subr.mxu0 0.0
      %1988 = vmatpush1.msra.mxu0 0.0
      %1989 = vmatprep.subr.mxu0 0.0
      %1990 = vmatpush1.msra.mxu0 0.0
      %1991 = vmatprep.subr.mxu0 0.0
      %1992 = vmatpush1.msra.mxu0 0.0
      %1993 = vmatprep.subr.mxu0 0.0
      %1994 = vmatpush1.msra.mxu0 0.0
      %1995 = vmatprep.subr.mxu0 0.0
      %1996 = vmatpush1.msra.mxu0 0.0
      %1997 = vmatprep.subr.mxu0 0.0
      %1998 = vmatpush1.msra.mxu0 0.0
      %1999 = vmatprep.subr.mxu0 0.0
      %2000 = vmatpush1.msra.mxu0 0.0
      %2001 = vmatprep.subr.mxu0 0.0
      %2002 = vmatpush1.msra.mxu0 0.0
      %2003 = vmatprep.mubr.f32.mxu0 0.0
      %2004 = vmatmul.mubr.f32.gmra.mrb[0].mxu0 %v1937
      %v2005 = vpop.f32.mrb[0].mxu0
      %v2006 = vadd.f32 0.0, %v2005
      %v2007 = vpop.f32.mrb[0].mxu0
      %2008 = vdwg.mxu0
      %v2009 = vsel %vm1063, %v1933, 0.0
      %v2010 = vsel %vm1063, %v2006, 0.0
      %v2011 = vadd.f32 %v2009, %v2010
      %v2012 = vld [vmem:[%s900] sm:$0x1]
      %v2014 = vlaneseq
      %v2015 = vshrl.u32 %v2014, 7
      %v2016 = vsub.s32 0, %v2015
      %v2017 = vrot.slane %v2012, %v2016
      %v2019 = vadd.f32 %v2011, %v2017
      %v2020 = vadd.f32 %v1040, %v2019
      %v2021 = vsel %vm1063, %v2020, 0.0
      %2022 = vadd.xlane.f32.xlu0 %v2021
      %v2023 = vpop.xlane.xlu0 %2022
      %v2024 = vrcp.pop 32.0
      %v2025 = vmul.f32 %v2023, %v2024
      %v2026 = vsub.f32 %v2020, %v2025
      %v2027 = vmul.f32 %v2026, %v2026
      %v2028 = vsel %vm1063, %v2027, 0.0
      %2029 = vadd.xlane.f32.xlu0 %v2028
      %v2030 = vpop.xlane.xlu0 %2029
      %v2031 = vmul.f32 %v2030, %v2024
      %v2032 = vadd.f32 %v2031, 1e-05
      %v2033 = vrsqrt.pop %v2032
      %v2034 = vmul.f32 %v2026, %v2033
      %v2035 = vld [vmem:[%s903] sm:$0x1]
      %v2037 = vlaneseq
      %v2038 = vshrl.u32 %v2037, 7
      %v2039 = vsub.s32 0, %v2038
      %v2040 = vrot.slane %v2035, %v2039
      %v2042 = vmul.f32 %v2034, %v2040
      %v2043 = vld [vmem:[%s906] sm:$0x1]
      %v2045 = vlaneseq
      %v2046 = vshrl.u32 %v2045, 7
      %v2047 = vsub.s32 0, %v2046
      %v2048 = vrot.slane %v2043, %v2047
      %v2050 = vadd.f32 %v2042, %v2048
      %v2051 = vld [vmem:[%s911] sm:$0xff]
      %v2052 = vld [vmem:[%s911 + $0x8] sm:$0xff]
      %v2053 = vld [vmem:[%s911 + $0x10] sm:$0xff]
      %v2054 = vld [vmem:[%s911 + $0x18] sm:$0xff]
      %v2055 = vld [vmem:[%s914] sm:$0x1]
      %v2057 = vlaneseq
      %v2058 = vshrl.u32 %v2057, 7
      %v2059 = vsub.s32 0, %v2058
      %v2060 = vrot.slane %v2055, %v2059
      %v2063 = vsel %vm1063, %v2050, 0
      %2065 = vmatprep.subr.mxu0 0.0
      %2066 = vmatpush1.msra.mxu0 %v2051
      %2067 = vmatprep.subr.mxu0 0.0
      %2068 = vmatpush1.msra.mxu0 %v2052
      %2069 = vmatprep.subr.mxu0 0.0
      %2070 = vmatpush1.msra.mxu0 %v2053
      %2071 = vmatprep.subr.mxu0 0.0
      %2072 = vmatpush1.msra.mxu0 %v2054
      %2073 = vmatprep.subr.mxu0 0.0
      %2074 = vmatpush1.msra.mxu0 0.0
      %2075 = vmatprep.subr.mxu0 0.0
      %2076 = vmatpush1.msra.mxu0 0.0
      %2077 = vmatprep.subr.mxu0 0.0
      %2078 = vmatpush1.msra.mxu0 0.0
      %2079 = vmatprep.subr.mxu0 0.0
      %2080 = vmatpush1.msra.mxu0 0.0
      %2081 = vmatprep.subr.mxu0 0.0
      %2082 = vmatpush1.msra.mxu0 0.0
      %2083 = vmatprep.subr.mxu0 0.0
      %2084 = vmatpush1.msra.mxu0 0.0
      %2085 = vmatprep.subr.mxu0 0.0
      %2086 = vmatpush1.msra.mxu0 0.0
      %2087 = vmatprep.subr.mxu0 0.0
      %2088 = vmatpush1.msra.mxu0 0.0
      %2089 = vmatprep.subr.mxu0 0.0
      %2090 = vmatpush1.msra.mxu0 0.0
      %2091 = vmatprep.subr.mxu0 0.0
      %2092 = vmatpush1.msra.mxu0 0.0
      %2093 = vmatprep.subr.mxu0 0.0
      %2094 = vmatpush1.msra.mxu0 0.0
      %2095 = vmatprep.subr.mxu0 0.0
      %2096 = vmatpush1.msra.mxu0 0.0
      %2097 = vmatprep.subr.mxu0 0.0
      %2098 = vmatpush1.msra.mxu0 0.0
      %2099 = vmatprep.subr.mxu0 0.0
      %2100 = vmatpush1.msra.mxu0 0.0
      %2101 = vmatprep.subr.mxu0 0.0
      %2102 = vmatpush1.msra.mxu0 0.0
      %2103 = vmatprep.subr.mxu0 0.0
      %2104 = vmatpush1.msra.mxu0 0.0
      %2105 = vmatprep.subr.mxu0 0.0
      %2106 = vmatpush1.msra.mxu0 0.0
      %2107 = vmatprep.subr.mxu0 0.0
      %2108 = vmatpush1.msra.mxu0 0.0
      %2109 = vmatprep.subr.mxu0 0.0
      %2110 = vmatpush1.msra.mxu0 0.0
      %2111 = vmatprep.subr.mxu0 0.0
      %2112 = vmatpush1.msra.mxu0 0.0
      %2113 = vmatprep.subr.mxu0 0.0
      %2114 = vmatpush1.msra.mxu0 0.0
      %2115 = vmatprep.subr.mxu0 0.0
      %2116 = vmatpush1.msra.mxu0 0.0
      %2117 = vmatprep.subr.mxu0 0.0
      %2118 = vmatpush1.msra.mxu0 0.0
      %2119 = vmatprep.subr.mxu0 0.0
      %2120 = vmatpush1.msra.mxu0 0.0
      %2121 = vmatprep.subr.mxu0 0.0
      %2122 = vmatpush1.msra.mxu0 0.0
      %2123 = vmatprep.subr.mxu0 0.0
      %2124 = vmatpush1.msra.mxu0 0.0
      %2125 = vmatprep.subr.mxu0 0.0
      %2126 = vmatpush1.msra.mxu0 0.0
      %2127 = vmatprep.subr.mxu0 0.0
      %2128 = vmatpush1.msra.mxu0 0.0
      %2129 = vmatprep.mubr.f32.mxu0 0.0
      %2130 = vmatmul.mubr.f32.gmra.mrb[0].mxu0 %v2063
      %v2131 = vpop.f32.mrb[0].mxu0
      %v2132 = vadd.f32 %v2060, %v2131
      %v2133 = vpop.f32.mrb[0].mxu0
      %2134 = vdwg.mxu0
      %v2135 = vmax.f32 %v2132, 0.0
      %v2136 = vld [vmem:[%s919] sm:$0xff]
      %v2137 = vld [vmem:[%s919 + $0x8] sm:$0xff]
      %v2138 = vld [vmem:[%s919 + $0x10] sm:$0xff]
      %v2139 = vld [vmem:[%s919 + $0x18] sm:$0xff]
      %v2140 = vld [vmem:[%s919 + $0x20] sm:$0xff]
      %v2141 = vld [vmem:[%s919 + $0x28] sm:$0xff]
      %v2142 = vld [vmem:[%s919 + $0x30] sm:$0xff]
      %v2143 = vld [vmem:[%s919 + $0x38] sm:$0xff]
      %v2144 = vld [vmem:[%s922] sm:$0x1]
      %v2146 = vlaneseq
      %v2147 = vshrl.u32 %v2146, 7
      %v2148 = vsub.s32 0, %v2147
      %v2149 = vrot.slane %v2144, %v2148
      %vm2151 = vcmask 523264
      %v2153 = vsel %vm2151, %v2135, 0
      %2155 = vmatprep.subr.mxu0 0.0
      %2156 = vmatpush1.msra.mxu0 %v2136
      %2157 = vmatprep.subr.mxu0 0.0
      %2158 = vmatpush1.msra.mxu0 %v2137
      %2159 = vmatprep.subr.mxu0 0.0
      %2160 = vmatpush1.msra.mxu0 %v2138
      %2161 = vmatprep.subr.mxu0 0.0
      %2162 = vmatpush1.msra.mxu0 %v2139
      %2163 = vmatprep.subr.mxu0 0.0
      %2164 = vmatpush1.msra.mxu0 %v2140
      %2165 = vmatprep.subr.mxu0 0.0
      %2166 = vmatpush1.msra.mxu0 %v2141
      %2167 = vmatprep.subr.mxu0 0.0
      %2168 = vmatpush1.msra.mxu0 %v2142
      %2169 = vmatprep.subr.mxu0 0.0
      %2170 = vmatpush1.msra.mxu0 %v2143
      %2171 = vmatprep.subr.mxu0 0.0
      %2172 = vmatpush1.msra.mxu0 0.0
      %2173 = vmatprep.subr.mxu0 0.0
      %2174 = vmatpush1.msra.mxu0 0.0
      %2175 = vmatprep.subr.mxu0 0.0
      %2176 = vmatpush1.msra.mxu0 0.0
      %2177 = vmatprep.subr.mxu0 0.0
      %2178 = vmatpush1.msra.mxu0 0.0
      %2179 = vmatprep.subr.mxu0 0.0
      %2180 = vmatpush1.msra.mxu0 0.0
      %2181 = vmatprep.subr.mxu0 0.0
      %2182 = vmatpush1.msra.mxu0 0.0
      %2183 = vmatprep.subr.mxu0 0.0
      %2184 = vmatpush1.msra.mxu0 0.0
      %2185 = vmatprep.subr.mxu0 0.0
      %2186 = vmatpush1.msra.mxu0 0.0
      %2187 = vmatprep.subr.mxu0 0.0
      %2188 = vmatpush1.msra.mxu0 0.0
      %2189 = vmatprep.subr.mxu0 0.0
      %2190 = vmatpush1.msra.mxu0 0.0
      %2191 = vmatprep.subr.mxu0 0.0
      %2192 = vmatpush1.msra.mxu0 0.0
      %2193 = vmatprep.subr.mxu0 0.0
      %2194 = vmatpush1.msra.mxu0 0.0
      %2195 = vmatprep.subr.mxu0 0.0
      %2196 = vmatpush1.msra.mxu0 0.0
      %2197 = vmatprep.subr.mxu0 0.0
      %2198 = vmatpush1.msra.mxu0 0.0
      %2199 = vmatprep.subr.mxu0 0.0
      %2200 = vmatpush1.msra.mxu0 0.0
      %2201 = vmatprep.subr.mxu0 0.0
      %2202 = vmatpush1.msra.mxu0 0.0
      %2203 = vmatprep.subr.mxu0 0.0
      %2204 = vmatpush1.msra.mxu0 0.0
      %2205 = vmatprep.subr.mxu0 0.0
      %2206 = vmatpush1.msra.mxu0 0.0
      %2207 = vmatprep.subr.mxu0 0.0
      %2208 = vmatpush1.msra.mxu0 0.0
      %2209 = vmatprep.subr.mxu0 0.0
      %2210 = vmatpush1.msra.mxu0 0.0
      %2211 = vmatprep.subr.mxu0 0.0
      %2212 = vmatpush1.msra.mxu0 0.0
      %2213 = vmatprep.subr.mxu0 0.0
      %2214 = vmatpush1.msra.mxu0 0.0
      %2215 = vmatprep.subr.mxu0 0.0
      %2216 = vmatpush1.msra.mxu0 0.0
      %2217 = vmatprep.subr.mxu0 0.0
      %2218 = vmatpush1.msra.mxu0 0.0
      %2219 = vmatprep.mubr.f32.mxu0 0.0
      %2220 = vmatmul.mubr.f32.gmra.mrb[0].mxu0 %v2153
      %v2221 = vpop.f32.mrb[0].mxu0
      %v2222 = vadd.f32 %v2149, %v2221
      %v2223 = vpop.f32.mrb[0].mxu0
      %2224 = vdwg.mxu0
      %v2225 = vadd.f32 %v2050, %v2222
      %v2226 = vsel %vm1063, %v2225, 0.0
      %2227 = vadd.xlane.f32.xlu0 %v2226
      %v2228 = vpop.xlane.xlu0 %2227
      %v2229 = vmul.f32 %v2228, %v2024
      %v2230 = vsub.f32 %v2225, %v2229
      %v2231 = vmul.f32 %v2230, %v2230
      %v2232 = vsel %vm1063, %v2231, 0.0
      %2233 = vadd.xlane.f32.xlu0 %v2232
      %v2234 = vpop.xlane.xlu0 %2233
      %v2235 = vmul.f32 %v2234, %v2024
      %v2236 = vadd.f32 %v2235, 1e-05
      %v2237 = vrsqrt.pop %v2236
      %v2238 = vmul.f32 %v2230, %v2237
      %v2239 = vld [vmem:[%s925] sm:$0x1]
      %v2241 = vlaneseq
      %v2242 = vshrl.u32 %v2241, 7
      %v2243 = vsub.s32 0, %v2242
      %v2244 = vrot.slane %v2239, %v2243
      %v2246 = vmul.f32 %v2238, %v2244
      %v2247 = vld [vmem:[%s928] sm:$0x1]
      %v2249 = vlaneseq
      %v2250 = vshrl.u32 %v2249, 7
      %v2251 = vsub.s32 0, %v2250
      %v2252 = vrot.slane %v2247, %v2251
      %v2254 = vadd.f32 %v2246, %v2252
      %2255 = vst.msk [vmem:[#allocation2] sm:$0xff] %vm1063, %v2254
      %p2256 = scmp.eq.s32.totalorder %s37, 1
      // Predicated region
      $region109: #{itransformer_multi_dlinear_forward.1} parent=103 // pred_check
        %p2257 = pneg %p2256
      $region110: #{itransformer_multi_dlinear_forward.1} parent=103 // pred_check_branch
        %2259 = sbr.rel (%p2257) target = $region112
      $region111: #{itransformer_multi_dlinear_forward.1} parent=103 // pred_region
        %v2260 = vld [vmem:[%s19] sm:$0xff]
        %v2261 = vld [vmem:[%s19 + $0x8] sm:$0xff]
        %v2262 = vld [vmem:[%s19 + $0x10] sm:$0xff]
        %v2263 = vld [vmem:[%s19 + $0x18] sm:$0xff]
        %v2264 = vld [vmem:[%s20] sm:$0x1]
        %v2266 = vlaneseq
        %v2267 = vshrl.u32 %v2266, 7
        %v2268 = vsub.s32 0, %v2267
        %v2269 = vrot.slane %v2264, %v2268
        %v2272 = vsel %vm1063, %v2254, 0
        %2274 = vmatprep.subr.mxu0 0.0
        %2275 = vmatpush1.msra.mxu0 %v2260
        %2276 = vmatprep.subr.mxu0 0.0
        %2277 = vmatpush1.msra.mxu0 %v2261
        %2278 = vmatprep.subr.mxu0 0.0
        %2279 = vmatpush1.msra.mxu0 %v2262
        %2280 = vmatprep.subr.mxu0 0.0
        %2281 = vmatpush1.msra.mxu0 %v2263
        %2282 = vmatprep.subr.mxu0 0.0
        %2283 = vmatpush1.msra.mxu0 0.0
        %2284 = vmatprep.subr.mxu0 0.0
        %2285 = vmatpush1.msra.mxu0 0.0
        %2286 = vmatprep.subr.mxu0 0.0
        %2287 = vmatpush1.msra.mxu0 0.0
        %2288 = vmatprep.subr.mxu0 0.0
        %2289 = vmatpush1.msra.mxu0 0.0
        %2290 = vmatprep.subr.mxu0 0.0
        %2291 = vmatpush1.msra.mxu0 0.0
        %2292 = vmatprep.subr.mxu0 0.0
        %2293 = vmatpush1.msra.mxu0 0.0
        %2294 = vmatprep.subr.mxu0 0.0
        %2295 = vmatpush1.msra.mxu0 0.0
        %2296 = vmatprep.subr.mxu0 0.0
        %2297 = vmatpush1.msra.mxu0 0.0
        %2298 = vmatprep.subr.mxu0 0.0
        %2299 = vmatpush1.msra.mxu0 0.0
        %2300 = vmatprep.subr.mxu0 0.0
        %2301 = vmatpush1.msra.mxu0 0.0
        %2302 = vmatprep.subr.mxu0 0.0
        %2303 = vmatpush1.msra.mxu0 0.0
        %2304 = vmatprep.subr.mxu0 0.0
        %2305 = vmatpush1.msra.mxu0 0.0
        %2306 = vmatprep.subr.mxu0 0.0
        %2307 = vmatpush1.msra.mxu0 0.0
        %2308 = vmatprep.subr.mxu0 0.0
        %2309 = vmatpush1.msra.mxu0 0.0
        %2310 = vmatprep.subr.mxu0 0.0
        %2311 = vmatpush1.msra.mxu0 0.0
        %2312 = vmatprep.subr.mxu0 0.0
        %2313 = vmatpush1.msra.mxu0 0.0
        %2314 = vmatprep.subr.mxu0 0.0
        %2315 = vmatpush1.msra.mxu0 0.0
        %2316 = vmatprep.subr.mxu0 0.0
        %2317 = vmatpush1.msra.mxu0 0.0
        %2318 = vmatprep.subr.mxu0 0.0
        %2319 = vmatpush1.msra.mxu0 0.0
        %2320 = vmatprep.subr.mxu0 0.0
        %2321 = vmatpush1.msra.mxu0 0.0
        %2322 = vmatprep.subr.mxu0 0.0
        %2323 = vmatpush1.msra.mxu0 0.0
        %2324 = vmatprep.subr.mxu0 0.0
        %2325 = vmatpush1.msra.mxu0 0.0
        %2326 = vmatprep.subr.mxu0 0.0
        %2327 = vmatpush1.msra.mxu0 0.0
        %2328 = vmatprep.subr.mxu0 0.0
        %2329 = vmatpush1.msra.mxu0 0.0
        %2330 = vmatprep.subr.mxu0 0.0
        %2331 = vmatpush1.msra.mxu0 0.0
        %2332 = vmatprep.subr.mxu0 0.0
        %2333 = vmatpush1.msra.mxu0 0.0
        %2334 = vmatprep.subr.mxu0 0.0
        %2335 = vmatpush1.msra.mxu0 0.0
        %2336 = vmatprep.subr.mxu0 0.0
        %2337 = vmatpush1.msra.mxu0 0.0
        %2338 = vmatprep.mubr.f32.mxu0 0.0
        %2339 = vmatmul.mubr.f32.gmra.mrb[0].mxu0 %v2272
        %v2340 = vpop.f32.mrb[0].mxu0
        %v2341 = vadd.f32 %v2269, %v2340
        %v2342 = vpop.f32.mrb[0].mxu0
        %2343 = vdwg.mxu0
        %v2344 = vld [vmem:[#allocation4] sm:$0xff]
        %2346 = vset.pattern.permute.xlu0 0
        %2347 = vperm.xlu0 %2346, %v2344
        %v2348 = vpop.permute.xlu0 %2347
        %v2350 = vmul.f32 %v2341, %v2348
        %v2351 = vld [vmem:[#allocation3] sm:$0xff]
        %2353 = vset.pattern.permute.xlu0 0
        %2354 = vperm.xlu0 %2353, %v2351
        %v2355 = vpop.permute.xlu0 %2354
        %v2357 = vadd.f32 %v2350, %v2355
        %2358 = vst [vmem:[%s932] sm:$0xff] %v2357
      $region112: #{itransformer_multi_dlinear_forward.1} parent=103 // pred_fallthru
        _
      %p2359 = scmp.lt.s32.totalorder %s36, 1
      %s2360 = scalar_select %p2359, %s36, 1
      %s2361 = smul.addr %s2360, 8
      %s2362 = scalar_lea.vmem %s21, %s2361
      // Predicated region
      $region113: #{itransformer_multi_dlinear_forward.1} parent=103 // pred_check
        %p2363 = pneg %p588
      $region114: #{itransformer_multi_dlinear_forward.1} parent=103 // pred_check_branch
        %2365 = sbr.rel (%p2363) target = $region116
      $region115: #{itransformer_multi_dlinear_forward.1} parent=103 // pred_region
        _
      $region116: #{itransformer_multi_dlinear_forward.1} parent=103 // pred_fallthru
        _
    $region104: #{itransformer_multi_dlinear_forward.1} parent=5 // pred_fallthru
      _
    %p2366 = scmp.le.s32.totalorder 2, %s27
    // Predicated region
    $region117: #{itransformer_multi_dlinear_forward.1} parent=5 // pred_check
      %p2367 = pneg %p2366
    $region118: #{itransformer_multi_dlinear_forward.1} parent=5 // pred_check_branch
      %2369 = sbr.rel (%p2367) target = $region120
    $region119: #{itransformer_multi_dlinear_forward.1} parent=5 // pred_region
      %s2370 = ssub.s32 %s27, 2
      // Predicated region
      $region121: #{itransformer_multi_dlinear_forward.1} parent=119 // pred_check
        %p2371 = pneg %p594
      $region122: #{itransformer_multi_dlinear_forward.1} parent=119 // pred_check_branch
        %2373 = sbr.rel (%p2371) target = $region124
      $region123: #{itransformer_multi_dlinear_forward.1} parent=119 // pred_region
        %p2374 = scmp.lt.s32.totalorder %s38, 1
        %s2375 = scalar_select %p2374, %s38, 1
        %s2376 = smul.addr %s2375, 8
        %s2377 = scalar_lea.vmem %s21, %s2376
      $region124: #{itransformer_multi_dlinear_forward.1} parent=119 // pred_fallthru
        _
    $region120: #{itransformer_multi_dlinear_forward.1} parent=5 // pred_fallthru
      _
  $region6: #{itransformer_multi_dlinear_forward.1} parent=0 // loop_footer
    %s31 = sadd.s32 1, %s27
  $region7: #{itransformer_multi_dlinear_forward.1} parent=0 // loop_footer_branch
    %26 = sbr.rel target = $region3
  $region8: #{itransformer_multi_dlinear_forward.1} parent=0 // loop_exit
    _

</llo_original>
